<compile_context>
chip_gen: v6e
topology: v6e:2x2x1
jax: 0.10.0
libtpu: 0.0.40
codegen_flags: <defaults>
</compile_context>

<pallas_src>
import functools

import jax
import jax.numpy as jnp
import numpy as np
from jax import lax
from jax.experimental import pallas as pl
from jax.experimental.pallas import tpu as pltpu

BN_EPS = 1e-5        # PyTorch nn.BatchNorm2d default eps
EXPANSION = 4        # Bottleneck.expansion
LANES = 128          # TPU lane width


# ------------------------------- small utils ------------------------------- #

def _round_up(v, m):
    return ((v + m - 1) // m) * m


@functools.lru_cache(maxsize=1)
def _vmem_limit_bytes():
    """Scoped-VMEM budget: ~70% of physical (128 MiB v5e/v6e, 64 MiB v7x)."""
    try:
        cap = int(pltpu.get_tpu_info().vmem_capacity_bytes)
    except Exception:
        cap = 64 * 1024 * 1024
    return max(32 * 1024 * 1024, min(96 * 1024 * 1024, int(cap * 0.70)))


def _choose_tm(M, block_m, min_steps=4):
    """M-tile: as big as possible for the HBM roofline, but keep >=min_steps
    grid steps (pipeline overlap / 2-TC split) and 128/256 alignment."""
    t = min(block_m, M)
    if M // max(t, 1) < min_steps:
        t = max(M // min_steps, 8)
    for m in (256, 128, 16, 8):
        if t >= m:
            return (t // m) * m
    return 8


# ----------------------------- Pallas kernels ------------------------------ #

def _make_matmul_bn_kernel(apply_relu: bool, has_residual: bool):
    """1x1-conv-as-matmul + folded-BN affine (+ residual) (+ ReLU) epilogue.

    p_ref:  (TM, Cin_p)    bf16 pixels
    w_ref:  (Cin_p, Cout_p) bf16 weights
    scale/bias: (1, Cout_p) f32 folded BatchNorm
    res_ref (optional): (TM, Cout_p) bf16 residual (identity branch)
    o_ref:  (TM, Cout_p)   bf16 or f32 (cast on store)
    """
    if has_residual:
        def kernel(p_ref, w_ref, scale_ref, bias_ref, res_ref, o_ref):
            acc = jnp.dot(p_ref[...], w_ref[...],
                          preferred_element_type=jnp.float32)
            y = acc * scale_ref[...] + bias_ref[...] \
                + res_ref[...].astype(jnp.float32)
            if apply_relu:
                y = jnp.maximum(y, 0.0)
            o_ref[...] = y.astype(o_ref.dtype)
    else:
        def kernel(p_ref, w_ref, scale_ref, bias_ref, o_ref):
            acc = jnp.dot(p_ref[...], w_ref[...],
                          preferred_element_type=jnp.float32)
            y = acc * scale_ref[...] + bias_ref[...]
            if apply_relu:
                y = jnp.maximum(y, 0.0)
            o_ref[...] = y.astype(o_ref.dtype)
    return kernel


def _make_conv3x3_kernel(KH, KW, stride, Ho, Wo, apply_relu: bool):
    """Direct 3x3 conv + folded BN (+ReLU). One image per grid step.

    x_ref:  (Hp, Wp, Cin_p)        bf16 spatially padded activation (in VMEM)
    w_ref:  (KH*KW, Cin_p, Cout_p) bf16
    scale/bias: (1, Cout_p)        f32
    o_ref:  (Ho*Wo, Cout_p)        bf16 (cast on store)
    acc_ref: VMEM f32 (Ho*Wo, Cout_p) scratch accumulator
    """
    def kernel(x_ref, w_ref, scale_ref, bias_ref, o_ref, acc_ref):
        x = x_ref[...]                                 # (Hp, Wp, Cin_p) bf16
        cin = x.shape[-1]
        first = True

        def accumulate(win2d, tap):
            nonlocal first
            contrib = jnp.dot(win2d, w_ref[tap],
                              preferred_element_type=jnp.float32)
            if first:
                acc_ref[...] = contrib
                first = False
            else:
                acc_ref[...] += contrib

        if stride == 1:
            # W-shift once per column tap, then every row tap is an aligned
            # contiguous row-slice of the flattened (Hp*Wo, Cin_p) matrix.
            for dj in range(KW):
                xj = x[:, dj:dj + Wo, :]
                xj = xj.reshape(xj.shape[0] * Wo, cin)        # (Hp*Wo, Cin_p)
                for di in range(KH):
                    win = xj[di * Wo:di * Wo + Ho * Wo]
                    accumulate(win, di * KW + dj)
        else:
            for di in range(KH):
                for dj in range(KW):
                    win = x[di:di + (Ho - 1) * stride + 1:stride,
                            dj:dj + (Wo - 1) * stride + 1:stride, :]
                    accumulate(win.reshape(Ho * Wo, cin), di * KW + dj)

        y = acc_ref[...] * scale_ref[...] + bias_ref[...]
        if apply_relu:
            y = jnp.maximum(y, 0.0)
        o_ref[...] = y.astype(o_ref.dtype)
    return kernel


# ------------------------------- glue (JAX) -------------------------------- #

def conv1x1_bn(x_nhwc, w_hwio, scale, bias, *, stride=1, relu=True,
               residual=None, out_dtype=jnp.bfloat16, block_m=512):
    """1x1 conv (bias=False) -> folded BN -> (+residual) -> (ReLU).

    x_nhwc: (N,H,W,Cin_p) bf16 with Cin_p a multiple of 128 (zero padded).
    Returns (N,Ho,Wo,Cout_p) in `out_dtype` with Cout_p a multiple of 128.
    """
    if stride > 1:
        x_nhwc = x_nhwc[:, ::stride, ::stride, :]
    N, H, W, Cin_p = x_nhwc.shape
    KH, KW, Cin, Cout = w_hwio.shape
    assert KH == 1 and KW == 1 and Cin <= Cin_p
    Cout_p = _round_up(Cout, LANES)

    w = jnp.pad(w_hwio.reshape(Cin, Cout),
                ((0, Cin_p - Cin), (0, Cout_p - Cout))).astype(jnp.bfloat16)
    scale_p = jnp.pad(scale.astype(jnp.float32),
                      (0, Cout_p - Cout)).reshape(1, Cout_p)
    bias_p = jnp.pad(bias.astype(jnp.float32),
                     (0, Cout_p - Cout)).reshape(1, Cout_p)

    M = N * H * W
    patches = x_nhwc.reshape(M, Cin_p).astype(jnp.bfloat16)   # no-op if bf16

    tm = _choose_tm(M, block_m)
    Mp = _round_up(M, tm)
    if Mp != M:
        patches = jnp.pad(patches, ((0, Mp - M), (0, 0)))

    operands = [patches, w, scale_p, bias_p]
    in_specs = [
        pl.BlockSpec((tm, Cin_p), lambda i: (i, 0)),      # pixels: M-tiled
        pl.BlockSpec((Cin_p, Cout_p), lambda i: (0, 0)),  # weights: invariant
        pl.BlockSpec((1, Cout_p), lambda i: (0, 0)),      # folded-BN scale
        pl.BlockSpec((1, Cout_p), lambda i: (0, 0)),      # folded-BN bias
    ]
    has_res = residual is not None
    res_bytes = 0
    if has_res:
        assert residual.shape[-1] == Cout_p
        res = residual.reshape(M, Cout_p).astype(jnp.bfloat16)
        if Mp != M:
            res = jnp.pad(res, ((0, Mp - M), (0, 0)))
        operands.append(res)
        in_specs.append(pl.BlockSpec((tm, Cout_p), lambda i: (i, 0)))
        res_bytes = Mp * Cout_p * 2

    out_bytes = Mp * Cout_p * jnp.dtype(out_dtype).itemsize
    cost = pl.CostEstimate(
        flops=2 * Mp * Cin_p * Cout_p,
        transcendentals=0,
        bytes_accessed=Mp * Cin_p * 2 + Cin_p * Cout_p * 2
                       + out_bytes + res_bytes)

    out = pl.pallas_call(
        _make_matmul_bn_kernel(relu, has_res),
        out_shape=jax.ShapeDtypeStruct((Mp, Cout_p), out_dtype),
        grid_spec=pltpu.PrefetchScalarGridSpec(
            num_scalar_prefetch=0,
            grid=(Mp // tm,),
            in_specs=in_specs,
            out_specs=pl.BlockSpec((tm, Cout_p), lambda i: (i, 0)),
        ),
        compiler_params=pltpu.CompilerParams(
            dimension_semantics=("parallel",),
            vmem_limit_bytes=_vmem_limit_bytes()),
        cost_estimate=cost,
    )(*operands)
    return out[:M].reshape(N, H, W, Cout_p)


def conv3x3_bn(x_nhwc, w_hwio, scale, bias, *, stride=1, padding=1, relu=True,
               out_dtype=jnp.bfloat16):
    """3x3 conv (bias=False) -> folded BN -> (ReLU), computed directly.

    No HBM im2col: each grid step DMAs one padded image into VMEM and forms
    the 9 taps in-kernel (9 accumulated MXU dots). Channel dims stay padded.
    """
    N, H, W, Cin_p = x_nhwc.shape
    KH, KW, Cin, Cout = w_hwio.shape
    assert Cin <= Cin_p
    Cout_p = _round_up(Cout, LANES)
    Ho = (H + 2 * padding - KH) // stride + 1
    Wo = (W + 2 * padding - KW) // stride + 1
    Hp, Wp = H + 2 * padding, W + 2 * padding

    xp = jnp.pad(x_nhwc.astype(jnp.bfloat16),
                 ((0, 0), (padding, padding), (padding, padding), (0, 0)))
    w = jnp.pad(w_hwio.reshape(KH * KW, Cin, Cout),
                ((0, 0), (0, Cin_p - Cin),
                 (0, Cout_p - Cout))).astype(jnp.bfloat16)
    scale_p = jnp.pad(scale.astype(jnp.float32),
                      (0, Cout_p - Cout)).reshape(1, Cout_p)
    bias_p = jnp.pad(bias.astype(jnp.float32),
                     (0, Cout_p - Cout)).reshape(1, Cout_p)

    out_bytes = N * Ho * Wo * Cout_p * jnp.dtype(out_dtype).itemsize
    cost = pl.CostEstimate(
        flops=2 * N * Ho * Wo * KH * KW * Cin_p * Cout_p,
        transcendentals=0,
        bytes_accessed=N * Hp * Wp * Cin_p * 2
                       + KH * KW * Cin_p * Cout_p * 2 + out_bytes)

    # TODO(synk): for large spatial sizes, tile output rows (halo windows)
    # instead of one-full-image-per-step to get more pipeline steps.
    out = pl.pallas_call(
        _make_conv3x3_kernel(KH, KW, stride, Ho, Wo, relu),
        out_shape=jax.ShapeDtypeStruct((N, Ho * Wo, Cout_p), out_dtype),
        grid_spec=pltpu.PrefetchScalarGridSpec(
            num_scalar_prefetch=0,
            grid=(N,),
            in_specs=[
                pl.BlockSpec((None, Hp, Wp, Cin_p), lambda n: (n, 0, 0, 0)),
                pl.BlockSpec((KH * KW, Cin_p, Cout_p), lambda n: (0, 0, 0)),
                pl.BlockSpec((1, Cout_p), lambda n: (0, 0)),
                pl.BlockSpec((1, Cout_p), lambda n: (0, 0)),
            ],
            out_specs=pl.BlockSpec((None, Ho * Wo, Cout_p), lambda n: (n, 0, 0)),
            scratch_shapes=[pltpu.VMEM((Ho * Wo, Cout_p), jnp.float32)],
        ),
        compiler_params=pltpu.CompilerParams(
            dimension_semantics=("parallel",),
            vmem_limit_bytes=_vmem_limit_bytes()),
        cost_estimate=cost,
    )(xp, w, scale_p, bias_p)
    return out.reshape(N, Ho, Wo, Cout_p)


# --------------------------- parameter construction ------------------------ #

def _fold_bn(gamma, beta, running_mean, running_var):
    scale = gamma / jnp.sqrt(running_var + BN_EPS)
    bias = beta - running_mean * scale
    return scale, bias


def _make_conv_bn_params(key, cin, cout, kh, kw):
    kw_, kg, kb, km, kv = jax.random.split(key, 5)
    w = 0.05 * jax.random.normal(kw_, (kh, kw, cin, cout), jnp.float32)   # HWIO
    gamma = 1.0 + 0.1 * jax.random.normal(kg, (cout,), jnp.float32)
    beta = 0.1 * jax.random.normal(kb, (cout,), jnp.float32)
    running_mean = 0.1 * jax.random.normal(km, (cout,), jnp.float32)
    running_var = 1.0 + 0.1 * jnp.abs(jax.random.normal(kv, (cout,), jnp.float32))
    scale, bias = _fold_bn(gamma, beta, running_mean, running_var)
    return (w, scale, bias)


def make_bottleneck_params(key, inplanes, planes, with_downsample=False,
                           stride=1):
    keys = jax.random.split(key, 4)
    params = {
        "conv1": _make_conv_bn_params(keys[0], inplanes, planes, 1, 1),
        "conv2": _make_conv_bn_params(keys[1], planes, planes, 3, 3),
        "conv3": _make_conv_bn_params(keys[2], planes, planes * EXPANSION, 1, 1),
    }
    if with_downsample:
        params["downsample"] = _make_conv_bn_params(
            keys[3], inplanes, planes * EXPANSION, 1, 1)
    return params


# ------------------------------- forward pass ------------------------------ #

@functools.partial(jax.jit, static_argnames=("stride",))
def bottleneck_forward(x_nchw, params, *, stride=1):
    # NCHW -> NHWC, cast to bf16 once, pad channels to a 128-lane multiple.
    x = jnp.transpose(x_nchw, (0, 2, 3, 1)).astype(jnp.bfloat16)
    cin = x.shape[-1]
    cin_p = _round_up(cin, LANES)
    if cin_p != cin:
        x = jnp.pad(x, ((0, 0), (0, 0), (0, 0), (0, cin_p - cin)))

    out = conv1x1_bn(x, *params["conv1"], relu=True)                   # bf16
    out = conv3x3_bn(out, *params["conv2"], stride=stride, relu=True)  # bf16

    if "downsample" in params:
        identity = conv1x1_bn(x, *params["downsample"], stride=stride,
                              relu=False)                               # bf16
    else:
        identity = x                                                    # bf16

    # conv3 + BN + residual add + final ReLU fused in one kernel epilogue.
    w3, s3, b3 = params["conv3"]
    cout = w3.shape[-1]
    out = conv1x1_bn(out, w3, s3, b3, relu=True, residual=identity,
                     out_dtype=jnp.float32)
    out = out[..., :cout]                                               # drop lane pad
    return jnp.transpose(out, (0, 3, 1, 2))                             # -> NCHW


# ------------------------------ JAX reference ------------------------------- #

def _ref_conv_bn(x, w, scale, bias, stride, padding, relu):
    y = lax.conv_general_dilated(
        x.astype(jnp.bfloat16), w.astype(jnp.bfloat16),
        window_strides=(stride, stride),
        padding=((padding, padding), (padding, padding)),
        dimension_numbers=("NHWC", "HWIO", "NHWC"),
        preferred_element_type=jnp.float32)
    y = y * scale + bias
    return jnp.maximum(y, 0.0) if relu else y


def _ref_forward(x_nchw, params, stride=1):
    x = jnp.transpose(x_nchw, (0, 2, 3, 1)).astype(jnp.float32)
    out = _ref_conv_bn(x, *params["conv1"], 1, 0, True)
    out = _ref_conv_bn(out, *params["conv2"], stride, 1, True)
    if "downsample" in params:
        identity = _ref_conv_bn(x, *params["downsample"], stride, 0, False)
    else:
        identity = x
    out = _ref_conv_bn(out, *params["conv3"], 1, 0, False) + identity
    out = jnp.maximum(out, 0.0)
    return jnp.transpose(out, (0, 3, 1, 2))


# ---------------------------------- main ------------------------------------ #

if __name__ == "__main__":
    key = jax.random.PRNGKey(0)
    k_x, k_p = jax.random.split(key)

    # downsample=None (module default) requires inplanes == planes*expansion.
    N, PLANES, STRIDE = 2, 8, 1
    INPLANES = PLANES * EXPANSION      # 32
    H = W = 16

    x = jax.random.normal(k_x, (N, INPLANES, H, W), jnp.float32)   # NCHW
    params = make_bottleneck_params(k_p, INPLANES, PLANES,
                                    with_downsample=False, stride=STRIDE)

    out = jax.block_until_ready(bottleneck_forward(x, params, stride=STRIDE))
    assert out.shape == (N, PLANES * EXPANSION, H, W), out.shape

    ref = jax.block_until_ready(_ref_forward(x, params, STRIDE))
    np.testing.assert_allclose(np.asarray(out), np.asarray(ref),
                               rtol=2e-2, atol=2e-2)

    print("KERNEL_OK")
</pallas_src>

<mosaic_0001>
module attributes {stable_mosaic.version = 11 : i64} {
  func.func @kernel(%arg0: i32, %arg1: memref<128x128xbf16, #tpu.memory_space<vmem>>, %arg2: memref<128x128xbf16, #tpu.memory_space<vmem>>, %arg3: memref<1x128xf32, #tpu.memory_space<vmem>>, %arg4: memref<1x128xf32, #tpu.memory_space<vmem>>, %arg5: memref<128x128xbf16, #tpu.memory_space<vmem>>) attributes {dimension_semantics = [#tpu.dimension_semantics<parallel>], iteration_bounds = array<i64: 4>, scalar_prefetch = 0 : i64, scratch_operands = 0 : i64, tpu.core_type = #tpu.core_type<tc>, window_params = [{transform_indices = @transform_0, window_bounds = array<i64: 128, 128>}, {pipeline_mode = #tpu.pipeline_mode<synchronous>, transform_indices = @transform_1, window_bounds = array<i64: 128, 128>}, {pipeline_mode = #tpu.pipeline_mode<synchronous>, transform_indices = @transform_2, window_bounds = array<i64: 1, 128>}, {pipeline_mode = #tpu.pipeline_mode<synchronous>, transform_indices = @transform_3, window_bounds = array<i64: 1, 128>}, {transform_indices = @transform_4, window_bounds = array<i64: 128, 128>}]} {
    %c0 = arith.constant 0 : index
    %c0_0 = arith.constant 0 : index
    %0 = vector.load %arg1[%c0, %c0_0] : memref<128x128xbf16, #tpu.memory_space<vmem>>, vector<128x128xbf16>
    %c0_1 = arith.constant 0 : index
    %c0_2 = arith.constant 0 : index
    %1 = vector.load %arg2[%c0_1, %c0_2] : memref<128x128xbf16, #tpu.memory_space<vmem>>, vector<128x128xbf16>
    %cst = arith.constant dense<0.000000e+00> : vector<128x128xf32>
    %2 = tpu.matmul %0, %1, %cst {dimension_numbers = #tpu.dot_dimension_numbers<[1], [0], [0], [1], [0, 0, 1, 1], [], []>} : vector<128x128xbf16>, vector<128x128xbf16>, vector<128x128xf32> -> vector<128x128xf32>
    %c0_3 = arith.constant 0 : index
    %c0_4 = arith.constant 0 : index
    %3 = vector.load %arg3[%c0_3, %c0_4] : memref<1x128xf32, #tpu.memory_space<vmem>>, vector<1x128xf32>
    %4 = vector.broadcast %3 : vector<1x128xf32> to vector<128x128xf32>
    %5 = arith.mulf %2, %4 : vector<128x128xf32>
    %c0_5 = arith.constant 0 : index
    %c0_6 = arith.constant 0 : index
    %6 = vector.load %arg4[%c0_5, %c0_6] : memref<1x128xf32, #tpu.memory_space<vmem>>, vector<1x128xf32>
    %7 = vector.broadcast %6 : vector<1x128xf32> to vector<128x128xf32>
    %8 = arith.addf %5, %7 : vector<128x128xf32>
    %cst_7 = arith.constant 0.000000e+00 : f32
    %9 = vector.broadcast %cst_7 : f32 to vector<128x128xf32>
    %10 = arith.maximumf %8, %9 : vector<128x128xf32>
    %11 = arith.truncf %10 : vector<128x128xf32> to vector<128x128xbf16>
    %c0_8 = arith.constant 0 : index
    %c0_9 = arith.constant 0 : index
    %12 = vector.load %arg5[%c0_8, %c0_9] : memref<128x128xbf16, #tpu.memory_space<vmem>>, vector<128x128xbf16>
    tpu.vector_store %arg5[%c0_8, %c0_9], %11 {strides = array<i32>} : memref<128x128xbf16, #tpu.memory_space<vmem>>, vector<128x128xbf16>,
    return
  }
  func.func @transform_0(%arg0: i32) -> (i32, i32) {
    %c0_i32 = arith.constant 0 : i32
    %c0_i32_0 = arith.constant 0 : i32
    return %arg0, %c0_i32 : i32, i32
  }
  func.func @transform_1(%arg0: i32) -> (i32, i32) {
    %c0_i32 = arith.constant 0 : i32
    %c0_i32_0 = arith.constant 0 : i32
    %c0_i32_1 = arith.constant 0 : i32
    return %c0_i32, %c0_i32_0 : i32, i32
  }
  func.func @transform_2(%arg0: i32) -> (i32, i32) {
    %c0_i32 = arith.constant 0 : i32
    %c0_i32_0 = arith.constant 0 : i32
    %c0_i32_1 = arith.constant 0 : i32
    return %c0_i32, %c0_i32_0 : i32, i32
  }
  func.func @transform_3(%arg0: i32) -> (i32, i32) {
    %c0_i32 = arith.constant 0 : i32
    %c0_i32_0 = arith.constant 0 : i32
    %c0_i32_1 = arith.constant 0 : i32
    return %c0_i32, %c0_i32_0 : i32, i32
  }
  func.func @transform_4(%arg0: i32) -> (i32, i32) {
    %c0_i32 = arith.constant 0 : i32
    %c0_i32_0 = arith.constant 0 : i32
    return %arg0, %c0_i32 : i32, i32
  }
}

module attributes {stable_mosaic.version = 11 : i64} {
  func.func @kernel(%arg0: i32, %arg1: memref<128x128xbf16, #tpu.memory_space<vmem>>, %arg2: memref<128x128xbf16, #tpu.memory_space<vmem>>, %arg3: memref<1x128xf32, #tpu.memory_space<vmem>>, %arg4: memref<1x128xf32, #tpu.memory_space<vmem>>, %arg5: memref<128x128xbf16, #tpu.memory_space<vmem>>, %arg6: memref<128x128xf32, #tpu.memory_space<vmem>>) attributes {dimension_semantics = [#tpu.dimension_semantics<parallel>], iteration_bounds = array<i64: 4>, scalar_prefetch = 0 : i64, scratch_operands = 0 : i64, tpu.core_type = #tpu.core_type<tc>, window_params = [{transform_indices = @transform_0, window_bounds = array<i64: 128, 128>}, {pipeline_mode = #tpu.pipeline_mode<synchronous>, transform_indices = @transform_1, window_bounds = array<i64: 128, 128>}, {pipeline_mode = #tpu.pipeline_mode<synchronous>, transform_indices = @transform_2, window_bounds = array<i64: 1, 128>}, {pipeline_mode = #tpu.pipeline_mode<synchronous>, transform_indices = @transform_3, window_bounds = array<i64: 1, 128>}, {transform_indices = @transform_4, window_bounds = array<i64: 128, 128>}, {transform_indices = @transform_5, window_bounds = array<i64: 128, 128>}]} {
    %c0 = arith.constant 0 : index
    %c0_0 = arith.constant 0 : index
    %0 = vector.load %arg1[%c0, %c0_0] : memref<128x128xbf16, #tpu.memory_space<vmem>>, vector<128x128xbf16>
    %c0_1 = arith.constant 0 : index
    %c0_2 = arith.constant 0 : index
    %1 = vector.load %arg2[%c0_1, %c0_2] : memref<128x128xbf16, #tpu.memory_space<vmem>>, vector<128x128xbf16>
    %cst = arith.constant dense<0.000000e+00> : vector<128x128xf32>
    %2 = tpu.matmul %0, %1, %cst {dimension_numbers = #tpu.dot_dimension_numbers<[1], [0], [0], [1], [0, 0, 1, 1], [], []>} : vector<128x128xbf16>, vector<128x128xbf16>, vector<128x128xf32> -> vector<128x128xf32>
    %c0_3 = arith.constant 0 : index
    %c0_4 = arith.constant 0 : index
    %3 = vector.load %arg3[%c0_3, %c0_4] : memref<1x128xf32, #tpu.memory_space<vmem>>, vector<1x128xf32>
    %4 = vector.broadcast %3 : vector<1x128xf32> to vector<128x128xf32>
    %5 = arith.mulf %2, %4 : vector<128x128xf32>
    %c0_5 = arith.constant 0 : index
    %c0_6 = arith.constant 0 : index
    %6 = vector.load %arg4[%c0_5, %c0_6] : memref<1x128xf32, #tpu.memory_space<vmem>>, vector<1x128xf32>
    %7 = vector.broadcast %6 : vector<1x128xf32> to vector<128x128xf32>
    %8 = arith.addf %5, %7 : vector<128x128xf32>
    %c0_7 = arith.constant 0 : index
    %c0_8 = arith.constant 0 : index
    %9 = vector.load %arg5[%c0_7, %c0_8] : memref<128x128xbf16, #tpu.memory_space<vmem>>, vector<128x128xbf16>
    %10 = arith.extf %9 : vector<128x128xbf16> to vector<128x128xf32>
    %11 = arith.addf %8, %10 : vector<128x128xf32>
    %cst_9 = arith.constant 0.000000e+00 : f32
    %12 = vector.broadcast %cst_9 : f32 to vector<128x128xf32>
    %13 = arith.maximumf %11, %12 : vector<128x128xf32>
    %c0_10 = arith.constant 0 : index
    %c0_11 = arith.constant 0 : index
    %14 = vector.load %arg6[%c0_10, %c0_11] : memref<128x128xf32, #tpu.memory_space<vmem>>, vector<128x128xf32>
    tpu.vector_store %arg6[%c0_10, %c0_11], %13 {strides = array<i32>} : memref<128x128xf32, #tpu.memory_space<vmem>>, vector<128x128xf32>,
    return
  }
  func.func @transform_0(%arg0: i32) -> (i32, i32) {
    %c0_i32 = arith.constant 0 : i32
    %c0_i32_0 = arith.constant 0 : i32
    return %arg0, %c0_i32 : i32, i32
  }
  func.func @transform_1(%arg0: i32) -> (i32, i32) {
    %c0_i32 = arith.constant 0 : i32
    %c0_i32_0 = arith.constant 0 : i32
    %c0_i32_1 = arith.constant 0 : i32
    return %c0_i32, %c0_i32_0 : i32, i32
  }
  func.func @transform_2(%arg0: i32) -> (i32, i32) {
    %c0_i32 = arith.constant 0 : i32
    %c0_i32_0 = arith.constant 0 : i32
    %c0_i32_1 = arith.constant 0 : i32
    return %c0_i32, %c0_i32_0 : i32, i32
  }
  func.func @transform_3(%arg0: i32) -> (i32, i32) {
    %c0_i32 = arith.constant 0 : i32
    %c0_i32_0 = arith.constant 0 : i32
    %c0_i32_1 = arith.constant 0 : i32
    return %c0_i32, %c0_i32_0 : i32, i32
  }
  func.func @transform_4(%arg0: i32) -> (i32, i32) {
    %c0_i32 = arith.constant 0 : i32
    %c0_i32_0 = arith.constant 0 : i32
    return %arg0, %c0_i32 : i32, i32
  }
  func.func @transform_5(%arg0: i32) -> (i32, i32) {
    %c0_i32 = arith.constant 0 : i32
    %c0_i32_0 = arith.constant 0 : i32
    return %arg0, %c0_i32 : i32, i32
  }
}

module attributes {stable_mosaic.version = 11 : i64} {
  func.func @kernel(%arg0: i32, %arg1: memref<1x18x18x128xbf16, #tpu.memory_space<vmem>>, %arg2: memref<9x128x128xbf16, #tpu.memory_space<vmem>>, %arg3: memref<1x128xf32, #tpu.memory_space<vmem>>, %arg4: memref<1x128xf32, #tpu.memory_space<vmem>>, %arg5: memref<1x256x128xbf16, #tpu.memory_space<vmem>>, %arg6: memref<256x128xf32, #tpu.memory_space<vmem>>) attributes {dimension_semantics = [#tpu.dimension_semantics<parallel>], iteration_bounds = array<i64: 2>, scalar_prefetch = 0 : i64, scratch_operands = 1 : i64, tpu.core_type = #tpu.core_type<tc>, window_params = [{transform_indices = @transform_0, window_bounds = array<i64: 1, 18, 18, 128>}, {pipeline_mode = #tpu.pipeline_mode<synchronous>, transform_indices = @transform_1, window_bounds = array<i64: 9, 128, 128>}, {pipeline_mode = #tpu.pipeline_mode<synchronous>, transform_indices = @transform_2, window_bounds = array<i64: 1, 128>}, {pipeline_mode = #tpu.pipeline_mode<synchronous>, transform_indices = @transform_3, window_bounds = array<i64: 1, 128>}, {transform_indices = @transform_4, window_bounds = array<i64: 1, 256, 128>}]} {
    %c0 = arith.constant 0 : index
    %c0_0 = arith.constant 0 : index
    %c0_1 = arith.constant 0 : index
    %c0_2 = arith.constant 0 : index
    %0 = vector.load %arg1[%c0, %c0_0, %c0_1, %c0_2] : memref<1x18x18x128xbf16, #tpu.memory_space<vmem>>, vector<1x18x18x128xbf16>
    %1 = vector.shape_cast %0 : vector<1x18x18x128xbf16> to vector<18x18x128xbf16>
    %2 = vector.extract_strided_slice %1 {offsets = [0, 0, 0], sizes = [18, 16, 128], strides = [1, 1, 1]} : vector<18x18x128xbf16> to vector<18x16x128xbf16>
    %3 = vector.shape_cast %2 : vector<18x16x128xbf16> to vector<288x128xbf16>
    %4 = vector.extract_strided_slice %3 {offsets = [0, 0], sizes = [256, 128], strides = [1, 1]} : vector<288x128xbf16> to vector<256x128xbf16>
    %c0_3 = arith.constant 0 : index
    %c0_4 = arith.constant 0 : index
    %c0_5 = arith.constant 0 : index
    %5 = vector.load %arg2[%c0_3, %c0_4, %c0_5] : memref<9x128x128xbf16, #tpu.memory_space<vmem>>, vector<1x128x128xbf16>
    %6 = vector.shape_cast %5 : vector<1x128x128xbf16> to vector<128x128xbf16>
    %cst = arith.constant dense<0.000000e+00> : vector<256x128xf32>
    %7 = tpu.matmul %4, %6, %cst {dimension_numbers = #tpu.dot_dimension_numbers<[1], [0], [0], [1], [0, 0, 1, 1], [], []>} : vector<256x128xbf16>, vector<128x128xbf16>, vector<256x128xf32> -> vector<256x128xf32>
    %c0_6 = arith.constant 0 : index
    %c0_7 = arith.constant 0 : index
    %8 = vector.load %arg6[%c0_6, %c0_7] : memref<256x128xf32, #tpu.memory_space<vmem>>, vector<256x128xf32>
    tpu.vector_store %arg6[%c0_6, %c0_7], %7 {strides = array<i32>} : memref<256x128xf32, #tpu.memory_space<vmem>>, vector<256x128xf32>,
    %9 = vector.extract_strided_slice %3 {offsets = [16, 0], sizes = [256, 128], strides = [1, 1]} : vector<288x128xbf16> to vector<256x128xbf16>
    %c3 = arith.constant 3 : index
    %c0_8 = arith.constant 0 : index
    %c0_9 = arith.constant 0 : index
    %10 = vector.load %arg2[%c3, %c0_8, %c0_9] : memref<9x128x128xbf16, #tpu.memory_space<vmem>>, vector<1x128x128xbf16>
    %11 = vector.shape_cast %10 : vector<1x128x128xbf16> to vector<128x128xbf16>
    %cst_10 = arith.constant dense<0.000000e+00> : vector<256x128xf32>
    %12 = tpu.matmul %9, %11, %cst_10 {dimension_numbers = #tpu.dot_dimension_numbers<[1], [0], [0], [1], [0, 0, 1, 1], [], []>} : vector<256x128xbf16>, vector<128x128xbf16>, vector<256x128xf32> -> vector<256x128xf32>
    %c0_11 = arith.constant 0 : index
    %c0_12 = arith.constant 0 : index
    %13 = vector.load %arg6[%c0_11, %c0_12] : memref<256x128xf32, #tpu.memory_space<vmem>>, vector<256x128xf32>
    %14 = arith.addf %13, %12 : vector<256x128xf32>
    %c0_13 = arith.constant 0 : index
    %c0_14 = arith.constant 0 : index
    %15 = vector.load %arg6[%c0_13, %c0_14] : memref<256x128xf32, #tpu.memory_space<vmem>>, vector<256x128xf32>
    tpu.vector_store %arg6[%c0_13, %c0_14], %14 {strides = array<i32>} : memref<256x128xf32, #tpu.memory_space<vmem>>, vector<256x128xf32>,
    %16 = vector.extract_strided_slice %3 {offsets = [32, 0], sizes = [256, 128], strides = [1, 1]} : vector<288x128xbf16> to vector<256x128xbf16>
    %c6 = arith.constant 6 : index
    %c0_15 = arith.constant 0 : index
    %c0_16 = arith.constant 0 : index
    %17 = vector.load %arg2[%c6, %c0_15, %c0_16] : memref<9x128x128xbf16, #tpu.memory_space<vmem>>, vector<1x128x128xbf16>
    %18 = vector.shape_cast %17 : vector<1x128x128xbf16> to vector<128x128xbf16>
    %cst_17 = arith.constant dense<0.000000e+00> : vector<256x128xf32>
    %19 = tpu.matmul %16, %18, %cst_17 {dimension_numbers = #tpu.dot_dimension_numbers<[1], [0], [0], [1], [0, 0, 1, 1], [], []>} : vector<256x128xbf16>, vector<128x128xbf16>, vector<256x128xf32> -> vector<256x128xf32>
    %c0_18 = arith.constant 0 : index
    %c0_19 = arith.constant 0 : index
    %20 = vector.load %arg6[%c0_18, %c0_19] : memref<256x128xf32, #tpu.memory_space<vmem>>, vector<256x128xf32>
    %21 = arith.addf %20, %19 : vector<256x128xf32>
    %c0_20 = arith.constant 0 : index
    %c0_21 = arith.constant 0 : index
    %22 = vector.load %arg6[%c0_20, %c0_21] : memref<256x128xf32, #tpu.memory_space<vmem>>, vector<256x128xf32>
    tpu.vector_store %arg6[%c0_20, %c0_21], %21 {strides = array<i32>} : memref<256x128xf32, #tpu.memory_space<vmem>>, vector<256x128xf32>,
    %23 = vector.extract_strided_slice %1 {offsets = [0, 1, 0], sizes = [18, 16, 128], strides = [1, 1, 1]} : vector<18x18x128xbf16> to vector<18x16x128xbf16>
    %24 = vector.shape_cast %23 : vector<18x16x128xbf16> to vector<288x128xbf16>
    %25 = vector.extract_strided_slice %24 {offsets = [0, 0], sizes = [256, 128], strides = [1, 1]} : vector<288x128xbf16> to vector<256x128xbf16>
    %c1 = arith.constant 1 : index
    %c0_22 = arith.constant 0 : index
    %c0_23 = arith.constant 0 : index
    %26 = vector.load %arg2[%c1, %c0_22, %c0_23] : memref<9x128x128xbf16, #tpu.memory_space<vmem>>, vector<1x128x128xbf16>
    %27 = vector.shape_cast %26 : vector<1x128x128xbf16> to vector<128x128xbf16>
    %cst_24 = arith.constant dense<0.000000e+00> : vector<256x128xf32>
    %28 = tpu.matmul %25, %27, %cst_24 {dimension_numbers = #tpu.dot_dimension_numbers<[1], [0], [0], [1], [0, 0, 1, 1], [], []>} : vector<256x128xbf16>, vector<128x128xbf16>, vector<256x128xf32> -> vector<256x128xf32>
    %c0_25 = arith.constant 0 : index
    %c0_26 = arith.constant 0 : index
    %29 = vector.load %arg6[%c0_25, %c0_26] : memref<256x128xf32, #tpu.memory_space<vmem>>, vector<256x128xf32>
    %30 = arith.addf %29, %28 : vector<256x128xf32>
    %c0_27 = arith.constant 0 : index
    %c0_28 = arith.constant 0 : index
    %31 = vector.load %arg6[%c0_27, %c0_28] : memref<256x128xf32, #tpu.memory_space<vmem>>, vector<256x128xf32>
    tpu.vector_store %arg6[%c0_27, %c0_28], %30 {strides = array<i32>} : memref<256x128xf32, #tpu.memory_space<vmem>>, vector<256x128xf32>,
    %32 = vector.extract_strided_slice %24 {offsets = [16, 0], sizes = [256, 128], strides = [1, 1]} : vector<288x128xbf16> to vector<256x128xbf16>
    %c4 = arith.constant 4 : index
    %c0_29 = arith.constant 0 : index
    %c0_30 = arith.constant 0 : index
    %33 = vector.load %arg2[%c4, %c0_29, %c0_30] : memref<9x128x128xbf16, #tpu.memory_space<vmem>>, vector<1x128x128xbf16>
    %34 = vector.shape_cast %33 : vector<1x128x128xbf16> to vector<128x128xbf16>
    %cst_31 = arith.constant dense<0.000000e+00> : vector<256x128xf32>
    %35 = tpu.matmul %32, %34, %cst_31 {dimension_numbers = #tpu.dot_dimension_numbers<[1], [0], [0], [1], [0, 0, 1, 1], [], []>} : vector<256x128xbf16>, vector<128x128xbf16>, vector<256x128xf32> -> vector<256x128xf32>
    %c0_32 = arith.constant 0 : index
    %c0_33 = arith.constant 0 : index
    %36 = vector.load %arg6[%c0_32, %c0_33] : memref<256x128xf32, #tpu.memory_space<vmem>>, vector<256x128xf32>
    %37 = arith.addf %36, %35 : vector<256x128xf32>
    %c0_34 = arith.constant 0 : index
    %c0_35 = arith.constant 0 : index
    %38 = vector.load %arg6[%c0_34, %c0_35] : memref<256x128xf32, #tpu.memory_space<vmem>>, vector<256x128xf32>
    tpu.vector_store %arg6[%c0_34, %c0_35], %37 {strides = array<i32>} : memref<256x128xf32, #tpu.memory_space<vmem>>, vector<256x128xf32>,
    %39 = vector.extract_strided_slice %24 {offsets = [32, 0], sizes = [256, 128], strides = [1, 1]} : vector<288x128xbf16> to vector<256x128xbf16>
    %c7 = arith.constant 7 : index
    %c0_36 = arith.constant 0 : index
    %c0_37 = arith.constant 0 : index
    %40 = vector.load %arg2[%c7, %c0_36, %c0_37] : memref<9x128x128xbf16, #tpu.memory_space<vmem>>, vector<1x128x128xbf16>
    %41 = vector.shape_cast %40 : vector<1x128x128xbf16> to vector<128x128xbf16>
    %cst_38 = arith.constant dense<0.000000e+00> : vector<256x128xf32>
    %42 = tpu.matmul %39, %41, %cst_38 {dimension_numbers = #tpu.dot_dimension_numbers<[1], [0], [0], [1], [0, 0, 1, 1], [], []>} : vector<256x128xbf16>, vector<128x128xbf16>, vector<256x128xf32> -> vector<256x128xf32>
    %c0_39 = arith.constant 0 : index
    %c0_40 = arith.constant 0 : index
    %43 = vector.load %arg6[%c0_39, %c0_40] : memref<256x128xf32, #tpu.memory_space<vmem>>, vector<256x128xf32>
    %44 = arith.addf %43, %42 : vector<256x128xf32>
    %c0_41 = arith.constant 0 : index
    %c0_42 = arith.constant 0 : index
    %45 = vector.load %arg6[%c0_41, %c0_42] : memref<256x128xf32, #tpu.memory_space<vmem>>, vector<256x128xf32>
    tpu.vector_store %arg6[%c0_41, %c0_42], %44 {strides = array<i32>} : memref<256x128xf32, #tpu.memory_space<vmem>>, vector<256x128xf32>,
    %46 = vector.extract_strided_slice %1 {offsets = [0, 2, 0], sizes = [18, 16, 128], strides = [1, 1, 1]} : vector<18x18x128xbf16> to vector<18x16x128xbf16>
    %47 = vector.shape_cast %46 : vector<18x16x128xbf16> to vector<288x128xbf16>
    %48 = vector.extract_strided_slice %47 {offsets = [0, 0], sizes = [256, 128], strides = [1, 1]} : vector<288x128xbf16> to vector<256x128xbf16>
    %c2 = arith.constant 2 : index
    %c0_43 = arith.constant 0 : index
    %c0_44 = arith.constant 0 : index
    %49 = vector.load %arg2[%c2, %c0_43, %c0_44] : memref<9x128x128xbf16, #tpu.memory_space<vmem>>, vector<1x128x128xbf16>
    %50 = vector.shape_cast %49 : vector<1x128x128xbf16> to vector<128x128xbf16>
    %cst_45 = arith.constant dense<0.000000e+00> : vector<256x128xf32>
    %51 = tpu.matmul %48, %50, %cst_45 {dimension_numbers = #tpu.dot_dimension_numbers<[1], [0], [0], [1], [0, 0, 1, 1], [], []>} : vector<256x128xbf16>, vector<128x128xbf16>, vector<256x128xf32> -> vector<256x128xf32>
    %c0_46 = arith.constant 0 : index
    %c0_47 = arith.constant 0 : index
    %52 = vector.load %arg6[%c0_46, %c0_47] : memref<256x128xf32, #tpu.memory_space<vmem>>, vector<256x128xf32>
    %53 = arith.addf %52, %51 : vector<256x128xf32>
    %c0_48 = arith.constant 0 : index
    %c0_49 = arith.constant 0 : index
    %54 = vector.load %arg6[%c0_48, %c0_49] : memref<256x128xf32, #tpu.memory_space<vmem>>, vector<256x128xf32>
    tpu.vector_store %arg6[%c0_48, %c0_49], %53 {strides = array<i32>} : memref<256x128xf32, #tpu.memory_space<vmem>>, vector<256x128xf32>,
    %55 = vector.extract_strided_slice %47 {offsets = [16, 0], sizes = [256, 128], strides = [1, 1]} : vector<288x128xbf16> to vector<256x128xbf16>
    %c5 = arith.constant 5 : index
    %c0_50 = arith.constant 0 : index
    %c0_51 = arith.constant 0 : index
    %56 = vector.load %arg2[%c5, %c0_50, %c0_51] : memref<9x128x128xbf16, #tpu.memory_space<vmem>>, vector<1x128x128xbf16>
    %57 = vector.shape_cast %56 : vector<1x128x128xbf16> to vector<128x128xbf16>
    %cst_52 = arith.constant dense<0.000000e+00> : vector<256x128xf32>
    %58 = tpu.matmul %55, %57, %cst_52 {dimension_numbers = #tpu.dot_dimension_numbers<[1], [0], [0], [1], [0, 0, 1, 1], [], []>} : vector<256x128xbf16>, vector<128x128xbf16>, vector<256x128xf32> -> vector<256x128xf32>
    %c0_53 = arith.constant 0 : index
    %c0_54 = arith.constant 0 : index
    %59 = vector.load %arg6[%c0_53, %c0_54] : memref<256x128xf32, #tpu.memory_space<vmem>>, vector<256x128xf32>
    %60 = arith.addf %59, %58 : vector<256x128xf32>
    %c0_55 = arith.constant 0 : index
    %c0_56 = arith.constant 0 : index
    %61 = vector.load %arg6[%c0_55, %c0_56] : memref<256x128xf32, #tpu.memory_space<vmem>>, vector<256x128xf32>
    tpu.vector_store %arg6[%c0_55, %c0_56], %60 {strides = array<i32>} : memref<256x128xf32, #tpu.memory_space<vmem>>, vector<256x128xf32>,
    %62 = vector.extract_strided_slice %47 {offsets = [32, 0], sizes = [256, 128], strides = [1, 1]} : vector<288x128xbf16> to vector<256x128xbf16>
    %c8 = arith.constant 8 : index
    %c0_57 = arith.constant 0 : index
    %c0_58 = arith.constant 0 : index
    %63 = vector.load %arg2[%c8, %c0_57, %c0_58] : memref<9x128x128xbf16, #tpu.memory_space<vmem>>, vector<1x128x128xbf16>
    %64 = vector.shape_cast %63 : vector<1x128x128xbf16> to vector<128x128xbf16>
    %cst_59 = arith.constant dense<0.000000e+00> : vector<256x128xf32>
    %65 = tpu.matmul %62, %64, %cst_59 {dimension_numbers = #tpu.dot_dimension_numbers<[1], [0], [0], [1], [0, 0, 1, 1], [], []>} : vector<256x128xbf16>, vector<128x128xbf16>, vector<256x128xf32> -> vector<256x128xf32>
    %c0_60 = arith.constant 0 : index
    %c0_61 = arith.constant 0 : index
    %66 = vector.load %arg6[%c0_60, %c0_61] : memref<256x128xf32, #tpu.memory_space<vmem>>, vector<256x128xf32>
    %67 = arith.addf %66, %65 : vector<256x128xf32>
    %c0_62 = arith.constant 0 : index
    %c0_63 = arith.constant 0 : index
    %68 = vector.load %arg6[%c0_62, %c0_63] : memref<256x128xf32, #tpu.memory_space<vmem>>, vector<256x128xf32>
    tpu.vector_store %arg6[%c0_62, %c0_63], %67 {strides = array<i32>} : memref<256x128xf32, #tpu.memory_space<vmem>>, vector<256x128xf32>,
    %c0_64 = arith.constant 0 : index
    %c0_65 = arith.constant 0 : index
    %69 = vector.load %arg6[%c0_64, %c0_65] : memref<256x128xf32, #tpu.memory_space<vmem>>, vector<256x128xf32>
    %c0_66 = arith.constant 0 : index
    %c0_67 = arith.constant 0 : index
    %70 = vector.load %arg3[%c0_66, %c0_67] : memref<1x128xf32, #tpu.memory_space<vmem>>, vector<1x128xf32>
    %71 = vector.broadcast %70 : vector<1x128xf32> to vector<256x128xf32>
    %72 = arith.mulf %69, %71 : vector<256x128xf32>
    %c0_68 = arith.constant 0 : index
    %c0_69 = arith.constant 0 : index
    %73 = vector.load %arg4[%c0_68, %c0_69] : memref<1x128xf32, #tpu.memory_space<vmem>>, vector<1x128xf32>
    %74 = vector.broadcast %73 : vector<1x128xf32> to vector<256x128xf32>
    %75 = arith.addf %72, %74 : vector<256x128xf32>
    %cst_70 = arith.constant 0.000000e+00 : f32
    %76 = vector.broadcast %cst_70 : f32 to vector<256x128xf32>
    %77 = arith.maximumf %75, %76 : vector<256x128xf32>
    %78 = arith.truncf %77 : vector<256x128xf32> to vector<256x128xbf16>
    %c0_71 = arith.constant 0 : index
    %c0_72 = arith.constant 0 : index
    %c0_73 = arith.constant 0 : index
    %79 = vector.load %arg5[%c0_71, %c0_72, %c0_73] : memref<1x256x128xbf16, #tpu.memory_space<vmem>>, vector<1x256x128xbf16>
    %80 = vector.shape_cast %79 : vector<1x256x128xbf16> to vector<256x128xbf16>
    %81 = vector.shape_cast %78 : vector<256x128xbf16> to vector<1x256x128xbf16>
    tpu.vector_store %arg5[%c0_71, %c0_72, %c0_73], %81 {strides = array<i32>} : memref<1x256x128xbf16, #tpu.memory_space<vmem>>, vector<1x256x128xbf16>,
    return
  }
  func.func @transform_0(%arg0: i32) -> (i32, i32, i32, i32) {
    %c0_i32 = arith.constant 0 : i32
    %c0_i32_0 = arith.constant 0 : i32
    %c0_i32_1 = arith.constant 0 : i32
    %c0_i32_2 = arith.constant 0 : i32
    return %arg0, %c0_i32, %c0_i32_0, %c0_i32_1 : i32, i32, i32, i32
  }
  func.func @transform_1(%arg0: i32) -> (i32, i32, i32) {
    %c0_i32 = arith.constant 0 : i32
    %c0_i32_0 = arith.constant 0 : i32
    %c0_i32_1 = arith.constant 0 : i32
    %c0_i32_2 = arith.constant 0 : i32
    return %c0_i32, %c0_i32_0, %c0_i32_1 : i32, i32, i32
  }
  func.func @transform_2(%arg0: i32) -> (i32, i32) {
    %c0_i32 = arith.constant 0 : i32
    %c0_i32_0 = arith.constant 0 : i32
    %c0_i32_1 = arith.constant 0 : i32
    return %c0_i32, %c0_i32_0 : i32, i32
  }
  func.func @transform_3(%arg0: i32) -> (i32, i32) {
    %c0_i32 = arith.constant 0 : i32
    %c0_i32_0 = arith.constant 0 : i32
    %c0_i32_1 = arith.constant 0 : i32
    return %c0_i32, %c0_i32_0 : i32, i32
  }
  func.func @transform_4(%arg0: i32) -> (i32, i32, i32) {
    %c0_i32 = arith.constant 0 : i32
    %c0_i32_0 = arith.constant 0 : i32
    %c0_i32_1 = arith.constant 0 : i32
    return %arg0, %c0_i32, %c0_i32_0 : i32, i32, i32
  }
}

</mosaic_0001>

<llo_original>
// kernel: bottleneck_forward.5
$region0: #{bottleneck_forward.5}
  #allocation0 [shape = 'u32[]', space=smem, size = 0x4, offset = 0x4, fixed_abs, tag = 'smem constant byte address 0x4 - core index']
  #allocation1 [shape = 'u32[144,128]{1,0:T(1,128)}', space=vmem, size = 0x12000, scoped, tag = 'internal scratch']
  %s0 = inlined_call_operand.vmem [shape: bf16[512,128], index: 0, kind: input, shape index: {}]
  %s1 = inlined_call_operand.vmem [shape: bf16[128,128], index: 1, kind: input, shape index: {}]
  %s2 = inlined_call_operand.vmem [shape: f32[1,128], index: 2, kind: input, shape index: {}]
  %s3 = inlined_call_operand.vmem [shape: f32[1,128], index: 3, kind: input, shape index: {}]
  %s4 = inlined_call_operand.vmem [shape: bf16[512,128], index: 4, kind: input, shape index: {}]
  %s5 = inlined_call_operand.vmem [shape: f32[512,128], index: 5, kind: output, shape index: {}]
  %s6 = sld [smem:[#allocation0]]
  $region53: #{bottleneck_forward.5} parent=0
    _
  %s8 = ssub.s32 1, %s6
  %s9 = scalar_select 0, %s8, %s6
  loop: start=0, step=1, limit=6
  $region2: #{bottleneck_forward.5} parent=0 // loop_pre_header
    _
  $region3: #{bottleneck_forward.5} parent=0 // loop_header
    %s11 = sphi 0, %s15
    %p12 = scmp.ge.s32.totalorder %s11, 6
    %s21 = sphi 0, %s23
    %s24 = sphi 0, %s21
    %s25 = sphi 0, %s24
    %s41 = sphi 0, %s25
    %s45 = sphi 0, %s45
    %s47 = sphi 0, %s45
    %s48 = sphi 0, %s47
    %s62 = sphi 0, %s48
    %s66 = sphi 0, %s66
    %s68 = sphi 0, %s66
    %s69 = sphi 0, %s68
    %s83 = sphi 0, %s69
    %s87 = sphi 0, %s87
    %s89 = sphi 0, %s87
    %s90 = sphi 0, %s89
    %s104 = sphi 0, %s90
    %s110 = sphi 0, %s112
    %s113 = sphi 0, %s110
    %s114 = sphi 0, %s113
    %s130 = sphi 0, %s114
    %s136 = sphi 0, %s138
    %s139 = sphi 0, %s136
    %s140 = sphi 0, %s139
    %s156 = sphi 0, %s140
  $region4: #{bottleneck_forward.5} parent=0 // loop_header_branch
    %14 = sbr.rel (%p12) target = $region8
  $region5: #{bottleneck_forward.5} parent=0 // loop_body
    %s16 = ssub.s32 %s11, 1
    %s17 = ssub.s32 %s11, 2
    %s18 = sadd.s32 %s11, 1
    %s19 = ssub.s32 %s11, %s18
    %p20 = scmp.eq.s32.totalorder %s19, 0
    %s22 = sadd.s32 %s21, 1
    %s23 = scalar_select %p20, %s21, %s22
    %p26 = pneg %p20
    %p27 = scmp.eq.s32.totalorder %s11, 3
    %p28 = por %p26, %p27
    %p29 = scmp.ne.s32.totalorder %s21, %s24
    %p30 = scmp.eq.s32.totalorder %s11, 0
    %p31 = por %p29, %p30
    %p32 = scmp.ne.s32.totalorder %s21, %s24
    %p33 = scmp.eq.s32.totalorder %s16, 3
    %p34 = por %p32, %p33
    %p35 = scmp.ne.s32.totalorder %s24, %s25
    %p36 = scmp.eq.s32.totalorder %s16, 0
    %p37 = por %p35, %p36
    %p38 = scmp.ne.s32.totalorder %s24, %s25
    %p39 = scmp.eq.s32.totalorder %s17, 3
    %p40 = por %p38, %p39
    %p42 = scmp.ne.s32.totalorder %s25, %s41
    %p43 = scmp.eq.s32.totalorder %s17, 0
    %p44 = por %p42, %p43
    %s46 = sadd.s32 %s45, 1
    %p49 = scmp.eq.s32.totalorder %s11, 3
    %p50 = scmp.ne.s32.totalorder %s45, %s47
    %p51 = scmp.eq.s32.totalorder %s11, 0
    %p52 = por %p50, %p51
    %p53 = scmp.ne.s32.totalorder %s45, %s47
    %p54 = scmp.eq.s32.totalorder %s16, 3
    %p55 = por %p53, %p54
    %p56 = scmp.ne.s32.totalorder %s47, %s48
    %p57 = scmp.eq.s32.totalorder %s16, 0
    %p58 = por %p56, %p57
    %p59 = scmp.ne.s32.totalorder %s47, %s48
    %p60 = scmp.eq.s32.totalorder %s17, 3
    %p61 = por %p59, %p60
    %p63 = scmp.ne.s32.totalorder %s48, %s62
    %p64 = scmp.eq.s32.totalorder %s17, 0
    %p65 = por %p63, %p64
    %s67 = sadd.s32 %s66, 1
    %p70 = scmp.eq.s32.totalorder %s11, 3
    %p71 = scmp.ne.s32.totalorder %s66, %s68
    %p72 = scmp.eq.s32.totalorder %s11, 0
    %p73 = por %p71, %p72
    %p74 = scmp.ne.s32.totalorder %s66, %s68
    %p75 = scmp.eq.s32.totalorder %s16, 3
    %p76 = por %p74, %p75
    %p77 = scmp.ne.s32.totalorder %s68, %s69
    %p78 = scmp.eq.s32.totalorder %s16, 0
    %p79 = por %p77, %p78
    %p80 = scmp.ne.s32.totalorder %s68, %s69
    %p81 = scmp.eq.s32.totalorder %s17, 3
    %p82 = por %p80, %p81
    %p84 = scmp.ne.s32.totalorder %s69, %s83
    %p85 = scmp.eq.s32.totalorder %s17, 0
    %p86 = por %p84, %p85
    %s88 = sadd.s32 %s87, 1
    %p91 = scmp.eq.s32.totalorder %s11, 3
    %p92 = scmp.ne.s32.totalorder %s87, %s89
    %p93 = scmp.eq.s32.totalorder %s11, 0
    %p94 = por %p92, %p93
    %p95 = scmp.ne.s32.totalorder %s87, %s89
    %p96 = scmp.eq.s32.totalorder %s16, 3
    %p97 = por %p95, %p96
    %p98 = scmp.ne.s32.totalorder %s89, %s90
    %p99 = scmp.eq.s32.totalorder %s16, 0
    %p100 = por %p98, %p99
    %p101 = scmp.ne.s32.totalorder %s89, %s90
    %p102 = scmp.eq.s32.totalorder %s17, 3
    %p103 = por %p101, %p102
    %p105 = scmp.ne.s32.totalorder %s90, %s104
    %p106 = scmp.eq.s32.totalorder %s17, 0
    %p107 = por %p105, %p106
    %s108 = ssub.s32 %s11, %s18
    %p109 = scmp.eq.s32.totalorder %s108, 0
    %s111 = sadd.s32 %s110, 1
    %s112 = scalar_select %p109, %s110, %s111
    %p115 = pneg %p109
    %p116 = scmp.eq.s32.totalorder %s11, 3
    %p117 = por %p115, %p116
    %p118 = scmp.ne.s32.totalorder %s110, %s113
    %p119 = scmp.eq.s32.totalorder %s11, 0
    %p120 = por %p118, %p119
    %p121 = scmp.ne.s32.totalorder %s110, %s113
    %p122 = scmp.eq.s32.totalorder %s16, 3
    %p123 = por %p121, %p122
    %p124 = scmp.ne.s32.totalorder %s113, %s114
    %p125 = scmp.eq.s32.totalorder %s16, 0
    %p126 = por %p124, %p125
    %p127 = scmp.ne.s32.totalorder %s113, %s114
    %p128 = scmp.eq.s32.totalorder %s17, 3
    %p129 = por %p127, %p128
    %p131 = scmp.ne.s32.totalorder %s114, %s130
    %p132 = scmp.eq.s32.totalorder %s17, 0
    %p133 = por %p131, %p132
    %s134 = ssub.s32 %s11, %s18
    %p135 = scmp.eq.s32.totalorder %s134, 0
    %s137 = sadd.s32 %s136, 1
    %s138 = scalar_select %p135, %s136, %s137
    %p141 = pneg %p135
    %p142 = scmp.eq.s32.totalorder %s11, 3
    %p143 = por %p141, %p142
    %p144 = scmp.ne.s32.totalorder %s136, %s139
    %p145 = scmp.eq.s32.totalorder %s11, 0
    %p146 = por %p144, %p145
    %p147 = scmp.ne.s32.totalorder %s136, %s139
    %p148 = scmp.eq.s32.totalorder %s16, 3
    %p149 = por %p147, %p148
    %p150 = scmp.ne.s32.totalorder %s139, %s140
    %p151 = scmp.eq.s32.totalorder %s16, 0
    %p152 = por %p150, %p151
    %p153 = scmp.ne.s32.totalorder %s139, %s140
    %p154 = scmp.eq.s32.totalorder %s17, 3
    %p155 = por %p153, %p154
    %p157 = scmp.ne.s32.totalorder %s140, %s156
    %p158 = scmp.eq.s32.totalorder %s17, 0
    %p159 = por %p157, %p158
    %p160 = scmp.le.s32.totalorder 1, %s11
    %p161 = scmp.lt.s32.totalorder %s11, 5
    %p162 = pnand %p160, %p161
    %p163 = pneg %p162
    // Predicated region
    $region9: #{bottleneck_forward.5} parent=5 // pred_check
      _
    $region10: #{bottleneck_forward.5} parent=5 // pred_check_branch
      %165 = sbr.rel (%p162) target = $region12
    $region11: #{bottleneck_forward.5} parent=5 // pred_region
      %s166 = ssub.s32 %s11, 1
      // Predicated region
      $region13: #{bottleneck_forward.5} parent=11 // pred_check
        %p167 = pneg %p58
      $region14: #{bottleneck_forward.5} parent=11 // pred_check_branch
        %169 = sbr.rel (%p167) target = $region16
      $region15: #{bottleneck_forward.5} parent=11 // pred_region
        _
      $region16: #{bottleneck_forward.5} parent=11 // pred_fallthru
        _
      // Predicated region
      $region17: #{bottleneck_forward.5} parent=11 // pred_check
        %p170 = pneg %p79
      $region18: #{bottleneck_forward.5} parent=11 // pred_check_branch
        %172 = sbr.rel (%p170) target = $region20
      $region19: #{bottleneck_forward.5} parent=11 // pred_region
        _
      $region20: #{bottleneck_forward.5} parent=11 // pred_fallthru
        _
      // Predicated region
      $region21: #{bottleneck_forward.5} parent=11 // pred_check
        %p173 = pneg %p100
      $region22: #{bottleneck_forward.5} parent=11 // pred_check_branch
        %175 = sbr.rel (%p173) target = $region24
      $region23: #{bottleneck_forward.5} parent=11 // pred_region
        _
      $region24: #{bottleneck_forward.5} parent=11 // pred_fallthru
        _
    $region12: #{bottleneck_forward.5} parent=5 // pred_fallthru
      _
    %p176 = scmp.lt.s32.totalorder %s11, 4
    // Predicated region
    $region25: #{bottleneck_forward.5} parent=5 // pred_check
      %p177 = pneg %p176
    $region26: #{bottleneck_forward.5} parent=5 // pred_check_branch
      %179 = sbr.rel (%p177) target = $region28
    $region27: #{bottleneck_forward.5} parent=5 // pred_region
      // Predicated region
      $region29: #{bottleneck_forward.5} parent=27 // pred_check
        %p180 = pneg %p31
      $region30: #{bottleneck_forward.5} parent=27 // pred_check_branch
        %182 = sbr.rel (%p180) target = $region32
      $region31: #{bottleneck_forward.5} parent=27 // pred_region
        %s183 = smul.u32 16, %s11
        %p184 = scmp.lt.s32.totalorder %s183, 63
        %s185 = scalar_select %p184, %s183, 63
        %s186 = smul.addr %s185, 4
        %s187 = scalar_lea.vmem %s0, %s186
        %s188 = smul.u32 16, %s11
      $region32: #{bottleneck_forward.5} parent=27 // pred_fallthru
        _
      // Predicated region
      $region33: #{bottleneck_forward.5} parent=27 // pred_check
        %p189 = pneg %p120
      $region34: #{bottleneck_forward.5} parent=27 // pred_check_branch
        %191 = sbr.rel (%p189) target = $region36
      $region35: #{bottleneck_forward.5} parent=27 // pred_region
        %s192 = smul.u32 16, %s11
        %p193 = scmp.lt.s32.totalorder %s192, 63
        %s194 = scalar_select %p193, %s192, 63
        %s195 = smul.addr %s194, 4
        %s196 = scalar_lea.vmem %s4, %s195
        %s197 = smul.u32 16, %s11
      $region36: #{bottleneck_forward.5} parent=27 // pred_fallthru
        _
    $region28: #{bottleneck_forward.5} parent=5 // pred_fallthru
      _
    %p198 = scmp.le.s32.totalorder 1, %s11
    %p199 = scmp.lt.s32.totalorder %s11, 5
    %p200 = pnand %p198, %p199
    %p201 = pneg %p200
    // Predicated region
    $region37: #{bottleneck_forward.5} parent=5 // pred_check
      _
    $region38: #{bottleneck_forward.5} parent=5 // pred_check_branch
      %203 = sbr.rel (%p200) target = $region40
    $region39: #{bottleneck_forward.5} parent=5 // pred_region
      %s204 = ssub.s32 %s11, 1
      %s205 = smul.u32 16, %s16
      %p206 = scmp.lt.s32.totalorder %s205, 63
      %s207 = scalar_select %p206, %s205, 63
      %s208 = smul.addr %s207, 4
      %s209 = scalar_lea.vmem %s0, %s208
      %p210 = pneg %p37
      %p211 = pneg %p34
      %p212 = pneg %p58
      %p213 = pneg %p55
      %p214 = pneg %p79
      %p215 = pneg %p76
      %p216 = pneg %p100
      %p217 = pneg %p97
      %s218 = smul.u32 16, %s16
      %p219 = scmp.lt.s32.totalorder %s218, 63
      %s220 = scalar_select %p219, %s218, 63
      %s221 = smul.addr %s220, 4
      %s222 = scalar_lea.vmem %s4, %s221
      %p223 = pneg %p126
      %p224 = pneg %p123
      %p225 = pneg %p152
      %p226 = pneg %p149
      %s227 = smul.u32 16, %s16
      %p228 = scmp.lt.s32.totalorder %s227, 63
      %s229 = scalar_select %p228, %s227, 63
      %s230 = smul.addr %s229, 8
      %s231 = scalar_lea.vmem %s5, %s230
      %s232 = smul.u32 16, %s16
      %p233 = scmp.lt.s32.totalorder %s232, 63
      %s234 = scalar_select %p233, %s232, 63
      %s235 = smul.addr %s234, 4
      %s236 = scalar_lea.vmem %s0, %s235
      %s237 = smul.u32 16, %s16
      %s238 = smul.u32 16, %s16
      %p239 = scmp.lt.s32.totalorder %s238, 63
      %s240 = scalar_select %p239, %s238, 63
      %s241 = smul.addr %s240, 4
      %s242 = scalar_lea.vmem %s4, %s241
      %s243 = smul.u32 16, %s16
      %s244 = smul.u32 16, %s16
      %p245 = scmp.lt.s32.totalorder %s244, 63
      %s246 = scalar_select %p245, %s244, 63
      %s247 = smul.addr %s246, 8
      %s248 = scalar_lea.vmem %s5, %s247
      %s249 = smul.u32 16, %s16
      %v251 = vld [vmem:[%s236] sm:$0xf]
      %v252 = vld [vmem:[%s236 + $0x4] sm:$0xf]
      %v253 = vld [vmem:[%s236 + $0x8] sm:$0xf]
      %v254 = vld [vmem:[%s236 + $0xc] sm:$0xf]
      %v255 = vld [vmem:[%s236 + $0x10] sm:$0xf]
      %v256 = vld [vmem:[%s236 + $0x14] sm:$0xf]
      %v257 = vld [vmem:[%s236 + $0x18] sm:$0xf]
      %v258 = vld [vmem:[%s236 + $0x1c] sm:$0xf]
      %v259 = vld [vmem:[%s236 + $0x20] sm:$0xf]
      %v260 = vld [vmem:[%s236 + $0x24] sm:$0xf]
      %v261 = vld [vmem:[%s236 + $0x28] sm:$0xf]
      %v262 = vld [vmem:[%s236 + $0x2c] sm:$0xf]
      %v263 = vld [vmem:[%s236 + $0x30] sm:$0xf]
      %v264 = vld [vmem:[%s236 + $0x34] sm:$0xf]
      %v265 = vld [vmem:[%s236 + $0x38] sm:$0xf]
      %v266 = vld [vmem:[%s236 + $0x3c] sm:$0xf]
      %v267 = vld [vmem:[%s1] sm:$0xf]
      %v268 = vld [vmem:[%s1 + $0x4] sm:$0xf]
      %v269 = vld [vmem:[%s1 + $0x8] sm:$0xf]
      %v270 = vld [vmem:[%s1 + $0xc] sm:$0xf]
      %v271 = vld [vmem:[%s1 + $0x10] sm:$0xf]
      %v272 = vld [vmem:[%s1 + $0x14] sm:$0xf]
      %v273 = vld [vmem:[%s1 + $0x18] sm:$0xf]
      %v274 = vld [vmem:[%s1 + $0x1c] sm:$0xf]
      %v275 = vld [vmem:[%s1 + $0x20] sm:$0xf]
      %v276 = vld [vmem:[%s1 + $0x24] sm:$0xf]
      %v277 = vld [vmem:[%s1 + $0x28] sm:$0xf]
      %v278 = vld [vmem:[%s1 + $0x2c] sm:$0xf]
      %v279 = vld [vmem:[%s1 + $0x30] sm:$0xf]
      %v280 = vld [vmem:[%s1 + $0x34] sm:$0xf]
      %v281 = vld [vmem:[%s1 + $0x38] sm:$0xf]
      %v282 = vld [vmem:[%s1 + $0x3c] sm:$0xf]
      %v299 = vunpack.c.l.b16 %v251
      %v300 = vunpack.c.l.b16 %v252
      %v301 = vunpack.c.l.b16 %v253
      %v302 = vunpack.c.l.b16 %v254
      %v303 = vunpack.c.l.b16 %v255
      %v304 = vunpack.c.l.b16 %v256
      %v305 = vunpack.c.l.b16 %v257
      %v306 = vunpack.c.l.b16 %v258
      %v307 = vunpack.c.l.b16 %v259
      %v308 = vunpack.c.l.b16 %v260
      %v309 = vunpack.c.l.b16 %v261
      %v310 = vunpack.c.l.b16 %v262
      %v311 = vunpack.c.l.b16 %v263
      %v312 = vunpack.c.l.b16 %v264
      %v313 = vunpack.c.l.b16 %v265
      %v314 = vunpack.c.l.b16 %v266
      %v315 = vpack.c.b16 %v300, %v299
      %v316 = vpack.c.b16 %v302, %v301
      %v317 = vpack.c.b16 %v304, %v303
      %v318 = vpack.c.b16 %v306, %v305
      %v319 = vpack.c.b16 %v308, %v307
      %v320 = vpack.c.b16 %v310, %v309
      %v321 = vpack.c.b16 %v312, %v311
      %v322 = vpack.c.b16 %v314, %v313
      %v347 = vunpack.c.l.b16 %v267
      %v348 = vunpack.c.l.b16 %v268
      %v349 = vunpack.c.l.b16 %v269
      %v350 = vunpack.c.l.b16 %v270
      %v351 = vunpack.c.l.b16 %v271
      %v352 = vunpack.c.l.b16 %v272
      %v353 = vunpack.c.l.b16 %v273
      %v354 = vunpack.c.l.b16 %v274
      %v355 = vunpack.c.l.b16 %v275
      %v356 = vunpack.c.l.b16 %v276
      %v357 = vunpack.c.l.b16 %v277
      %v358 = vunpack.c.l.b16 %v278
      %v359 = vunpack.c.l.b16 %v279
      %v360 = vunpack.c.l.b16 %v280
      %v361 = vunpack.c.l.b16 %v281
      %v362 = vunpack.c.l.b16 %v282
      %v363 = vpack.c.b16 %v348, %v347
      %v364 = vpack.c.b16 %v350, %v349
      %v365 = vpack.c.b16 %v352, %v351
      %v366 = vpack.c.b16 %v354, %v353
      %v367 = vpack.c.b16 %v356, %v355
      %v368 = vpack.c.b16 %v358, %v357
      %v369 = vpack.c.b16 %v360, %v359
      %v370 = vpack.c.b16 %v362, %v361
      %379 = vmatprep.subr.bf16.mxu0 0
      %380 = vmatpush1.bf16.msra.mxu0 %v370
      %381 = vmatprep.subr.bf16.mxu0 0
      %382 = vmatpush1.bf16.msra.mxu0 %v369
      %383 = vmatprep.subr.bf16.mxu0 0
      %384 = vmatpush1.bf16.msra.mxu0 %v368
      %385 = vmatprep.subr.bf16.mxu0 0
      %386 = vmatpush1.bf16.msra.mxu0 %v367
      %387 = vmatprep.subr.bf16.mxu0 0
      %388 = vmatpush1.bf16.msra.mxu0 %v366
      %389 = vmatprep.subr.bf16.mxu0 0
      %390 = vmatpush1.bf16.msra.mxu0 %v365
      %391 = vmatprep.subr.bf16.mxu0 0
      %392 = vmatpush1.bf16.msra.mxu0 %v364
      %393 = vmatprep.subr.bf16.mxu0 0
      %394 = vmatpush1.bf16.msra.mxu0 %v363
      %395 = vmatprep.subr.bf16.mxu0 0
      %396 = vmatpush2.bf16.msra.mxu0 0
      %397 = vmatprep.subr.bf16.mxu0 0
      %398 = vmatpush2.bf16.msra.mxu0 0
      %399 = vmatprep.subr.bf16.mxu0 0
      %400 = vmatpush2.bf16.msra.mxu0 0
      %401 = vmatprep.subr.bf16.mxu0 0
      %402 = vmatpush2.bf16.msra.mxu0 0
      %403 = vmatprep.subr.bf16.mxu0 0
      %404 = vmatpush2.bf16.msra.mxu0 0
      %405 = vmatprep.subr.bf16.mxu0 0
      %406 = vmatpush2.bf16.msra.mxu0 0
      %407 = vmatprep.subr.bf16.mxu0 0
      %408 = vmatpush2.bf16.msra.mxu0 0
      %409 = vmatprep.subr.bf16.mxu0 0
      %410 = vmatpush2.bf16.msra.mxu0 0
      %411 = vmatprep.mubr.bf16.mxu0 0
      %412 = vmatmul.mubr.bf16.gmra.mxu0 %v315
      %v413 = vpop.f32.mrf.mxu0
      %v414 = vadd.f32 0.0, %v413
      %v415 = vpop.f32.mrf.mxu0
      %v416 = vpop.f32.mrf.mxu0
      %v417 = vadd.f32 0.0, %v416
      %v418 = vpop.f32.mrf.mxu0
      %419 = vmatprep.mubr.bf16.mxu0 0
      %420 = vmatmul.mubr.bf16.gmra.mxu0 %v316
      %v421 = vpop.f32.mrf.mxu0
      %v422 = vadd.f32 0.0, %v421
      %v423 = vpop.f32.mrf.mxu0
      %v424 = vpop.f32.mrf.mxu0
      %v425 = vadd.f32 0.0, %v424
      %v426 = vpop.f32.mrf.mxu0
      %427 = vmatprep.mubr.bf16.mxu0 0
      %428 = vmatmul.mubr.bf16.gmra.mxu0 %v317
      %v429 = vpop.f32.mrf.mxu0
      %v430 = vadd.f32 0.0, %v429
      %v431 = vpop.f32.mrf.mxu0
      %v432 = vpop.f32.mrf.mxu0
      %v433 = vadd.f32 0.0, %v432
      %v434 = vpop.f32.mrf.mxu0
      %435 = vmatprep.mubr.bf16.mxu0 0
      %436 = vmatmul.mubr.bf16.gmra.mxu0 %v318
      %v437 = vpop.f32.mrf.mxu0
      %v438 = vadd.f32 0.0, %v437
      %v439 = vpop.f32.mrf.mxu0
      %v440 = vpop.f32.mrf.mxu0
      %v441 = vadd.f32 0.0, %v440
      %v442 = vpop.f32.mrf.mxu0
      %443 = vmatprep.mubr.bf16.mxu0 0
      %444 = vmatmul.mubr.bf16.gmra.mxu0 %v319
      %v445 = vpop.f32.mrf.mxu0
      %v446 = vadd.f32 0.0, %v445
      %v447 = vpop.f32.mrf.mxu0
      %v448 = vpop.f32.mrf.mxu0
      %v449 = vadd.f32 0.0, %v448
      %v450 = vpop.f32.mrf.mxu0
      %451 = vmatprep.mubr.bf16.mxu0 0
      %452 = vmatmul.mubr.bf16.gmra.mxu0 %v320
      %v453 = vpop.f32.mrf.mxu0
      %v454 = vadd.f32 0.0, %v453
      %v455 = vpop.f32.mrf.mxu0
      %v456 = vpop.f32.mrf.mxu0
      %v457 = vadd.f32 0.0, %v456
      %v458 = vpop.f32.mrf.mxu0
      %459 = vmatprep.mubr.bf16.mxu0 0
      %460 = vmatmul.mubr.bf16.gmra.mxu0 %v321
      %v461 = vpop.f32.mrf.mxu0
      %v462 = vadd.f32 0.0, %v461
      %v463 = vpop.f32.mrf.mxu0
      %v464 = vpop.f32.mrf.mxu0
      %v465 = vadd.f32 0.0, %v464
      %v466 = vpop.f32.mrf.mxu0
      %467 = vmatprep.mubr.bf16.mxu0 0
      %468 = vmatmul.mubr.bf16.gmra.mxu0 %v322
      %v469 = vpop.f32.mrf.mxu0
      %v470 = vadd.f32 0.0, %v469
      %v471 = vpop.f32.mrf.mxu0
      %v472 = vpop.f32.mrf.mxu0
      %v473 = vadd.f32 0.0, %v472
      %v474 = vpop.f32.mrf.mxu0
      %475 = vdwg.mxu0
      %v476 = vld [vmem:[%s2] sm:$0x1]
      %v478 = vlaneseq
      %v479 = vshrl.u32 %v478, 7
      %v480 = vsub.s32 0, %v479
      %v481 = vrot.slane %v476, %v480
      %v483 = vmul.f32 %v414, %v481
      %v484 = vmul.f32 %v417, %v481
      %v485 = vmul.f32 %v422, %v481
      %v486 = vmul.f32 %v425, %v481
      %v487 = vmul.f32 %v430, %v481
      %v488 = vmul.f32 %v433, %v481
      %v489 = vmul.f32 %v438, %v481
      %v490 = vmul.f32 %v441, %v481
      %v491 = vmul.f32 %v446, %v481
      %v492 = vmul.f32 %v449, %v481
      %v493 = vmul.f32 %v454, %v481
      %v494 = vmul.f32 %v457, %v481
      %v495 = vmul.f32 %v462, %v481
      %v496 = vmul.f32 %v465, %v481
      %v497 = vmul.f32 %v470, %v481
      %v498 = vmul.f32 %v473, %v481
      %v499 = vld [vmem:[%s3] sm:$0x1]
      %v501 = vlaneseq
      %v502 = vshrl.u32 %v501, 7
      %v503 = vsub.s32 0, %v502
      %v504 = vrot.slane %v499, %v503
      %v506 = vadd.f32 %v483, %v504
      %v507 = vadd.f32 %v484, %v504
      %v508 = vadd.f32 %v485, %v504
      %v509 = vadd.f32 %v486, %v504
      %v510 = vadd.f32 %v487, %v504
      %v511 = vadd.f32 %v488, %v504
      %v512 = vadd.f32 %v489, %v504
      %v513 = vadd.f32 %v490, %v504
      %v514 = vadd.f32 %v491, %v504
      %v515 = vadd.f32 %v492, %v504
      %v516 = vadd.f32 %v493, %v504
      %v517 = vadd.f32 %v494, %v504
      %v518 = vadd.f32 %v495, %v504
      %v519 = vadd.f32 %v496, %v504
      %v520 = vadd.f32 %v497, %v504
      %v521 = vadd.f32 %v498, %v504
      %v522 = vld [vmem:[%s242] sm:$0xf]
      %v523 = vld [vmem:[%s242 + $0x4] sm:$0xf]
      %v524 = vld [vmem:[%s242 + $0x8] sm:$0xf]
      %v525 = vld [vmem:[%s242 + $0xc] sm:$0xf]
      %v526 = vld [vmem:[%s242 + $0x10] sm:$0xf]
      %v527 = vld [vmem:[%s242 + $0x14] sm:$0xf]
      %v528 = vld [vmem:[%s242 + $0x18] sm:$0xf]
      %v529 = vld [vmem:[%s242 + $0x1c] sm:$0xf]
      %v530 = vld [vmem:[%s242 + $0x20] sm:$0xf]
      %v531 = vld [vmem:[%s242 + $0x24] sm:$0xf]
      %v532 = vld [vmem:[%s242 + $0x28] sm:$0xf]
      %v533 = vld [vmem:[%s242 + $0x2c] sm:$0xf]
      %v534 = vld [vmem:[%s242 + $0x30] sm:$0xf]
      %v535 = vld [vmem:[%s242 + $0x34] sm:$0xf]
      %v536 = vld [vmem:[%s242 + $0x38] sm:$0xf]
      %v537 = vld [vmem:[%s242 + $0x3c] sm:$0xf]
      %v538 = vunpack.c.l.bf16 %v522
      %v539 = vunpack.c.l.bf16 %v523
      %v540 = vunpack.c.l.bf16 %v524
      %v541 = vunpack.c.l.bf16 %v525
      %v542 = vunpack.c.l.bf16 %v526
      %v543 = vunpack.c.l.bf16 %v527
      %v544 = vunpack.c.l.bf16 %v528
      %v545 = vunpack.c.l.bf16 %v529
      %v546 = vunpack.c.l.bf16 %v530
      %v547 = vunpack.c.l.bf16 %v531
      %v548 = vunpack.c.l.bf16 %v532
      %v549 = vunpack.c.l.bf16 %v533
      %v550 = vunpack.c.l.bf16 %v534
      %v551 = vunpack.c.l.bf16 %v535
      %v552 = vunpack.c.l.bf16 %v536
      %v553 = vunpack.c.l.bf16 %v537
      %v554 = vadd.f32 %v506, %v538
      %v555 = vadd.f32 %v507, %v539
      %v556 = vadd.f32 %v508, %v540
      %v557 = vadd.f32 %v509, %v541
      %v558 = vadd.f32 %v510, %v542
      %v559 = vadd.f32 %v511, %v543
      %v560 = vadd.f32 %v512, %v544
      %v561 = vadd.f32 %v513, %v545
      %v562 = vadd.f32 %v514, %v546
      %v563 = vadd.f32 %v515, %v547
      %v564 = vadd.f32 %v516, %v548
      %v565 = vadd.f32 %v517, %v549
      %v566 = vadd.f32 %v518, %v550
      %v567 = vadd.f32 %v519, %v551
      %v568 = vadd.f32 %v520, %v552
      %v569 = vadd.f32 %v521, %v553
      %v570 = vmax.f32 %v554, 0.0
      %v571 = vmax.f32 %v555, 0.0
      %v572 = vmax.f32 %v556, 0.0
      %v573 = vmax.f32 %v557, 0.0
      %v574 = vmax.f32 %v558, 0.0
      %v575 = vmax.f32 %v559, 0.0
      %v576 = vmax.f32 %v560, 0.0
      %v577 = vmax.f32 %v561, 0.0
      %v578 = vmax.f32 %v562, 0.0
      %v579 = vmax.f32 %v563, 0.0
      %v580 = vmax.f32 %v564, 0.0
      %v581 = vmax.f32 %v565, 0.0
      %v582 = vmax.f32 %v566, 0.0
      %v583 = vmax.f32 %v567, 0.0
      %v584 = vmax.f32 %v568, 0.0
      %v585 = vmax.f32 %v569, 0.0
      %586 = vst [vmem:[%s248] sm:$0xff] %v570
      %587 = vst [vmem:[%s248 + $0x8] sm:$0xff] %v571
      %588 = vst [vmem:[%s248 + $0x10] sm:$0xff] %v572
      %589 = vst [vmem:[%s248 + $0x18] sm:$0xff] %v573
      %590 = vst [vmem:[%s248 + $0x20] sm:$0xff] %v574
      %591 = vst [vmem:[%s248 + $0x28] sm:$0xff] %v575
      %592 = vst [vmem:[%s248 + $0x30] sm:$0xff] %v576
      %593 = vst [vmem:[%s248 + $0x38] sm:$0xff] %v577
      %594 = vst [vmem:[%s248 + $0x40] sm:$0xff] %v578
      %595 = vst [vmem:[%s248 + $0x48] sm:$0xff] %v579
      %596 = vst [vmem:[%s248 + $0x50] sm:$0xff] %v580
      %597 = vst [vmem:[%s248 + $0x58] sm:$0xff] %v581
      %598 = vst [vmem:[%s248 + $0x60] sm:$0xff] %v582
      %599 = vst [vmem:[%s248 + $0x68] sm:$0xff] %v583
      %600 = vst [vmem:[%s248 + $0x70] sm:$0xff] %v584
      %601 = vst [vmem:[%s248 + $0x78] sm:$0xff] %v585
      %s602 = smul.u32 16, %s16
      %p603 = scmp.lt.s32.totalorder %s602, 63
      %s604 = scalar_select %p603, %s602, 63
      %s605 = smul.addr %s604, 8
      %s606 = scalar_lea.vmem %s5, %s605
      // Predicated region
      $region41: #{bottleneck_forward.5} parent=39 // pred_check
        %p607 = pneg %p149
      $region42: #{bottleneck_forward.5} parent=39 // pred_check_branch
        %609 = sbr.rel (%p607) target = $region44
      $region43: #{bottleneck_forward.5} parent=39 // pred_region
        %s610 = smul.u32 16, %s16
      $region44: #{bottleneck_forward.5} parent=39 // pred_fallthru
        _
    $region40: #{bottleneck_forward.5} parent=5 // pred_fallthru
      _
    %p611 = scmp.le.s32.totalorder 2, %s11
    // Predicated region
    $region45: #{bottleneck_forward.5} parent=5 // pred_check
      %p612 = pneg %p611
    $region46: #{bottleneck_forward.5} parent=5 // pred_check_branch
      %614 = sbr.rel (%p612) target = $region48
    $region47: #{bottleneck_forward.5} parent=5 // pred_region
      %s615 = ssub.s32 %s11, 2
      // Predicated region
      $region49: #{bottleneck_forward.5} parent=47 // pred_check
        %p616 = pneg %p155
      $region50: #{bottleneck_forward.5} parent=47 // pred_check_branch
        %618 = sbr.rel (%p616) target = $region52
      $region51: #{bottleneck_forward.5} parent=47 // pred_region
        %s619 = smul.u32 16, %s17
        %p620 = scmp.lt.s32.totalorder %s619, 63
        %s621 = scalar_select %p620, %s619, 63
        %s622 = smul.addr %s621, 8
        %s623 = scalar_lea.vmem %s5, %s622
      $region52: #{bottleneck_forward.5} parent=47 // pred_fallthru
        _
    $region48: #{bottleneck_forward.5} parent=5 // pred_fallthru
      _
  $region6: #{bottleneck_forward.5} parent=0 // loop_footer
    %s15 = sadd.s32 1, %s11
  $region7: #{bottleneck_forward.5} parent=0 // loop_footer_branch
    %10 = sbr.rel target = $region3
  $region8: #{bottleneck_forward.5} parent=0 // loop_exit
    _

// kernel: bottleneck_forward.3
$region0: #{bottleneck_forward.3}
  #allocation0 [shape = 'u32[]', space=smem, size = 0x4, offset = 0x4, fixed_abs, tag = 'smem constant byte address 0x4 - core index']
  #allocation1 [shape = 'u32[144,128]{1,0:T(1,128)}', space=vmem, size = 0x12000, scoped, tag = 'internal scratch']
  %s0 = inlined_call_operand.vmem [shape: bf16[512,128], index: 0, kind: input, shape index: {}]
  %s1 = inlined_call_operand.vmem [shape: bf16[128,128], index: 1, kind: input, shape index: {}]
  %s2 = inlined_call_operand.vmem [shape: f32[1,128], index: 2, kind: input, shape index: {}]
  %s3 = inlined_call_operand.vmem [shape: f32[1,128], index: 3, kind: input, shape index: {}]
  %s4 = inlined_call_operand.vmem [shape: bf16[512,128], index: 4, kind: output, shape index: {}]
  %s5 = sld [smem:[#allocation0]]
  $region49: #{bottleneck_forward.3} parent=0
    _
  %s7 = ssub.s32 1, %s5
  %s8 = scalar_select 0, %s7, %s5
  loop: start=0, step=1, limit=6
  $region2: #{bottleneck_forward.3} parent=0 // loop_pre_header
    _
  $region3: #{bottleneck_forward.3} parent=0 // loop_header
    %s10 = sphi 0, %s14
    %p11 = scmp.ge.s32.totalorder %s10, 6
    %s20 = sphi 0, %s22
    %s23 = sphi 0, %s20
    %s24 = sphi 0, %s23
    %s40 = sphi 0, %s24
    %s44 = sphi 0, %s44
    %s46 = sphi 0, %s44
    %s47 = sphi 0, %s46
    %s61 = sphi 0, %s47
    %s65 = sphi 0, %s65
    %s67 = sphi 0, %s65
    %s68 = sphi 0, %s67
    %s82 = sphi 0, %s68
    %s86 = sphi 0, %s86
    %s88 = sphi 0, %s86
    %s89 = sphi 0, %s88
    %s103 = sphi 0, %s89
    %s109 = sphi 0, %s111
    %s112 = sphi 0, %s109
    %s113 = sphi 0, %s112
    %s129 = sphi 0, %s113
  $region4: #{bottleneck_forward.3} parent=0 // loop_header_branch
    %13 = sbr.rel (%p11) target = $region8
  $region5: #{bottleneck_forward.3} parent=0 // loop_body
    %s15 = ssub.s32 %s10, 1
    %s16 = ssub.s32 %s10, 2
    %s17 = sadd.s32 %s10, 1
    %s18 = ssub.s32 %s10, %s17
    %p19 = scmp.eq.s32.totalorder %s18, 0
    %s21 = sadd.s32 %s20, 1
    %s22 = scalar_select %p19, %s20, %s21
    %p25 = pneg %p19
    %p26 = scmp.eq.s32.totalorder %s10, 3
    %p27 = por %p25, %p26
    %p28 = scmp.ne.s32.totalorder %s20, %s23
    %p29 = scmp.eq.s32.totalorder %s10, 0
    %p30 = por %p28, %p29
    %p31 = scmp.ne.s32.totalorder %s20, %s23
    %p32 = scmp.eq.s32.totalorder %s15, 3
    %p33 = por %p31, %p32
    %p34 = scmp.ne.s32.totalorder %s23, %s24
    %p35 = scmp.eq.s32.totalorder %s15, 0
    %p36 = por %p34, %p35
    %p37 = scmp.ne.s32.totalorder %s23, %s24
    %p38 = scmp.eq.s32.totalorder %s16, 3
    %p39 = por %p37, %p38
    %p41 = scmp.ne.s32.totalorder %s24, %s40
    %p42 = scmp.eq.s32.totalorder %s16, 0
    %p43 = por %p41, %p42
    %s45 = sadd.s32 %s44, 1
    %p48 = scmp.eq.s32.totalorder %s10, 3
    %p49 = scmp.ne.s32.totalorder %s44, %s46
    %p50 = scmp.eq.s32.totalorder %s10, 0
    %p51 = por %p49, %p50
    %p52 = scmp.ne.s32.totalorder %s44, %s46
    %p53 = scmp.eq.s32.totalorder %s15, 3
    %p54 = por %p52, %p53
    %p55 = scmp.ne.s32.totalorder %s46, %s47
    %p56 = scmp.eq.s32.totalorder %s15, 0
    %p57 = por %p55, %p56
    %p58 = scmp.ne.s32.totalorder %s46, %s47
    %p59 = scmp.eq.s32.totalorder %s16, 3
    %p60 = por %p58, %p59
    %p62 = scmp.ne.s32.totalorder %s47, %s61
    %p63 = scmp.eq.s32.totalorder %s16, 0
    %p64 = por %p62, %p63
    %s66 = sadd.s32 %s65, 1
    %p69 = scmp.eq.s32.totalorder %s10, 3
    %p70 = scmp.ne.s32.totalorder %s65, %s67
    %p71 = scmp.eq.s32.totalorder %s10, 0
    %p72 = por %p70, %p71
    %p73 = scmp.ne.s32.totalorder %s65, %s67
    %p74 = scmp.eq.s32.totalorder %s15, 3
    %p75 = por %p73, %p74
    %p76 = scmp.ne.s32.totalorder %s67, %s68
    %p77 = scmp.eq.s32.totalorder %s15, 0
    %p78 = por %p76, %p77
    %p79 = scmp.ne.s32.totalorder %s67, %s68
    %p80 = scmp.eq.s32.totalorder %s16, 3
    %p81 = por %p79, %p80
    %p83 = scmp.ne.s32.totalorder %s68, %s82
    %p84 = scmp.eq.s32.totalorder %s16, 0
    %p85 = por %p83, %p84
    %s87 = sadd.s32 %s86, 1
    %p90 = scmp.eq.s32.totalorder %s10, 3
    %p91 = scmp.ne.s32.totalorder %s86, %s88
    %p92 = scmp.eq.s32.totalorder %s10, 0
    %p93 = por %p91, %p92
    %p94 = scmp.ne.s32.totalorder %s86, %s88
    %p95 = scmp.eq.s32.totalorder %s15, 3
    %p96 = por %p94, %p95
    %p97 = scmp.ne.s32.totalorder %s88, %s89
    %p98 = scmp.eq.s32.totalorder %s15, 0
    %p99 = por %p97, %p98
    %p100 = scmp.ne.s32.totalorder %s88, %s89
    %p101 = scmp.eq.s32.totalorder %s16, 3
    %p102 = por %p100, %p101
    %p104 = scmp.ne.s32.totalorder %s89, %s103
    %p105 = scmp.eq.s32.totalorder %s16, 0
    %p106 = por %p104, %p105
    %s107 = ssub.s32 %s10, %s17
    %p108 = scmp.eq.s32.totalorder %s107, 0
    %s110 = sadd.s32 %s109, 1
    %s111 = scalar_select %p108, %s109, %s110
    %p114 = pneg %p108
    %p115 = scmp.eq.s32.totalorder %s10, 3
    %p116 = por %p114, %p115
    %p117 = scmp.ne.s32.totalorder %s109, %s112
    %p118 = scmp.eq.s32.totalorder %s10, 0
    %p119 = por %p117, %p118
    %p120 = scmp.ne.s32.totalorder %s109, %s112
    %p121 = scmp.eq.s32.totalorder %s15, 3
    %p122 = por %p120, %p121
    %p123 = scmp.ne.s32.totalorder %s112, %s113
    %p124 = scmp.eq.s32.totalorder %s15, 0
    %p125 = por %p123, %p124
    %p126 = scmp.ne.s32.totalorder %s112, %s113
    %p127 = scmp.eq.s32.totalorder %s16, 3
    %p128 = por %p126, %p127
    %p130 = scmp.ne.s32.totalorder %s113, %s129
    %p131 = scmp.eq.s32.totalorder %s16, 0
    %p132 = por %p130, %p131
    %p133 = scmp.le.s32.totalorder 1, %s10
    %p134 = scmp.lt.s32.totalorder %s10, 5
    %p135 = pnand %p133, %p134
    %p136 = pneg %p135
    // Predicated region
    $region9: #{bottleneck_forward.3} parent=5 // pred_check
      _
    $region10: #{bottleneck_forward.3} parent=5 // pred_check_branch
      %138 = sbr.rel (%p135) target = $region12
    $region11: #{bottleneck_forward.3} parent=5 // pred_region
      %s139 = ssub.s32 %s10, 1
      // Predicated region
      $region13: #{bottleneck_forward.3} parent=11 // pred_check
        %p140 = pneg %p57
      $region14: #{bottleneck_forward.3} parent=11 // pred_check_branch
        %142 = sbr.rel (%p140) target = $region16
      $region15: #{bottleneck_forward.3} parent=11 // pred_region
        _
      $region16: #{bottleneck_forward.3} parent=11 // pred_fallthru
        _
      // Predicated region
      $region17: #{bottleneck_forward.3} parent=11 // pred_check
        %p143 = pneg %p78
      $region18: #{bottleneck_forward.3} parent=11 // pred_check_branch
        %145 = sbr.rel (%p143) target = $region20
      $region19: #{bottleneck_forward.3} parent=11 // pred_region
        _
      $region20: #{bottleneck_forward.3} parent=11 // pred_fallthru
        _
      // Predicated region
      $region21: #{bottleneck_forward.3} parent=11 // pred_check
        %p146 = pneg %p99
      $region22: #{bottleneck_forward.3} parent=11 // pred_check_branch
        %148 = sbr.rel (%p146) target = $region24
      $region23: #{bottleneck_forward.3} parent=11 // pred_region
        _
      $region24: #{bottleneck_forward.3} parent=11 // pred_fallthru
        _
    $region12: #{bottleneck_forward.3} parent=5 // pred_fallthru
      _
    %p149 = scmp.lt.s32.totalorder %s10, 4
    // Predicated region
    $region25: #{bottleneck_forward.3} parent=5 // pred_check
      %p150 = pneg %p149
    $region26: #{bottleneck_forward.3} parent=5 // pred_check_branch
      %152 = sbr.rel (%p150) target = $region28
    $region27: #{bottleneck_forward.3} parent=5 // pred_region
      // Predicated region
      $region29: #{bottleneck_forward.3} parent=27 // pred_check
        %p153 = pneg %p30
      $region30: #{bottleneck_forward.3} parent=27 // pred_check_branch
        %155 = sbr.rel (%p153) target = $region32
      $region31: #{bottleneck_forward.3} parent=27 // pred_region
        %s156 = smul.u32 16, %s10
        %p157 = scmp.lt.s32.totalorder %s156, 63
        %s158 = scalar_select %p157, %s156, 63
        %s159 = smul.addr %s158, 4
        %s160 = scalar_lea.vmem %s0, %s159
        %s161 = smul.u32 16, %s10
      $region32: #{bottleneck_forward.3} parent=27 // pred_fallthru
        _
    $region28: #{bottleneck_forward.3} parent=5 // pred_fallthru
      _
    %p162 = scmp.le.s32.totalorder 1, %s10
    %p163 = scmp.lt.s32.totalorder %s10, 5
    %p164 = pnand %p162, %p163
    %p165 = pneg %p164
    // Predicated region
    $region33: #{bottleneck_forward.3} parent=5 // pred_check
      _
    $region34: #{bottleneck_forward.3} parent=5 // pred_check_branch
      %167 = sbr.rel (%p164) target = $region36
    $region35: #{bottleneck_forward.3} parent=5 // pred_region
      %s168 = ssub.s32 %s10, 1
      %s169 = smul.u32 16, %s15
      %p170 = scmp.lt.s32.totalorder %s169, 63
      %s171 = scalar_select %p170, %s169, 63
      %s172 = smul.addr %s171, 4
      %s173 = scalar_lea.vmem %s0, %s172
      %p174 = pneg %p36
      %p175 = pneg %p33
      %p176 = pneg %p57
      %p177 = pneg %p54
      %p178 = pneg %p78
      %p179 = pneg %p75
      %p180 = pneg %p99
      %p181 = pneg %p96
      %p182 = pneg %p125
      %p183 = pneg %p122
      %s184 = smul.u32 16, %s15
      %p185 = scmp.lt.s32.totalorder %s184, 63
      %s186 = scalar_select %p185, %s184, 63
      %s187 = smul.addr %s186, 4
      %s188 = scalar_lea.vmem %s4, %s187
      %s189 = smul.u32 16, %s15
      %p190 = scmp.lt.s32.totalorder %s189, 63
      %s191 = scalar_select %p190, %s189, 63
      %s192 = smul.addr %s191, 4
      %s193 = scalar_lea.vmem %s0, %s192
      %s194 = smul.u32 16, %s15
      %s195 = smul.u32 16, %s15
      %p196 = scmp.lt.s32.totalorder %s195, 63
      %s197 = scalar_select %p196, %s195, 63
      %s198 = smul.addr %s197, 4
      %s199 = scalar_lea.vmem %s4, %s198
      %s200 = smul.u32 16, %s15
      %v202 = vld [vmem:[%s193] sm:$0xf]
      %v203 = vld [vmem:[%s193 + $0x4] sm:$0xf]
      %v204 = vld [vmem:[%s193 + $0x8] sm:$0xf]
      %v205 = vld [vmem:[%s193 + $0xc] sm:$0xf]
      %v206 = vld [vmem:[%s193 + $0x10] sm:$0xf]
      %v207 = vld [vmem:[%s193 + $0x14] sm:$0xf]
      %v208 = vld [vmem:[%s193 + $0x18] sm:$0xf]
      %v209 = vld [vmem:[%s193 + $0x1c] sm:$0xf]
      %v210 = vld [vmem:[%s193 + $0x20] sm:$0xf]
      %v211 = vld [vmem:[%s193 + $0x24] sm:$0xf]
      %v212 = vld [vmem:[%s193 + $0x28] sm:$0xf]
      %v213 = vld [vmem:[%s193 + $0x2c] sm:$0xf]
      %v214 = vld [vmem:[%s193 + $0x30] sm:$0xf]
      %v215 = vld [vmem:[%s193 + $0x34] sm:$0xf]
      %v216 = vld [vmem:[%s193 + $0x38] sm:$0xf]
      %v217 = vld [vmem:[%s193 + $0x3c] sm:$0xf]
      %v218 = vld [vmem:[%s1] sm:$0xf]
      %v219 = vld [vmem:[%s1 + $0x4] sm:$0xf]
      %v220 = vld [vmem:[%s1 + $0x8] sm:$0xf]
      %v221 = vld [vmem:[%s1 + $0xc] sm:$0xf]
      %v222 = vld [vmem:[%s1 + $0x10] sm:$0xf]
      %v223 = vld [vmem:[%s1 + $0x14] sm:$0xf]
      %v224 = vld [vmem:[%s1 + $0x18] sm:$0xf]
      %v225 = vld [vmem:[%s1 + $0x1c] sm:$0xf]
      %v226 = vld [vmem:[%s1 + $0x20] sm:$0xf]
      %v227 = vld [vmem:[%s1 + $0x24] sm:$0xf]
      %v228 = vld [vmem:[%s1 + $0x28] sm:$0xf]
      %v229 = vld [vmem:[%s1 + $0x2c] sm:$0xf]
      %v230 = vld [vmem:[%s1 + $0x30] sm:$0xf]
      %v231 = vld [vmem:[%s1 + $0x34] sm:$0xf]
      %v232 = vld [vmem:[%s1 + $0x38] sm:$0xf]
      %v233 = vld [vmem:[%s1 + $0x3c] sm:$0xf]
      %v250 = vunpack.c.l.b16 %v202
      %v251 = vunpack.c.l.b16 %v203
      %v252 = vunpack.c.l.b16 %v204
      %v253 = vunpack.c.l.b16 %v205
      %v254 = vunpack.c.l.b16 %v206
      %v255 = vunpack.c.l.b16 %v207
      %v256 = vunpack.c.l.b16 %v208
      %v257 = vunpack.c.l.b16 %v209
      %v258 = vunpack.c.l.b16 %v210
      %v259 = vunpack.c.l.b16 %v211
      %v260 = vunpack.c.l.b16 %v212
      %v261 = vunpack.c.l.b16 %v213
      %v262 = vunpack.c.l.b16 %v214
      %v263 = vunpack.c.l.b16 %v215
      %v264 = vunpack.c.l.b16 %v216
      %v265 = vunpack.c.l.b16 %v217
      %v266 = vpack.c.b16 %v251, %v250
      %v267 = vpack.c.b16 %v253, %v252
      %v268 = vpack.c.b16 %v255, %v254
      %v269 = vpack.c.b16 %v257, %v256
      %v270 = vpack.c.b16 %v259, %v258
      %v271 = vpack.c.b16 %v261, %v260
      %v272 = vpack.c.b16 %v263, %v262
      %v273 = vpack.c.b16 %v265, %v264
      %v298 = vunpack.c.l.b16 %v218
      %v299 = vunpack.c.l.b16 %v219
      %v300 = vunpack.c.l.b16 %v220
      %v301 = vunpack.c.l.b16 %v221
      %v302 = vunpack.c.l.b16 %v222
      %v303 = vunpack.c.l.b16 %v223
      %v304 = vunpack.c.l.b16 %v224
      %v305 = vunpack.c.l.b16 %v225
      %v306 = vunpack.c.l.b16 %v226
      %v307 = vunpack.c.l.b16 %v227
      %v308 = vunpack.c.l.b16 %v228
      %v309 = vunpack.c.l.b16 %v229
      %v310 = vunpack.c.l.b16 %v230
      %v311 = vunpack.c.l.b16 %v231
      %v312 = vunpack.c.l.b16 %v232
      %v313 = vunpack.c.l.b16 %v233
      %v314 = vpack.c.b16 %v299, %v298
      %v315 = vpack.c.b16 %v301, %v300
      %v316 = vpack.c.b16 %v303, %v302
      %v317 = vpack.c.b16 %v305, %v304
      %v318 = vpack.c.b16 %v307, %v306
      %v319 = vpack.c.b16 %v309, %v308
      %v320 = vpack.c.b16 %v311, %v310
      %v321 = vpack.c.b16 %v313, %v312
      %330 = vmatprep.subr.bf16.mxu0 0
      %331 = vmatpush1.bf16.msra.mxu0 %v321
      %332 = vmatprep.subr.bf16.mxu0 0
      %333 = vmatpush1.bf16.msra.mxu0 %v320
      %334 = vmatprep.subr.bf16.mxu0 0
      %335 = vmatpush1.bf16.msra.mxu0 %v319
      %336 = vmatprep.subr.bf16.mxu0 0
      %337 = vmatpush1.bf16.msra.mxu0 %v318
      %338 = vmatprep.subr.bf16.mxu0 0
      %339 = vmatpush1.bf16.msra.mxu0 %v317
      %340 = vmatprep.subr.bf16.mxu0 0
      %341 = vmatpush1.bf16.msra.mxu0 %v316
      %342 = vmatprep.subr.bf16.mxu0 0
      %343 = vmatpush1.bf16.msra.mxu0 %v315
      %344 = vmatprep.subr.bf16.mxu0 0
      %345 = vmatpush1.bf16.msra.mxu0 %v314
      %346 = vmatprep.subr.bf16.mxu0 0
      %347 = vmatpush2.bf16.msra.mxu0 0
      %348 = vmatprep.subr.bf16.mxu0 0
      %349 = vmatpush2.bf16.msra.mxu0 0
      %350 = vmatprep.subr.bf16.mxu0 0
      %351 = vmatpush2.bf16.msra.mxu0 0
      %352 = vmatprep.subr.bf16.mxu0 0
      %353 = vmatpush2.bf16.msra.mxu0 0
      %354 = vmatprep.subr.bf16.mxu0 0
      %355 = vmatpush2.bf16.msra.mxu0 0
      %356 = vmatprep.subr.bf16.mxu0 0
      %357 = vmatpush2.bf16.msra.mxu0 0
      %358 = vmatprep.subr.bf16.mxu0 0
      %359 = vmatpush2.bf16.msra.mxu0 0
      %360 = vmatprep.subr.bf16.mxu0 0
      %361 = vmatpush2.bf16.msra.mxu0 0
      %362 = vmatprep.mubr.bf16.mxu0 0
      %363 = vmatmul.mubr.bf16.gmra.mxu0 %v266
      %v364 = vpop.f32.mrf.mxu0
      %v365 = vadd.f32 0.0, %v364
      %v366 = vpop.f32.mrf.mxu0
      %v367 = vpop.f32.mrf.mxu0
      %v368 = vadd.f32 0.0, %v367
      %v369 = vpop.f32.mrf.mxu0
      %370 = vmatprep.mubr.bf16.mxu0 0
      %371 = vmatmul.mubr.bf16.gmra.mxu0 %v267
      %v372 = vpop.f32.mrf.mxu0
      %v373 = vadd.f32 0.0, %v372
      %v374 = vpop.f32.mrf.mxu0
      %v375 = vpop.f32.mrf.mxu0
      %v376 = vadd.f32 0.0, %v375
      %v377 = vpop.f32.mrf.mxu0
      %378 = vmatprep.mubr.bf16.mxu0 0
      %379 = vmatmul.mubr.bf16.gmra.mxu0 %v268
      %v380 = vpop.f32.mrf.mxu0
      %v381 = vadd.f32 0.0, %v380
      %v382 = vpop.f32.mrf.mxu0
      %v383 = vpop.f32.mrf.mxu0
      %v384 = vadd.f32 0.0, %v383
      %v385 = vpop.f32.mrf.mxu0
      %386 = vmatprep.mubr.bf16.mxu0 0
      %387 = vmatmul.mubr.bf16.gmra.mxu0 %v269
      %v388 = vpop.f32.mrf.mxu0
      %v389 = vadd.f32 0.0, %v388
      %v390 = vpop.f32.mrf.mxu0
      %v391 = vpop.f32.mrf.mxu0
      %v392 = vadd.f32 0.0, %v391
      %v393 = vpop.f32.mrf.mxu0
      %394 = vmatprep.mubr.bf16.mxu0 0
      %395 = vmatmul.mubr.bf16.gmra.mxu0 %v270
      %v396 = vpop.f32.mrf.mxu0
      %v397 = vadd.f32 0.0, %v396
      %v398 = vpop.f32.mrf.mxu0
      %v399 = vpop.f32.mrf.mxu0
      %v400 = vadd.f32 0.0, %v399
      %v401 = vpop.f32.mrf.mxu0
      %402 = vmatprep.mubr.bf16.mxu0 0
      %403 = vmatmul.mubr.bf16.gmra.mxu0 %v271
      %v404 = vpop.f32.mrf.mxu0
      %v405 = vadd.f32 0.0, %v404
      %v406 = vpop.f32.mrf.mxu0
      %v407 = vpop.f32.mrf.mxu0
      %v408 = vadd.f32 0.0, %v407
      %v409 = vpop.f32.mrf.mxu0
      %410 = vmatprep.mubr.bf16.mxu0 0
      %411 = vmatmul.mubr.bf16.gmra.mxu0 %v272
      %v412 = vpop.f32.mrf.mxu0
      %v413 = vadd.f32 0.0, %v412
      %v414 = vpop.f32.mrf.mxu0
      %v415 = vpop.f32.mrf.mxu0
      %v416 = vadd.f32 0.0, %v415
      %v417 = vpop.f32.mrf.mxu0
      %418 = vmatprep.mubr.bf16.mxu0 0
      %419 = vmatmul.mubr.bf16.gmra.mxu0 %v273
      %v420 = vpop.f32.mrf.mxu0
      %v421 = vadd.f32 0.0, %v420
      %v422 = vpop.f32.mrf.mxu0
      %v423 = vpop.f32.mrf.mxu0
      %v424 = vadd.f32 0.0, %v423
      %v425 = vpop.f32.mrf.mxu0
      %426 = vdwg.mxu0
      %v427 = vld [vmem:[%s2] sm:$0x1]
      %v429 = vlaneseq
      %v430 = vshrl.u32 %v429, 7
      %v431 = vsub.s32 0, %v430
      %v432 = vrot.slane %v427, %v431
      %v434 = vmul.f32 %v365, %v432
      %v435 = vmul.f32 %v368, %v432
      %v436 = vmul.f32 %v373, %v432
      %v437 = vmul.f32 %v376, %v432
      %v438 = vmul.f32 %v381, %v432
      %v439 = vmul.f32 %v384, %v432
      %v440 = vmul.f32 %v389, %v432
      %v441 = vmul.f32 %v392, %v432
      %v442 = vmul.f32 %v397, %v432
      %v443 = vmul.f32 %v400, %v432
      %v444 = vmul.f32 %v405, %v432
      %v445 = vmul.f32 %v408, %v432
      %v446 = vmul.f32 %v413, %v432
      %v447 = vmul.f32 %v416, %v432
      %v448 = vmul.f32 %v421, %v432
      %v449 = vmul.f32 %v424, %v432
      %v450 = vld [vmem:[%s3] sm:$0x1]
      %v452 = vlaneseq
      %v453 = vshrl.u32 %v452, 7
      %v454 = vsub.s32 0, %v453
      %v455 = vrot.slane %v450, %v454
      %v457 = vadd.f32 %v434, %v455
      %v458 = vadd.f32 %v435, %v455
      %v459 = vadd.f32 %v436, %v455
      %v460 = vadd.f32 %v437, %v455
      %v461 = vadd.f32 %v438, %v455
      %v462 = vadd.f32 %v439, %v455
      %v463 = vadd.f32 %v440, %v455
      %v464 = vadd.f32 %v441, %v455
      %v465 = vadd.f32 %v442, %v455
      %v466 = vadd.f32 %v443, %v455
      %v467 = vadd.f32 %v444, %v455
      %v468 = vadd.f32 %v445, %v455
      %v469 = vadd.f32 %v446, %v455
      %v470 = vadd.f32 %v447, %v455
      %v471 = vadd.f32 %v448, %v455
      %v472 = vadd.f32 %v449, %v455
      %v473 = vmax.f32 %v457, 0.0
      %v474 = vmax.f32 %v458, 0.0
      %v475 = vmax.f32 %v459, 0.0
      %v476 = vmax.f32 %v460, 0.0
      %v477 = vmax.f32 %v461, 0.0
      %v478 = vmax.f32 %v462, 0.0
      %v479 = vmax.f32 %v463, 0.0
      %v480 = vmax.f32 %v464, 0.0
      %v481 = vmax.f32 %v465, 0.0
      %v482 = vmax.f32 %v466, 0.0
      %v483 = vmax.f32 %v467, 0.0
      %v484 = vmax.f32 %v468, 0.0
      %v485 = vmax.f32 %v469, 0.0
      %v486 = vmax.f32 %v470, 0.0
      %v487 = vmax.f32 %v471, 0.0
      %v488 = vmax.f32 %v472, 0.0
      %v489 = vpack.c.bf16 %v474, %v473
      %v490 = vpack.c.bf16 %v476, %v475
      %v491 = vpack.c.bf16 %v478, %v477
      %v492 = vpack.c.bf16 %v480, %v479
      %v493 = vpack.c.bf16 %v482, %v481
      %v494 = vpack.c.bf16 %v484, %v483
      %v495 = vpack.c.bf16 %v486, %v485
      %v496 = vpack.c.bf16 %v488, %v487
      %v505 = vunpack.c.l.b16 %v489
      %v506 = vunpack.c.h.b16 %v489
      %v507 = vunpack.c.l.b16 %v490
      %v508 = vunpack.c.h.b16 %v490
      %v509 = vunpack.c.l.b16 %v491
      %v510 = vunpack.c.h.b16 %v491
      %v511 = vunpack.c.l.b16 %v492
      %v512 = vunpack.c.h.b16 %v492
      %v513 = vunpack.c.l.b16 %v493
      %v514 = vunpack.c.h.b16 %v493
      %v515 = vunpack.c.l.b16 %v494
      %v516 = vunpack.c.h.b16 %v494
      %v517 = vunpack.c.l.b16 %v495
      %v518 = vunpack.c.h.b16 %v495
      %v519 = vunpack.c.l.b16 %v496
      %v520 = vunpack.c.h.b16 %v496
      %v521 = vpack.c.b16 %v505, %v505
      %v522 = vpack.c.b16 %v506, %v506
      %v523 = vpack.c.b16 %v507, %v507
      %v524 = vpack.c.b16 %v508, %v508
      %v525 = vpack.c.b16 %v509, %v509
      %v526 = vpack.c.b16 %v510, %v510
      %v527 = vpack.c.b16 %v511, %v511
      %v528 = vpack.c.b16 %v512, %v512
      %v529 = vpack.c.b16 %v513, %v513
      %v530 = vpack.c.b16 %v514, %v514
      %v531 = vpack.c.b16 %v515, %v515
      %v532 = vpack.c.b16 %v516, %v516
      %v533 = vpack.c.b16 %v517, %v517
      %v534 = vpack.c.b16 %v518, %v518
      %v535 = vpack.c.b16 %v519, %v519
      %v536 = vpack.c.b16 %v520, %v520
      %553 = vst [vmem:[%s199] sm:$0xf] %v521
      %554 = vst [vmem:[%s199 + $0x4] sm:$0xf] %v522
      %555 = vst [vmem:[%s199 + $0x8] sm:$0xf] %v523
      %556 = vst [vmem:[%s199 + $0xc] sm:$0xf] %v524
      %557 = vst [vmem:[%s199 + $0x10] sm:$0xf] %v525
      %558 = vst [vmem:[%s199 + $0x14] sm:$0xf] %v526
      %559 = vst [vmem:[%s199 + $0x18] sm:$0xf] %v527
      %560 = vst [vmem:[%s199 + $0x1c] sm:$0xf] %v528
      %561 = vst [vmem:[%s199 + $0x20] sm:$0xf] %v529
      %562 = vst [vmem:[%s199 + $0x24] sm:$0xf] %v530
      %563 = vst [vmem:[%s199 + $0x28] sm:$0xf] %v531
      %564 = vst [vmem:[%s199 + $0x2c] sm:$0xf] %v532
      %565 = vst [vmem:[%s199 + $0x30] sm:$0xf] %v533
      %566 = vst [vmem:[%s199 + $0x34] sm:$0xf] %v534
      %567 = vst [vmem:[%s199 + $0x38] sm:$0xf] %v535
      %568 = vst [vmem:[%s199 + $0x3c] sm:$0xf] %v536
      %s569 = smul.u32 16, %s15
      %p570 = scmp.lt.s32.totalorder %s569, 63
      %s571 = scalar_select %p570, %s569, 63
      %s572 = smul.addr %s571, 4
      %s573 = scalar_lea.vmem %s4, %s572
      // Predicated region
      $region37: #{bottleneck_forward.3} parent=35 // pred_check
        %p574 = pneg %p122
      $region38: #{bottleneck_forward.3} parent=35 // pred_check_branch
        %576 = sbr.rel (%p574) target = $region40
      $region39: #{bottleneck_forward.3} parent=35 // pred_region
        %s577 = smul.u32 16, %s15
      $region40: #{bottleneck_forward.3} parent=35 // pred_fallthru
        _
    $region36: #{bottleneck_forward.3} parent=5 // pred_fallthru
      _
    %p578 = scmp.le.s32.totalorder 2, %s10
    // Predicated region
    $region41: #{bottleneck_forward.3} parent=5 // pred_check
      %p579 = pneg %p578
    $region42: #{bottleneck_forward.3} parent=5 // pred_check_branch
      %581 = sbr.rel (%p579) target = $region44
    $region43: #{bottleneck_forward.3} parent=5 // pred_region
      %s582 = ssub.s32 %s10, 2
      // Predicated region
      $region45: #{bottleneck_forward.3} parent=43 // pred_check
        %p583 = pneg %p128
      $region46: #{bottleneck_forward.3} parent=43 // pred_check_branch
        %585 = sbr.rel (%p583) target = $region48
      $region47: #{bottleneck_forward.3} parent=43 // pred_region
        %s586 = smul.u32 16, %s16
        %p587 = scmp.lt.s32.totalorder %s586, 63
        %s588 = scalar_select %p587, %s586, 63
        %s589 = smul.addr %s588, 4
        %s590 = scalar_lea.vmem %s4, %s589
      $region48: #{bottleneck_forward.3} parent=43 // pred_fallthru
        _
    $region44: #{bottleneck_forward.3} parent=5 // pred_fallthru
      _
  $region6: #{bottleneck_forward.3} parent=0 // loop_footer
    %s14 = sadd.s32 1, %s10
  $region7: #{bottleneck_forward.3} parent=0 // loop_footer_branch
    %9 = sbr.rel target = $region3
  $region8: #{bottleneck_forward.3} parent=0 // loop_exit
    _

// kernel: bottleneck_forward.4
$region0: #{bottleneck_forward.4}
  #allocation0 [shape = 'u32[]', space=smem, size = 0x4, offset = 0x4, fixed_abs, tag = 'smem constant byte address 0x4 - core index']
  #allocation1 [shape = 'u32[144,128]{1,0:T(1,128)}', space=vmem, size = 0x12000, scoped, tag = 'internal scratch']
  #allocation2 [shape = 'f32[256,128]{1,0:T(8,128)}', space=vmem, size = 0x20000, scoped, tag = 'scratch operand']
  %s0 = inlined_call_operand.vmem [shape: bf16[2,18,18,128], index: 0, kind: input, shape index: {}]
  %s1 = inlined_call_operand.vmem [shape: bf16[9,128,128], index: 1, kind: input, shape index: {}]
  %s2 = inlined_call_operand.vmem [shape: f32[1,128], index: 2, kind: input, shape index: {}]
  %s3 = inlined_call_operand.vmem [shape: f32[1,128], index: 3, kind: input, shape index: {}]
  %s4 = inlined_call_operand.vmem [shape: bf16[2,256,128], index: 4, kind: output, shape index: {}]
  %s5 = sld [smem:[#allocation0]]
  $region49: #{bottleneck_forward.4} parent=0
    _
  %s7 = ssub.s32 1, %s5
  %s8 = scalar_select 0, %s7, %s5
  loop: start=0, step=1, limit=4
  $region2: #{bottleneck_forward.4} parent=0 // loop_pre_header
    _
  $region3: #{bottleneck_forward.4} parent=0 // loop_header
    %s10 = sphi 0, %s14
    %p11 = scmp.ge.s32.totalorder %s10, 4
    %s20 = sphi 0, %s22
    %s23 = sphi 0, %s20
    %s24 = sphi 0, %s23
    %s40 = sphi 0, %s24
    %s44 = sphi 0, %s44
    %s46 = sphi 0, %s44
    %s47 = sphi 0, %s46
    %s61 = sphi 0, %s47
    %s65 = sphi 0, %s65
    %s67 = sphi 0, %s65
    %s68 = sphi 0, %s67
    %s82 = sphi 0, %s68
    %s86 = sphi 0, %s86
    %s88 = sphi 0, %s86
    %s89 = sphi 0, %s88
    %s103 = sphi 0, %s89
    %s109 = sphi 0, %s111
    %s112 = sphi 0, %s109
    %s113 = sphi 0, %s112
    %s129 = sphi 0, %s113
  $region4: #{bottleneck_forward.4} parent=0 // loop_header_branch
    %13 = sbr.rel (%p11) target = $region8
  $region5: #{bottleneck_forward.4} parent=0 // loop_body
    %s15 = ssub.s32 %s10, 1
    %s16 = ssub.s32 %s10, 2
    %s17 = sadd.s32 %s10, 1
    %s18 = ssub.s32 %s10, %s17
    %p19 = scmp.eq.s32.totalorder %s18, 0
    %s21 = sadd.s32 %s20, 1
    %s22 = scalar_select %p19, %s20, %s21
    %p25 = pneg %p19
    %p26 = scmp.eq.s32.totalorder %s10, 1
    %p27 = por %p25, %p26
    %p28 = scmp.ne.s32.totalorder %s20, %s23
    %p29 = scmp.eq.s32.totalorder %s10, 0
    %p30 = por %p28, %p29
    %p31 = scmp.ne.s32.totalorder %s20, %s23
    %p32 = scmp.eq.s32.totalorder %s15, 1
    %p33 = por %p31, %p32
    %p34 = scmp.ne.s32.totalorder %s23, %s24
    %p35 = scmp.eq.s32.totalorder %s15, 0
    %p36 = por %p34, %p35
    %p37 = scmp.ne.s32.totalorder %s23, %s24
    %p38 = scmp.eq.s32.totalorder %s16, 1
    %p39 = por %p37, %p38
    %p41 = scmp.ne.s32.totalorder %s24, %s40
    %p42 = scmp.eq.s32.totalorder %s16, 0
    %p43 = por %p41, %p42
    %s45 = sadd.s32 %s44, 1
    %p48 = scmp.eq.s32.totalorder %s10, 1
    %p49 = scmp.ne.s32.totalorder %s44, %s46
    %p50 = scmp.eq.s32.totalorder %s10, 0
    %p51 = por %p49, %p50
    %p52 = scmp.ne.s32.totalorder %s44, %s46
    %p53 = scmp.eq.s32.totalorder %s15, 1
    %p54 = por %p52, %p53
    %p55 = scmp.ne.s32.totalorder %s46, %s47
    %p56 = scmp.eq.s32.totalorder %s15, 0
    %p57 = por %p55, %p56
    %p58 = scmp.ne.s32.totalorder %s46, %s47
    %p59 = scmp.eq.s32.totalorder %s16, 1
    %p60 = por %p58, %p59
    %p62 = scmp.ne.s32.totalorder %s47, %s61
    %p63 = scmp.eq.s32.totalorder %s16, 0
    %p64 = por %p62, %p63
    %s66 = sadd.s32 %s65, 1
    %p69 = scmp.eq.s32.totalorder %s10, 1
    %p70 = scmp.ne.s32.totalorder %s65, %s67
    %p71 = scmp.eq.s32.totalorder %s10, 0
    %p72 = por %p70, %p71
    %p73 = scmp.ne.s32.totalorder %s65, %s67
    %p74 = scmp.eq.s32.totalorder %s15, 1
    %p75 = por %p73, %p74
    %p76 = scmp.ne.s32.totalorder %s67, %s68
    %p77 = scmp.eq.s32.totalorder %s15, 0
    %p78 = por %p76, %p77
    %p79 = scmp.ne.s32.totalorder %s67, %s68
    %p80 = scmp.eq.s32.totalorder %s16, 1
    %p81 = por %p79, %p80
    %p83 = scmp.ne.s32.totalorder %s68, %s82
    %p84 = scmp.eq.s32.totalorder %s16, 0
    %p85 = por %p83, %p84
    %s87 = sadd.s32 %s86, 1
    %p90 = scmp.eq.s32.totalorder %s10, 1
    %p91 = scmp.ne.s32.totalorder %s86, %s88
    %p92 = scmp.eq.s32.totalorder %s10, 0
    %p93 = por %p91, %p92
    %p94 = scmp.ne.s32.totalorder %s86, %s88
    %p95 = scmp.eq.s32.totalorder %s15, 1
    %p96 = por %p94, %p95
    %p97 = scmp.ne.s32.totalorder %s88, %s89
    %p98 = scmp.eq.s32.totalorder %s15, 0
    %p99 = por %p97, %p98
    %p100 = scmp.ne.s32.totalorder %s88, %s89
    %p101 = scmp.eq.s32.totalorder %s16, 1
    %p102 = por %p100, %p101
    %p104 = scmp.ne.s32.totalorder %s89, %s103
    %p105 = scmp.eq.s32.totalorder %s16, 0
    %p106 = por %p104, %p105
    %s107 = ssub.s32 %s10, %s17
    %p108 = scmp.eq.s32.totalorder %s107, 0
    %s110 = sadd.s32 %s109, 1
    %s111 = scalar_select %p108, %s109, %s110
    %p114 = pneg %p108
    %p115 = scmp.eq.s32.totalorder %s10, 1
    %p116 = por %p114, %p115
    %p117 = scmp.ne.s32.totalorder %s109, %s112
    %p118 = scmp.eq.s32.totalorder %s10, 0
    %p119 = por %p117, %p118
    %p120 = scmp.ne.s32.totalorder %s109, %s112
    %p121 = scmp.eq.s32.totalorder %s15, 1
    %p122 = por %p120, %p121
    %p123 = scmp.ne.s32.totalorder %s112, %s113
    %p124 = scmp.eq.s32.totalorder %s15, 0
    %p125 = por %p123, %p124
    %p126 = scmp.ne.s32.totalorder %s112, %s113
    %p127 = scmp.eq.s32.totalorder %s16, 1
    %p128 = por %p126, %p127
    %p130 = scmp.ne.s32.totalorder %s113, %s129
    %p131 = scmp.eq.s32.totalorder %s16, 0
    %p132 = por %p130, %p131
    %p133 = scmp.le.s32.totalorder 1, %s10
    %p134 = scmp.lt.s32.totalorder %s10, 3
    %p135 = pnand %p133, %p134
    %p136 = pneg %p135
    // Predicated region
    $region9: #{bottleneck_forward.4} parent=5 // pred_check
      _
    $region10: #{bottleneck_forward.4} parent=5 // pred_check_branch
      %138 = sbr.rel (%p135) target = $region12
    $region11: #{bottleneck_forward.4} parent=5 // pred_region
      %s139 = ssub.s32 %s10, 1
      // Predicated region
      $region13: #{bottleneck_forward.4} parent=11 // pred_check
        %p140 = pneg %p57
      $region14: #{bottleneck_forward.4} parent=11 // pred_check_branch
        %142 = sbr.rel (%p140) target = $region16
      $region15: #{bottleneck_forward.4} parent=11 // pred_region
        _
      $region16: #{bottleneck_forward.4} parent=11 // pred_fallthru
        _
      // Predicated region
      $region17: #{bottleneck_forward.4} parent=11 // pred_check
        %p143 = pneg %p78
      $region18: #{bottleneck_forward.4} parent=11 // pred_check_branch
        %145 = sbr.rel (%p143) target = $region20
      $region19: #{bottleneck_forward.4} parent=11 // pred_region
        _
      $region20: #{bottleneck_forward.4} parent=11 // pred_fallthru
        _
      // Predicated region
      $region21: #{bottleneck_forward.4} parent=11 // pred_check
        %p146 = pneg %p99
      $region22: #{bottleneck_forward.4} parent=11 // pred_check_branch
        %148 = sbr.rel (%p146) target = $region24
      $region23: #{bottleneck_forward.4} parent=11 // pred_region
        _
      $region24: #{bottleneck_forward.4} parent=11 // pred_fallthru
        _
    $region12: #{bottleneck_forward.4} parent=5 // pred_fallthru
      _
    %p149 = scmp.lt.s32.totalorder %s10, 2
    // Predicated region
    $region25: #{bottleneck_forward.4} parent=5 // pred_check
      %p150 = pneg %p149
    $region26: #{bottleneck_forward.4} parent=5 // pred_check_branch
      %152 = sbr.rel (%p150) target = $region28
    $region27: #{bottleneck_forward.4} parent=5 // pred_region
      // Predicated region
      $region29: #{bottleneck_forward.4} parent=27 // pred_check
        %p153 = pneg %p30
      $region30: #{bottleneck_forward.4} parent=27 // pred_check_branch
        %155 = sbr.rel (%p153) target = $region32
      $region31: #{bottleneck_forward.4} parent=27 // pred_region
        %p156 = scmp.lt.s32.totalorder %s10, 1
        %s157 = scalar_select %p156, %s10, 1
        %s158 = smul.addr %s157, 54
        %s159 = smul.addr %s158, 4
        %s160 = scalar_lea.vmem %s0, %s159
      $region32: #{bottleneck_forward.4} parent=27 // pred_fallthru
        _
    $region28: #{bottleneck_forward.4} parent=5 // pred_fallthru
      _
    %p161 = scmp.le.s32.totalorder 1, %s10
    %p162 = scmp.lt.s32.totalorder %s10, 3
    %p163 = pnand %p161, %p162
    %p164 = pneg %p163
    // Predicated region
    $region33: #{bottleneck_forward.4} parent=5 // pred_check
      _
    $region34: #{bottleneck_forward.4} parent=5 // pred_check_branch
      %166 = sbr.rel (%p163) target = $region36
    $region35: #{bottleneck_forward.4} parent=5 // pred_region
      %s167 = ssub.s32 %s10, 1
      %p168 = scmp.lt.s32.totalorder %s15, 1
      %s169 = scalar_select %p168, %s15, 1
      %s170 = smul.addr %s169, 54
      %s171 = smul.addr %s170, 4
      %s172 = scalar_lea.vmem %s0, %s171
      %p173 = pneg %p36
      %p174 = pneg %p33
      %p175 = pneg %p57
      %p176 = pneg %p54
      %p177 = pneg %p78
      %p178 = pneg %p75
      %p179 = pneg %p99
      %p180 = pneg %p96
      %p181 = pneg %p125
      %p182 = pneg %p122
      %p183 = scmp.lt.s32.totalorder %s15, 1
      %s184 = scalar_select %p183, %s15, 1
      %s185 = smul.addr %s184, 32
      %s186 = smul.addr %s185, 4
      %s187 = scalar_lea.vmem %s4, %s186
      %p188 = scmp.lt.s32.totalorder %s15, 1
      %s189 = scalar_select %p188, %s15, 1
      %s190 = smul.addr %s189, 54
      %s191 = smul.addr %s190, 4
      %s192 = scalar_lea.vmem %s0, %s191
      %p193 = scmp.lt.s32.totalorder %s15, 1
      %s194 = scalar_select %p193, %s15, 1
      %s195 = smul.addr %s194, 32
      %s196 = smul.addr %s195, 4
      %s197 = scalar_lea.vmem %s4, %s196
      %v199 = vld [vmem:[%s192] sm:$0xf]
      %v200 = vld [vmem:[%s192 + $0x4] sm:$0xf]
      %v201 = vld [vmem:[%s192 + $0x8] sm:$0x1]
      %v202 = vld [vmem:[%s192 + $0xc] sm:$0xf]
      %v203 = vld [vmem:[%s192 + $0x10] sm:$0xf]
      %v204 = vld [vmem:[%s192 + $0x14] sm:$0x1]
      %v205 = vld [vmem:[%s192 + $0x18] sm:$0xf]
      %v206 = vld [vmem:[%s192 + $0x1c] sm:$0xf]
      %v207 = vld [vmem:[%s192 + $0x20] sm:$0x1]
      %v208 = vld [vmem:[%s192 + $0x24] sm:$0xf]
      %v209 = vld [vmem:[%s192 + $0x28] sm:$0xf]
      %v210 = vld [vmem:[%s192 + $0x2c] sm:$0x1]
      %v211 = vld [vmem:[%s192 + $0x30] sm:$0xf]
      %v212 = vld [vmem:[%s192 + $0x34] sm:$0xf]
      %v213 = vld [vmem:[%s192 + $0x38] sm:$0x1]
      %v214 = vld [vmem:[%s192 + $0x3c] sm:$0xf]
      %v215 = vld [vmem:[%s192 + $0x40] sm:$0xf]
      %v216 = vld [vmem:[%s192 + $0x44] sm:$0x1]
      %v217 = vld [vmem:[%s192 + $0x48] sm:$0xf]
      %v218 = vld [vmem:[%s192 + $0x4c] sm:$0xf]
      %v219 = vld [vmem:[%s192 + $0x50] sm:$0x1]
      %v220 = vld [vmem:[%s192 + $0x54] sm:$0xf]
      %v221 = vld [vmem:[%s192 + $0x58] sm:$0xf]
      %v222 = vld [vmem:[%s192 + $0x5c] sm:$0x1]
      %v223 = vld [vmem:[%s192 + $0x60] sm:$0xf]
      %v224 = vld [vmem:[%s192 + $0x64] sm:$0xf]
      %v225 = vld [vmem:[%s192 + $0x68] sm:$0x1]
      %v226 = vld [vmem:[%s192 + $0x6c] sm:$0xf]
      %v227 = vld [vmem:[%s192 + $0x70] sm:$0xf]
      %v228 = vld [vmem:[%s192 + $0x74] sm:$0x1]
      %v229 = vld [vmem:[%s192 + $0x78] sm:$0xf]
      %v230 = vld [vmem:[%s192 + $0x7c] sm:$0xf]
      %v231 = vld [vmem:[%s192 + $0x80] sm:$0x1]
      %v232 = vld [vmem:[%s192 + $0x84] sm:$0xf]
      %v233 = vld [vmem:[%s192 + $0x88] sm:$0xf]
      %v234 = vld [vmem:[%s192 + $0x8c] sm:$0x1]
      %v235 = vld [vmem:[%s192 + $0x90] sm:$0xf]
      %v236 = vld [vmem:[%s192 + $0x94] sm:$0xf]
      %v237 = vld [vmem:[%s192 + $0x98] sm:$0x1]
      %v238 = vld [vmem:[%s192 + $0x9c] sm:$0xf]
      %v239 = vld [vmem:[%s192 + $0xa0] sm:$0xf]
      %v240 = vld [vmem:[%s192 + $0xa4] sm:$0x1]
      %v241 = vld [vmem:[%s192 + $0xa8] sm:$0xf]
      %v242 = vld [vmem:[%s192 + $0xac] sm:$0xf]
      %v243 = vld [vmem:[%s192 + $0xb0] sm:$0x1]
      %v244 = vld [vmem:[%s192 + $0xb4] sm:$0xf]
      %v245 = vld [vmem:[%s192 + $0xb8] sm:$0xf]
      %v246 = vld [vmem:[%s192 + $0xbc] sm:$0x1]
      %v247 = vld [vmem:[%s192 + $0xc0] sm:$0xf]
      %v248 = vld [vmem:[%s192 + $0xc4] sm:$0xf]
      %v249 = vld [vmem:[%s192 + $0xc8] sm:$0x1]
      %v250 = vld [vmem:[%s192 + $0xcc] sm:$0xf]
      %v251 = vld [vmem:[%s192 + $0xd0] sm:$0xf]
      %v252 = vld [vmem:[%s192 + $0xd4] sm:$0x1]
      %v253 = vld [vmem:[%s1] sm:$0xf]
      %v254 = vld [vmem:[%s1 + $0x4] sm:$0xf]
      %v255 = vld [vmem:[%s1 + $0x8] sm:$0xf]
      %v256 = vld [vmem:[%s1 + $0xc] sm:$0xf]
      %v257 = vld [vmem:[%s1 + $0x10] sm:$0xf]
      %v258 = vld [vmem:[%s1 + $0x14] sm:$0xf]
      %v259 = vld [vmem:[%s1 + $0x18] sm:$0xf]
      %v260 = vld [vmem:[%s1 + $0x1c] sm:$0xf]
      %v261 = vld [vmem:[%s1 + $0x20] sm:$0xf]
      %v262 = vld [vmem:[%s1 + $0x24] sm:$0xf]
      %v263 = vld [vmem:[%s1 + $0x28] sm:$0xf]
      %v264 = vld [vmem:[%s1 + $0x2c] sm:$0xf]
      %v265 = vld [vmem:[%s1 + $0x30] sm:$0xf]
      %v266 = vld [vmem:[%s1 + $0x34] sm:$0xf]
      %v267 = vld [vmem:[%s1 + $0x38] sm:$0xf]
      %v268 = vld [vmem:[%s1 + $0x3c] sm:$0xf]
      %v301 = vunpack.c.l.b16 %v199
      %v302 = vunpack.c.l.b16 %v200
      %v303 = vunpack.c.l.b16 %v202
      %v304 = vunpack.c.l.b16 %v203
      %v305 = vunpack.c.l.b16 %v205
      %v306 = vunpack.c.l.b16 %v206
      %v307 = vunpack.c.l.b16 %v208
      %v308 = vunpack.c.l.b16 %v209
      %v309 = vunpack.c.l.b16 %v211
      %v310 = vunpack.c.l.b16 %v212
      %v311 = vunpack.c.l.b16 %v214
      %v312 = vunpack.c.l.b16 %v215
      %v313 = vunpack.c.l.b16 %v217
      %v314 = vunpack.c.l.b16 %v218
      %v315 = vunpack.c.l.b16 %v220
      %v316 = vunpack.c.l.b16 %v221
      %v317 = vunpack.c.l.b16 %v223
      %v318 = vunpack.c.l.b16 %v224
      %v319 = vunpack.c.l.b16 %v226
      %v320 = vunpack.c.l.b16 %v227
      %v321 = vunpack.c.l.b16 %v229
      %v322 = vunpack.c.l.b16 %v230
      %v323 = vunpack.c.l.b16 %v232
      %v324 = vunpack.c.l.b16 %v233
      %v325 = vunpack.c.l.b16 %v235
      %v326 = vunpack.c.l.b16 %v236
      %v327 = vunpack.c.l.b16 %v238
      %v328 = vunpack.c.l.b16 %v239
      %v329 = vunpack.c.l.b16 %v241
      %v330 = vunpack.c.l.b16 %v242
      %v331 = vunpack.c.l.b16 %v244
      %v332 = vunpack.c.l.b16 %v245
      %v333 = vpack.c.b16 %v302, %v301
      %v334 = vpack.c.b16 %v304, %v303
      %v335 = vpack.c.b16 %v306, %v305
      %v336 = vpack.c.b16 %v308, %v307
      %v337 = vpack.c.b16 %v310, %v309
      %v338 = vpack.c.b16 %v312, %v311
      %v339 = vpack.c.b16 %v314, %v313
      %v340 = vpack.c.b16 %v316, %v315
      %v341 = vpack.c.b16 %v318, %v317
      %v342 = vpack.c.b16 %v320, %v319
      %v343 = vpack.c.b16 %v322, %v321
      %v344 = vpack.c.b16 %v324, %v323
      %v345 = vpack.c.b16 %v326, %v325
      %v346 = vpack.c.b16 %v328, %v327
      %v347 = vpack.c.b16 %v330, %v329
      %v348 = vpack.c.b16 %v332, %v331
      %v381 = vunpack.c.l.b16 %v253
      %v382 = vunpack.c.l.b16 %v254
      %v383 = vunpack.c.l.b16 %v255
      %v384 = vunpack.c.l.b16 %v256
      %v385 = vunpack.c.l.b16 %v257
      %v386 = vunpack.c.l.b16 %v258
      %v387 = vunpack.c.l.b16 %v259
      %v388 = vunpack.c.l.b16 %v260
      %v389 = vunpack.c.l.b16 %v261
      %v390 = vunpack.c.l.b16 %v262
      %v391 = vunpack.c.l.b16 %v263
      %v392 = vunpack.c.l.b16 %v264
      %v393 = vunpack.c.l.b16 %v265
      %v394 = vunpack.c.l.b16 %v266
      %v395 = vunpack.c.l.b16 %v267
      %v396 = vunpack.c.l.b16 %v268
      %v397 = vpack.c.b16 %v382, %v381
      %v398 = vpack.c.b16 %v384, %v383
      %v399 = vpack.c.b16 %v386, %v385
      %v400 = vpack.c.b16 %v388, %v387
      %v401 = vpack.c.b16 %v390, %v389
      %v402 = vpack.c.b16 %v392, %v391
      %v403 = vpack.c.b16 %v394, %v393
      %v404 = vpack.c.b16 %v396, %v395
      %413 = vmatprep.subr.bf16.mxu0 0
      %414 = vmatpush1.bf16.msra.mxu0 %v404
      %415 = vmatprep.subr.bf16.mxu0 0
      %416 = vmatpush1.bf16.msra.mxu0 %v403
      %417 = vmatprep.subr.bf16.mxu0 0
      %418 = vmatpush1.bf16.msra.mxu0 %v402
      %419 = vmatprep.subr.bf16.mxu0 0
      %420 = vmatpush1.bf16.msra.mxu0 %v401
      %421 = vmatprep.subr.bf16.mxu0 0
      %422 = vmatpush1.bf16.msra.mxu0 %v400
      %423 = vmatprep.subr.bf16.mxu0 0
      %424 = vmatpush1.bf16.msra.mxu0 %v399
      %425 = vmatprep.subr.bf16.mxu0 0
      %426 = vmatpush1.bf16.msra.mxu0 %v398
      %427 = vmatprep.subr.bf16.mxu0 0
      %428 = vmatpush1.bf16.msra.mxu0 %v397
      %429 = vmatprep.subr.bf16.mxu0 0
      %430 = vmatpush2.bf16.msra.mxu0 0
      %431 = vmatprep.subr.bf16.mxu0 0
      %432 = vmatpush2.bf16.msra.mxu0 0
      %433 = vmatprep.subr.bf16.mxu0 0
      %434 = vmatpush2.bf16.msra.mxu0 0
      %435 = vmatprep.subr.bf16.mxu0 0
      %436 = vmatpush2.bf16.msra.mxu0 0
      %437 = vmatprep.subr.bf16.mxu0 0
      %438 = vmatpush2.bf16.msra.mxu0 0
      %439 = vmatprep.subr.bf16.mxu0 0
      %440 = vmatpush2.bf16.msra.mxu0 0
      %441 = vmatprep.subr.bf16.mxu0 0
      %442 = vmatpush2.bf16.msra.mxu0 0
      %443 = vmatprep.subr.bf16.mxu0 0
      %444 = vmatpush2.bf16.msra.mxu0 0
      %445 = vmatprep.mubr.bf16.mxu0 0
      %446 = vmatmul.mubr.bf16.gmra.mxu0 %v333
      %v447 = vpop.f32.mrf.mxu0
      %v448 = vadd.f32 0.0, %v447
      %v449 = vpop.f32.mrf.mxu0
      %v450 = vpop.f32.mrf.mxu0
      %v451 = vadd.f32 0.0, %v450
      %v452 = vpop.f32.mrf.mxu0
      %453 = vmatprep.mubr.bf16.mxu0 0
      %454 = vmatmul.mubr.bf16.gmra.mxu0 %v334
      %v455 = vpop.f32.mrf.mxu0
      %v456 = vadd.f32 0.0, %v455
      %v457 = vpop.f32.mrf.mxu0
      %v458 = vpop.f32.mrf.mxu0
      %v459 = vadd.f32 0.0, %v458
      %v460 = vpop.f32.mrf.mxu0
      %461 = vmatprep.mubr.bf16.mxu0 0
      %462 = vmatmul.mubr.bf16.gmra.mxu0 %v335
      %v463 = vpop.f32.mrf.mxu0
      %v464 = vadd.f32 0.0, %v463
      %v465 = vpop.f32.mrf.mxu0
      %v466 = vpop.f32.mrf.mxu0
      %v467 = vadd.f32 0.0, %v466
      %v468 = vpop.f32.mrf.mxu0
      %469 = vmatprep.mubr.bf16.mxu0 0
      %470 = vmatmul.mubr.bf16.gmra.mxu0 %v336
      %v471 = vpop.f32.mrf.mxu0
      %v472 = vadd.f32 0.0, %v471
      %v473 = vpop.f32.mrf.mxu0
      %v474 = vpop.f32.mrf.mxu0
      %v475 = vadd.f32 0.0, %v474
      %v476 = vpop.f32.mrf.mxu0
      %477 = vmatprep.mubr.bf16.mxu0 0
      %478 = vmatmul.mubr.bf16.gmra.mxu0 %v337
      %v479 = vpop.f32.mrf.mxu0
      %v480 = vadd.f32 0.0, %v479
      %v481 = vpop.f32.mrf.mxu0
      %v482 = vpop.f32.mrf.mxu0
      %v483 = vadd.f32 0.0, %v482
      %v484 = vpop.f32.mrf.mxu0
      %485 = vmatprep.mubr.bf16.mxu0 0
      %486 = vmatmul.mubr.bf16.gmra.mxu0 %v338
      %v487 = vpop.f32.mrf.mxu0
      %v488 = vadd.f32 0.0, %v487
      %v489 = vpop.f32.mrf.mxu0
      %v490 = vpop.f32.mrf.mxu0
      %v491 = vadd.f32 0.0, %v490
      %v492 = vpop.f32.mrf.mxu0
      %493 = vmatprep.mubr.bf16.mxu0 0
      %494 = vmatmul.mubr.bf16.gmra.mxu0 %v339
      %v495 = vpop.f32.mrf.mxu0
      %v496 = vadd.f32 0.0, %v495
      %v497 = vpop.f32.mrf.mxu0
      %v498 = vpop.f32.mrf.mxu0
      %v499 = vadd.f32 0.0, %v498
      %v500 = vpop.f32.mrf.mxu0
      %501 = vmatprep.mubr.bf16.mxu0 0
      %502 = vmatmul.mubr.bf16.gmra.mxu0 %v340
      %v503 = vpop.f32.mrf.mxu0
      %v504 = vadd.f32 0.0, %v503
      %v505 = vpop.f32.mrf.mxu0
      %v506 = vpop.f32.mrf.mxu0
      %v507 = vadd.f32 0.0, %v506
      %v508 = vpop.f32.mrf.mxu0
      %509 = vmatprep.mubr.bf16.mxu0 0
      %510 = vmatmul.mubr.bf16.gmra.mxu0 %v341
      %v511 = vpop.f32.mrf.mxu0
      %v512 = vadd.f32 0.0, %v511
      %v513 = vpop.f32.mrf.mxu0
      %v514 = vpop.f32.mrf.mxu0
      %v515 = vadd.f32 0.0, %v514
      %v516 = vpop.f32.mrf.mxu0
      %517 = vmatprep.mubr.bf16.mxu0 0
      %518 = vmatmul.mubr.bf16.gmra.mxu0 %v342
      %v519 = vpop.f32.mrf.mxu0
      %v520 = vadd.f32 0.0, %v519
      %v521 = vpop.f32.mrf.mxu0
      %v522 = vpop.f32.mrf.mxu0
      %v523 = vadd.f32 0.0, %v522
      %v524 = vpop.f32.mrf.mxu0
      %525 = vmatprep.mubr.bf16.mxu0 0
      %526 = vmatmul.mubr.bf16.gmra.mxu0 %v343
      %v527 = vpop.f32.mrf.mxu0
      %v528 = vadd.f32 0.0, %v527
      %v529 = vpop.f32.mrf.mxu0
      %v530 = vpop.f32.mrf.mxu0
      %v531 = vadd.f32 0.0, %v530
      %v532 = vpop.f32.mrf.mxu0
      %533 = vmatprep.mubr.bf16.mxu0 0
      %534 = vmatmul.mubr.bf16.gmra.mxu0 %v344
      %v535 = vpop.f32.mrf.mxu0
      %v536 = vadd.f32 0.0, %v535
      %v537 = vpop.f32.mrf.mxu0
      %v538 = vpop.f32.mrf.mxu0
      %v539 = vadd.f32 0.0, %v538
      %v540 = vpop.f32.mrf.mxu0
      %541 = vmatprep.mubr.bf16.mxu0 0
      %542 = vmatmul.mubr.bf16.gmra.mxu0 %v345
      %v543 = vpop.f32.mrf.mxu0
      %v544 = vadd.f32 0.0, %v543
      %v545 = vpop.f32.mrf.mxu0
      %v546 = vpop.f32.mrf.mxu0
      %v547 = vadd.f32 0.0, %v546
      %v548 = vpop.f32.mrf.mxu0
      %549 = vmatprep.mubr.bf16.mxu0 0
      %550 = vmatmul.mubr.bf16.gmra.mxu0 %v346
      %v551 = vpop.f32.mrf.mxu0
      %v552 = vadd.f32 0.0, %v551
      %v553 = vpop.f32.mrf.mxu0
      %v554 = vpop.f32.mrf.mxu0
      %v555 = vadd.f32 0.0, %v554
      %v556 = vpop.f32.mrf.mxu0
      %557 = vmatprep.mubr.bf16.mxu0 0
      %558 = vmatmul.mubr.bf16.gmra.mxu0 %v347
      %v559 = vpop.f32.mrf.mxu0
      %v560 = vadd.f32 0.0, %v559
      %v561 = vpop.f32.mrf.mxu0
      %v562 = vpop.f32.mrf.mxu0
      %v563 = vadd.f32 0.0, %v562
      %v564 = vpop.f32.mrf.mxu0
      %565 = vmatprep.mubr.bf16.mxu0 0
      %566 = vmatmul.mubr.bf16.gmra.mxu0 %v348
      %v567 = vpop.f32.mrf.mxu0
      %v568 = vadd.f32 0.0, %v567
      %v569 = vpop.f32.mrf.mxu0
      %v570 = vpop.f32.mrf.mxu0
      %v571 = vadd.f32 0.0, %v570
      %v572 = vpop.f32.mrf.mxu0
      %573 = vdwg.mxu0
      %574 = vst [vmem:[#allocation2] sm:$0xff] %v448
      %575 = vst [vmem:[#allocation2 + $0x8] sm:$0xff] %v451
      %576 = vst [vmem:[#allocation2 + $0x10] sm:$0xff] %v456
      %577 = vst [vmem:[#allocation2 + $0x18] sm:$0xff] %v459
      %578 = vst [vmem:[#allocation2 + $0x20] sm:$0xff] %v464
      %579 = vst [vmem:[#allocation2 + $0x28] sm:$0xff] %v467
      %580 = vst [vmem:[#allocation2 + $0x30] sm:$0xff] %v472
      %581 = vst [vmem:[#allocation2 + $0x38] sm:$0xff] %v475
      %582 = vst [vmem:[#allocation2 + $0x40] sm:$0xff] %v480
      %583 = vst [vmem:[#allocation2 + $0x48] sm:$0xff] %v483
      %584 = vst [vmem:[#allocation2 + $0x50] sm:$0xff] %v488
      %585 = vst [vmem:[#allocation2 + $0x58] sm:$0xff] %v491
      %586 = vst [vmem:[#allocation2 + $0x60] sm:$0xff] %v496
      %587 = vst [vmem:[#allocation2 + $0x68] sm:$0xff] %v499
      %588 = vst [vmem:[#allocation2 + $0x70] sm:$0xff] %v504
      %589 = vst [vmem:[#allocation2 + $0x78] sm:$0xff] %v507
      %590 = vst [vmem:[#allocation2 + $0x80] sm:$0xff] %v512
      %591 = vst [vmem:[#allocation2 + $0x88] sm:$0xff] %v515
      %592 = vst [vmem:[#allocation2 + $0x90] sm:$0xff] %v520
      %593 = vst [vmem:[#allocation2 + $0x98] sm:$0xff] %v523
      %594 = vst [vmem:[#allocation2 + $0xa0] sm:$0xff] %v528
      %595 = vst [vmem:[#allocation2 + $0xa8] sm:$0xff] %v531
      %596 = vst [vmem:[#allocation2 + $0xb0] sm:$0xff] %v536
      %597 = vst [vmem:[#allocation2 + $0xb8] sm:$0xff] %v539
      %598 = vst [vmem:[#allocation2 + $0xc0] sm:$0xff] %v544
      %599 = vst [vmem:[#allocation2 + $0xc8] sm:$0xff] %v547
      %600 = vst [vmem:[#allocation2 + $0xd0] sm:$0xff] %v552
      %601 = vst [vmem:[#allocation2 + $0xd8] sm:$0xff] %v555
      %602 = vst [vmem:[#allocation2 + $0xe0] sm:$0xff] %v560
      %603 = vst [vmem:[#allocation2 + $0xe8] sm:$0xff] %v563
      %604 = vst [vmem:[#allocation2 + $0xf0] sm:$0xff] %v568
      %605 = vst [vmem:[#allocation2 + $0xf8] sm:$0xff] %v571
      %s606 = scalar_lea.vmem %s1, 192
      %v607 = vld [vmem:[%s606] sm:$0xf]
      %v608 = vld [vmem:[%s606 + $0x4] sm:$0xf]
      %v609 = vld [vmem:[%s606 + $0x8] sm:$0xf]
      %v610 = vld [vmem:[%s606 + $0xc] sm:$0xf]
      %v611 = vld [vmem:[%s606 + $0x10] sm:$0xf]
      %v612 = vld [vmem:[%s606 + $0x14] sm:$0xf]
      %v613 = vld [vmem:[%s606 + $0x18] sm:$0xf]
      %v614 = vld [vmem:[%s606 + $0x1c] sm:$0xf]
      %v615 = vld [vmem:[%s606 + $0x20] sm:$0xf]
      %v616 = vld [vmem:[%s606 + $0x24] sm:$0xf]
      %v617 = vld [vmem:[%s606 + $0x28] sm:$0xf]
      %v618 = vld [vmem:[%s606 + $0x2c] sm:$0xf]
      %v619 = vld [vmem:[%s606 + $0x30] sm:$0xf]
      %v620 = vld [vmem:[%s606 + $0x34] sm:$0xf]
      %v621 = vld [vmem:[%s606 + $0x38] sm:$0xf]
      %v622 = vld [vmem:[%s606 + $0x3c] sm:$0xf]
      %v625 = vunpack.c.l.b16 %v247
      %v626 = vunpack.c.l.b16 %v248
      %v627 = vpack.c.b16 %v626, %v625
      %v645 = vunpack.c.l.b16 %v607
      %v646 = vunpack.c.l.b16 %v608
      %v647 = vunpack.c.l.b16 %v609
      %v648 = vunpack.c.l.b16 %v610
      %v649 = vunpack.c.l.b16 %v611
      %v650 = vunpack.c.l.b16 %v612
      %v651 = vunpack.c.l.b16 %v613
      %v652 = vunpack.c.l.b16 %v614
      %v653 = vunpack.c.l.b16 %v615
      %v654 = vunpack.c.l.b16 %v616
      %v655 = vunpack.c.l.b16 %v617
      %v656 = vunpack.c.l.b16 %v618
      %v657 = vunpack.c.l.b16 %v619
      %v658 = vunpack.c.l.b16 %v620
      %v659 = vunpack.c.l.b16 %v621
      %v660 = vunpack.c.l.b16 %v622
      %v661 = vpack.c.b16 %v646, %v645
      %v662 = vpack.c.b16 %v648, %v647
      %v663 = vpack.c.b16 %v650, %v649
      %v664 = vpack.c.b16 %v652, %v651
      %v665 = vpack.c.b16 %v654, %v653
      %v666 = vpack.c.b16 %v656, %v655
      %v667 = vpack.c.b16 %v658, %v657
      %v668 = vpack.c.b16 %v660, %v659
      %677 = vmatprep.subr.bf16.mxu0 0
      %678 = vmatpush1.bf16.msra.mxu0 %v668
      %679 = vmatprep.subr.bf16.mxu0 0
      %680 = vmatpush1.bf16.msra.mxu0 %v667
      %681 = vmatprep.subr.bf16.mxu0 0
      %682 = vmatpush1.bf16.msra.mxu0 %v666
      %683 = vmatprep.subr.bf16.mxu0 0
      %684 = vmatpush1.bf16.msra.mxu0 %v665
      %685 = vmatprep.subr.bf16.mxu0 0
      %686 = vmatpush1.bf16.msra.mxu0 %v664
      %687 = vmatprep.subr.bf16.mxu0 0
      %688 = vmatpush1.bf16.msra.mxu0 %v663
      %689 = vmatprep.subr.bf16.mxu0 0
      %690 = vmatpush1.bf16.msra.mxu0 %v662
      %691 = vmatprep.subr.bf16.mxu0 0
      %692 = vmatpush1.bf16.msra.mxu0 %v661
      %693 = vmatprep.subr.bf16.mxu0 0
      %694 = vmatpush2.bf16.msra.mxu0 0
      %695 = vmatprep.subr.bf16.mxu0 0
      %696 = vmatpush2.bf16.msra.mxu0 0
      %697 = vmatprep.subr.bf16.mxu0 0
      %698 = vmatpush2.bf16.msra.mxu0 0
      %699 = vmatprep.subr.bf16.mxu0 0
      %700 = vmatpush2.bf16.msra.mxu0 0
      %701 = vmatprep.subr.bf16.mxu0 0
      %702 = vmatpush2.bf16.msra.mxu0 0
      %703 = vmatprep.subr.bf16.mxu0 0
      %704 = vmatpush2.bf16.msra.mxu0 0
      %705 = vmatprep.subr.bf16.mxu0 0
      %706 = vmatpush2.bf16.msra.mxu0 0
      %707 = vmatprep.subr.bf16.mxu0 0
      %708 = vmatpush2.bf16.msra.mxu0 0
      %709 = vmatprep.mubr.bf16.mxu0 0
      %710 = vmatmul.mubr.bf16.gmra.mxu0 %v334
      %v711 = vpop.f32.mrf.mxu0
      %v712 = vadd.f32 0.0, %v711
      %v713 = vpop.f32.mrf.mxu0
      %v714 = vpop.f32.mrf.mxu0
      %v715 = vadd.f32 0.0, %v714
      %v716 = vpop.f32.mrf.mxu0
      %717 = vmatprep.mubr.bf16.mxu0 0
      %718 = vmatmul.mubr.bf16.gmra.mxu0 %v335
      %v719 = vpop.f32.mrf.mxu0
      %v720 = vadd.f32 0.0, %v719
      %v721 = vpop.f32.mrf.mxu0
      %v722 = vpop.f32.mrf.mxu0
      %v723 = vadd.f32 0.0, %v722
      %v724 = vpop.f32.mrf.mxu0
      %725 = vmatprep.mubr.bf16.mxu0 0
      %726 = vmatmul.mubr.bf16.gmra.mxu0 %v336
      %v727 = vpop.f32.mrf.mxu0
      %v728 = vadd.f32 0.0, %v727
      %v729 = vpop.f32.mrf.mxu0
      %v730 = vpop.f32.mrf.mxu0
      %v731 = vadd.f32 0.0, %v730
      %v732 = vpop.f32.mrf.mxu0
      %733 = vmatprep.mubr.bf16.mxu0 0
      %734 = vmatmul.mubr.bf16.gmra.mxu0 %v337
      %v735 = vpop.f32.mrf.mxu0
      %v736 = vadd.f32 0.0, %v735
      %v737 = vpop.f32.mrf.mxu0
      %v738 = vpop.f32.mrf.mxu0
      %v739 = vadd.f32 0.0, %v738
      %v740 = vpop.f32.mrf.mxu0
      %741 = vmatprep.mubr.bf16.mxu0 0
      %742 = vmatmul.mubr.bf16.gmra.mxu0 %v338
      %v743 = vpop.f32.mrf.mxu0
      %v744 = vadd.f32 0.0, %v743
      %v745 = vpop.f32.mrf.mxu0
      %v746 = vpop.f32.mrf.mxu0
      %v747 = vadd.f32 0.0, %v746
      %v748 = vpop.f32.mrf.mxu0
      %749 = vmatprep.mubr.bf16.mxu0 0
      %750 = vmatmul.mubr.bf16.gmra.mxu0 %v339
      %v751 = vpop.f32.mrf.mxu0
      %v752 = vadd.f32 0.0, %v751
      %v753 = vpop.f32.mrf.mxu0
      %v754 = vpop.f32.mrf.mxu0
      %v755 = vadd.f32 0.0, %v754
      %v756 = vpop.f32.mrf.mxu0
      %757 = vmatprep.mubr.bf16.mxu0 0
      %758 = vmatmul.mubr.bf16.gmra.mxu0 %v340
      %v759 = vpop.f32.mrf.mxu0
      %v760 = vadd.f32 0.0, %v759
      %v761 = vpop.f32.mrf.mxu0
      %v762 = vpop.f32.mrf.mxu0
      %v763 = vadd.f32 0.0, %v762
      %v764 = vpop.f32.mrf.mxu0
      %765 = vmatprep.mubr.bf16.mxu0 0
      %766 = vmatmul.mubr.bf16.gmra.mxu0 %v341
      %v767 = vpop.f32.mrf.mxu0
      %v768 = vadd.f32 0.0, %v767
      %v769 = vpop.f32.mrf.mxu0
      %v770 = vpop.f32.mrf.mxu0
      %v771 = vadd.f32 0.0, %v770
      %v772 = vpop.f32.mrf.mxu0
      %773 = vmatprep.mubr.bf16.mxu0 0
      %774 = vmatmul.mubr.bf16.gmra.mxu0 %v342
      %v775 = vpop.f32.mrf.mxu0
      %v776 = vadd.f32 0.0, %v775
      %v777 = vpop.f32.mrf.mxu0
      %v778 = vpop.f32.mrf.mxu0
      %v779 = vadd.f32 0.0, %v778
      %v780 = vpop.f32.mrf.mxu0
      %781 = vmatprep.mubr.bf16.mxu0 0
      %782 = vmatmul.mubr.bf16.gmra.mxu0 %v343
      %v783 = vpop.f32.mrf.mxu0
      %v784 = vadd.f32 0.0, %v783
      %v785 = vpop.f32.mrf.mxu0
      %v786 = vpop.f32.mrf.mxu0
      %v787 = vadd.f32 0.0, %v786
      %v788 = vpop.f32.mrf.mxu0
      %789 = vmatprep.mubr.bf16.mxu0 0
      %790 = vmatmul.mubr.bf16.gmra.mxu0 %v344
      %v791 = vpop.f32.mrf.mxu0
      %v792 = vadd.f32 0.0, %v791
      %v793 = vpop.f32.mrf.mxu0
      %v794 = vpop.f32.mrf.mxu0
      %v795 = vadd.f32 0.0, %v794
      %v796 = vpop.f32.mrf.mxu0
      %797 = vmatprep.mubr.bf16.mxu0 0
      %798 = vmatmul.mubr.bf16.gmra.mxu0 %v345
      %v799 = vpop.f32.mrf.mxu0
      %v800 = vadd.f32 0.0, %v799
      %v801 = vpop.f32.mrf.mxu0
      %v802 = vpop.f32.mrf.mxu0
      %v803 = vadd.f32 0.0, %v802
      %v804 = vpop.f32.mrf.mxu0
      %805 = vmatprep.mubr.bf16.mxu0 0
      %806 = vmatmul.mubr.bf16.gmra.mxu0 %v346
      %v807 = vpop.f32.mrf.mxu0
      %v808 = vadd.f32 0.0, %v807
      %v809 = vpop.f32.mrf.mxu0
      %v810 = vpop.f32.mrf.mxu0
      %v811 = vadd.f32 0.0, %v810
      %v812 = vpop.f32.mrf.mxu0
      %813 = vmatprep.mubr.bf16.mxu0 0
      %814 = vmatmul.mubr.bf16.gmra.mxu0 %v347
      %v815 = vpop.f32.mrf.mxu0
      %v816 = vadd.f32 0.0, %v815
      %v817 = vpop.f32.mrf.mxu0
      %v818 = vpop.f32.mrf.mxu0
      %v819 = vadd.f32 0.0, %v818
      %v820 = vpop.f32.mrf.mxu0
      %821 = vmatprep.mubr.bf16.mxu0 0
      %822 = vmatmul.mubr.bf16.gmra.mxu0 %v348
      %v823 = vpop.f32.mrf.mxu0
      %v824 = vadd.f32 0.0, %v823
      %v825 = vpop.f32.mrf.mxu0
      %v826 = vpop.f32.mrf.mxu0
      %v827 = vadd.f32 0.0, %v826
      %v828 = vpop.f32.mrf.mxu0
      %829 = vmatprep.mubr.bf16.mxu0 0
      %830 = vmatmul.mubr.bf16.gmra.mxu0 %v627
      %v831 = vpop.f32.mrf.mxu0
      %v832 = vadd.f32 0.0, %v831
      %v833 = vpop.f32.mrf.mxu0
      %v834 = vpop.f32.mrf.mxu0
      %v835 = vadd.f32 0.0, %v834
      %v836 = vpop.f32.mrf.mxu0
      %837 = vdwg.mxu0
      %v838 = vld [vmem:[#allocation2] sm:$0xff]
      %v839 = vld [vmem:[#allocation2 + $0x8] sm:$0xff]
      %v840 = vld [vmem:[#allocation2 + $0x10] sm:$0xff]
      %v841 = vld [vmem:[#allocation2 + $0x18] sm:$0xff]
      %v842 = vld [vmem:[#allocation2 + $0x20] sm:$0xff]
      %v843 = vld [vmem:[#allocation2 + $0x28] sm:$0xff]
      %v844 = vld [vmem:[#allocation2 + $0x30] sm:$0xff]
      %v845 = vld [vmem:[#allocation2 + $0x38] sm:$0xff]
      %v846 = vld [vmem:[#allocation2 + $0x40] sm:$0xff]
      %v847 = vld [vmem:[#allocation2 + $0x48] sm:$0xff]
      %v848 = vld [vmem:[#allocation2 + $0x50] sm:$0xff]
      %v849 = vld [vmem:[#allocation2 + $0x58] sm:$0xff]
      %v850 = vld [vmem:[#allocation2 + $0x60] sm:$0xff]
      %v851 = vld [vmem:[#allocation2 + $0x68] sm:$0xff]
      %v852 = vld [vmem:[#allocation2 + $0x70] sm:$0xff]
      %v853 = vld [vmem:[#allocation2 + $0x78] sm:$0xff]
      %v854 = vld [vmem:[#allocation2 + $0x80] sm:$0xff]
      %v855 = vld [vmem:[#allocation2 + $0x88] sm:$0xff]
      %v856 = vld [vmem:[#allocation2 + $0x90] sm:$0xff]
      %v857 = vld [vmem:[#allocation2 + $0x98] sm:$0xff]
      %v858 = vld [vmem:[#allocation2 + $0xa0] sm:$0xff]
      %v859 = vld [vmem:[#allocation2 + $0xa8] sm:$0xff]
      %v860 = vld [vmem:[#allocation2 + $0xb0] sm:$0xff]
      %v861 = vld [vmem:[#allocation2 + $0xb8] sm:$0xff]
      %v862 = vld [vmem:[#allocation2 + $0xc0] sm:$0xff]
      %v863 = vld [vmem:[#allocation2 + $0xc8] sm:$0xff]
      %v864 = vld [vmem:[#allocation2 + $0xd0] sm:$0xff]
      %v865 = vld [vmem:[#allocation2 + $0xd8] sm:$0xff]
      %v866 = vld [vmem:[#allocation2 + $0xe0] sm:$0xff]
      %v867 = vld [vmem:[#allocation2 + $0xe8] sm:$0xff]
      %v868 = vld [vmem:[#allocation2 + $0xf0] sm:$0xff]
      %v869 = vld [vmem:[#allocation2 + $0xf8] sm:$0xff]
      %v870 = vadd.f32 %v838, %v712
      %v871 = vadd.f32 %v839, %v715
      %v872 = vadd.f32 %v840, %v720
      %v873 = vadd.f32 %v841, %v723
      %v874 = vadd.f32 %v842, %v728
      %v875 = vadd.f32 %v843, %v731
      %v876 = vadd.f32 %v844, %v736
      %v877 = vadd.f32 %v845, %v739
      %v878 = vadd.f32 %v846, %v744
      %v879 = vadd.f32 %v847, %v747
      %v880 = vadd.f32 %v848, %v752
      %v881 = vadd.f32 %v849, %v755
      %v882 = vadd.f32 %v850, %v760
      %v883 = vadd.f32 %v851, %v763
      %v884 = vadd.f32 %v852, %v768
      %v885 = vadd.f32 %v853, %v771
      %v886 = vadd.f32 %v854, %v776
      %v887 = vadd.f32 %v855, %v779
      %v888 = vadd.f32 %v856, %v784
      %v889 = vadd.f32 %v857, %v787
      %v890 = vadd.f32 %v858, %v792
      %v891 = vadd.f32 %v859, %v795
      %v892 = vadd.f32 %v860, %v800
      %v893 = vadd.f32 %v861, %v803
      %v894 = vadd.f32 %v862, %v808
      %v895 = vadd.f32 %v863, %v811
      %v896 = vadd.f32 %v864, %v816
      %v897 = vadd.f32 %v865, %v819
      %v898 = vadd.f32 %v866, %v824
      %v899 = vadd.f32 %v867, %v827
      %v900 = vadd.f32 %v868, %v832
      %v901 = vadd.f32 %v869, %v835
      %902 = vst [vmem:[#allocation2] sm:$0xff] %v870
      %903 = vst [vmem:[#allocation2 + $0x8] sm:$0xff] %v871
      %904 = vst [vmem:[#allocation2 + $0x10] sm:$0xff] %v872
      %905 = vst [vmem:[#allocation2 + $0x18] sm:$0xff] %v873
      %906 = vst [vmem:[#allocation2 + $0x20] sm:$0xff] %v874
      %907 = vst [vmem:[#allocation2 + $0x28] sm:$0xff] %v875
      %908 = vst [vmem:[#allocation2 + $0x30] sm:$0xff] %v876
      %909 = vst [vmem:[#allocation2 + $0x38] sm:$0xff] %v877
      %910 = vst [vmem:[#allocation2 + $0x40] sm:$0xff] %v878
      %911 = vst [vmem:[#allocation2 + $0x48] sm:$0xff] %v879
      %912 = vst [vmem:[#allocation2 + $0x50] sm:$0xff] %v880
      %913 = vst [vmem:[#allocation2 + $0x58] sm:$0xff] %v881
      %914 = vst [vmem:[#allocation2 + $0x60] sm:$0xff] %v882
      %915 = vst [vmem:[#allocation2 + $0x68] sm:$0xff] %v883
      %916 = vst [vmem:[#allocation2 + $0x70] sm:$0xff] %v884
      %917 = vst [vmem:[#allocation2 + $0x78] sm:$0xff] %v885
      %918 = vst [vmem:[#allocation2 + $0x80] sm:$0xff] %v886
      %919 = vst [vmem:[#allocation2 + $0x88] sm:$0xff] %v887
      %920 = vst [vmem:[#allocation2 + $0x90] sm:$0xff] %v888
      %921 = vst [vmem:[#allocation2 + $0x98] sm:$0xff] %v889
      %922 = vst [vmem:[#allocation2 + $0xa0] sm:$0xff] %v890
      %923 = vst [vmem:[#allocation2 + $0xa8] sm:$0xff] %v891
      %924 = vst [vmem:[#allocation2 + $0xb0] sm:$0xff] %v892
      %925 = vst [vmem:[#allocation2 + $0xb8] sm:$0xff] %v893
      %926 = vst [vmem:[#allocation2 + $0xc0] sm:$0xff] %v894
      %927 = vst [vmem:[#allocation2 + $0xc8] sm:$0xff] %v895
      %928 = vst [vmem:[#allocation2 + $0xd0] sm:$0xff] %v896
      %929 = vst [vmem:[#allocation2 + $0xd8] sm:$0xff] %v897
      %930 = vst [vmem:[#allocation2 + $0xe0] sm:$0xff] %v898
      %931 = vst [vmem:[#allocation2 + $0xe8] sm:$0xff] %v899
      %932 = vst [vmem:[#allocation2 + $0xf0] sm:$0xff] %v900
      %933 = vst [vmem:[#allocation2 + $0xf8] sm:$0xff] %v901
      %s934 = scalar_lea.vmem %s1, 384
      %v935 = vld [vmem:[%s934] sm:$0xf]
      %v936 = vld [vmem:[%s934 + $0x4] sm:$0xf]
      %v937 = vld [vmem:[%s934 + $0x8] sm:$0xf]
      %v938 = vld [vmem:[%s934 + $0xc] sm:$0xf]
      %v939 = vld [vmem:[%s934 + $0x10] sm:$0xf]
      %v940 = vld [vmem:[%s934 + $0x14] sm:$0xf]
      %v941 = vld [vmem:[%s934 + $0x18] sm:$0xf]
      %v942 = vld [vmem:[%s934 + $0x1c] sm:$0xf]
      %v943 = vld [vmem:[%s934 + $0x20] sm:$0xf]
      %v944 = vld [vmem:[%s934 + $0x24] sm:$0xf]
      %v945 = vld [vmem:[%s934 + $0x28] sm:$0xf]
      %v946 = vld [vmem:[%s934 + $0x2c] sm:$0xf]
      %v947 = vld [vmem:[%s934 + $0x30] sm:$0xf]
      %v948 = vld [vmem:[%s934 + $0x34] sm:$0xf]
      %v949 = vld [vmem:[%s934 + $0x38] sm:$0xf]
      %v950 = vld [vmem:[%s934 + $0x3c] sm:$0xf]
      %v953 = vunpack.c.l.b16 %v250
      %v954 = vunpack.c.l.b16 %v251
      %v955 = vpack.c.b16 %v954, %v953
      %v973 = vunpack.c.l.b16 %v935
      %v974 = vunpack.c.l.b16 %v936
      %v975 = vunpack.c.l.b16 %v937
      %v976 = vunpack.c.l.b16 %v938
      %v977 = vunpack.c.l.b16 %v939
      %v978 = vunpack.c.l.b16 %v940
      %v979 = vunpack.c.l.b16 %v941
      %v980 = vunpack.c.l.b16 %v942
      %v981 = vunpack.c.l.b16 %v943
      %v982 = vunpack.c.l.b16 %v944
      %v983 = vunpack.c.l.b16 %v945
      %v984 = vunpack.c.l.b16 %v946
      %v985 = vunpack.c.l.b16 %v947
      %v986 = vunpack.c.l.b16 %v948
      %v987 = vunpack.c.l.b16 %v949
      %v988 = vunpack.c.l.b16 %v950
      %v989 = vpack.c.b16 %v974, %v973
      %v990 = vpack.c.b16 %v976, %v975
      %v991 = vpack.c.b16 %v978, %v977
      %v992 = vpack.c.b16 %v980, %v979
      %v993 = vpack.c.b16 %v982, %v981
      %v994 = vpack.c.b16 %v984, %v983
      %v995 = vpack.c.b16 %v986, %v985
      %v996 = vpack.c.b16 %v988, %v987
      %1005 = vmatprep.subr.bf16.mxu0 0
      %1006 = vmatpush1.bf16.msra.mxu0 %v996
      %1007 = vmatprep.subr.bf16.mxu0 0
      %1008 = vmatpush1.bf16.msra.mxu0 %v995
      %1009 = vmatprep.subr.bf16.mxu0 0
      %1010 = vmatpush1.bf16.msra.mxu0 %v994
      %1011 = vmatprep.subr.bf16.mxu0 0
      %1012 = vmatpush1.bf16.msra.mxu0 %v993
      %1013 = vmatprep.subr.bf16.mxu0 0
      %1014 = vmatpush1.bf16.msra.mxu0 %v992
      %1015 = vmatprep.subr.bf16.mxu0 0
      %1016 = vmatpush1.bf16.msra.mxu0 %v991
      %1017 = vmatprep.subr.bf16.mxu0 0
      %1018 = vmatpush1.bf16.msra.mxu0 %v990
      %1019 = vmatprep.subr.bf16.mxu0 0
      %1020 = vmatpush1.bf16.msra.mxu0 %v989
      %1021 = vmatprep.subr.bf16.mxu0 0
      %1022 = vmatpush2.bf16.msra.mxu0 0
      %1023 = vmatprep.subr.bf16.mxu0 0
      %1024 = vmatpush2.bf16.msra.mxu0 0
      %1025 = vmatprep.subr.bf16.mxu0 0
      %1026 = vmatpush2.bf16.msra.mxu0 0
      %1027 = vmatprep.subr.bf16.mxu0 0
      %1028 = vmatpush2.bf16.msra.mxu0 0
      %1029 = vmatprep.subr.bf16.mxu0 0
      %1030 = vmatpush2.bf16.msra.mxu0 0
      %1031 = vmatprep.subr.bf16.mxu0 0
      %1032 = vmatpush2.bf16.msra.mxu0 0
      %1033 = vmatprep.subr.bf16.mxu0 0
      %1034 = vmatpush2.bf16.msra.mxu0 0
      %1035 = vmatprep.subr.bf16.mxu0 0
      %1036 = vmatpush2.bf16.msra.mxu0 0
      %1037 = vmatprep.mubr.bf16.mxu0 0
      %1038 = vmatmul.mubr.bf16.gmra.mxu0 %v335
      %v1039 = vpop.f32.mrf.mxu0
      %v1040 = vadd.f32 0.0, %v1039
      %v1041 = vpop.f32.mrf.mxu0
      %v1042 = vpop.f32.mrf.mxu0
      %v1043 = vadd.f32 0.0, %v1042
      %v1044 = vpop.f32.mrf.mxu0
      %1045 = vmatprep.mubr.bf16.mxu0 0
      %1046 = vmatmul.mubr.bf16.gmra.mxu0 %v336
      %v1047 = vpop.f32.mrf.mxu0
      %v1048 = vadd.f32 0.0, %v1047
      %v1049 = vpop.f32.mrf.mxu0
      %v1050 = vpop.f32.mrf.mxu0
      %v1051 = vadd.f32 0.0, %v1050
      %v1052 = vpop.f32.mrf.mxu0
      %1053 = vmatprep.mubr.bf16.mxu0 0
      %1054 = vmatmul.mubr.bf16.gmra.mxu0 %v337
      %v1055 = vpop.f32.mrf.mxu0
      %v1056 = vadd.f32 0.0, %v1055
      %v1057 = vpop.f32.mrf.mxu0
      %v1058 = vpop.f32.mrf.mxu0
      %v1059 = vadd.f32 0.0, %v1058
      %v1060 = vpop.f32.mrf.mxu0
      %1061 = vmatprep.mubr.bf16.mxu0 0
      %1062 = vmatmul.mubr.bf16.gmra.mxu0 %v338
      %v1063 = vpop.f32.mrf.mxu0
      %v1064 = vadd.f32 0.0, %v1063
      %v1065 = vpop.f32.mrf.mxu0
      %v1066 = vpop.f32.mrf.mxu0
      %v1067 = vadd.f32 0.0, %v1066
      %v1068 = vpop.f32.mrf.mxu0
      %1069 = vmatprep.mubr.bf16.mxu0 0
      %1070 = vmatmul.mubr.bf16.gmra.mxu0 %v339
      %v1071 = vpop.f32.mrf.mxu0
      %v1072 = vadd.f32 0.0, %v1071
      %v1073 = vpop.f32.mrf.mxu0
      %v1074 = vpop.f32.mrf.mxu0
      %v1075 = vadd.f32 0.0, %v1074
      %v1076 = vpop.f32.mrf.mxu0
      %1077 = vmatprep.mubr.bf16.mxu0 0
      %1078 = vmatmul.mubr.bf16.gmra.mxu0 %v340
      %v1079 = vpop.f32.mrf.mxu0
      %v1080 = vadd.f32 0.0, %v1079
      %v1081 = vpop.f32.mrf.mxu0
      %v1082 = vpop.f32.mrf.mxu0
      %v1083 = vadd.f32 0.0, %v1082
      %v1084 = vpop.f32.mrf.mxu0
      %1085 = vmatprep.mubr.bf16.mxu0 0
      %1086 = vmatmul.mubr.bf16.gmra.mxu0 %v341
      %v1087 = vpop.f32.mrf.mxu0
      %v1088 = vadd.f32 0.0, %v1087
      %v1089 = vpop.f32.mrf.mxu0
      %v1090 = vpop.f32.mrf.mxu0
      %v1091 = vadd.f32 0.0, %v1090
      %v1092 = vpop.f32.mrf.mxu0
      %1093 = vmatprep.mubr.bf16.mxu0 0
      %1094 = vmatmul.mubr.bf16.gmra.mxu0 %v342
      %v1095 = vpop.f32.mrf.mxu0
      %v1096 = vadd.f32 0.0, %v1095
      %v1097 = vpop.f32.mrf.mxu0
      %v1098 = vpop.f32.mrf.mxu0
      %v1099 = vadd.f32 0.0, %v1098
      %v1100 = vpop.f32.mrf.mxu0
      %1101 = vmatprep.mubr.bf16.mxu0 0
      %1102 = vmatmul.mubr.bf16.gmra.mxu0 %v343
      %v1103 = vpop.f32.mrf.mxu0
      %v1104 = vadd.f32 0.0, %v1103
      %v1105 = vpop.f32.mrf.mxu0
      %v1106 = vpop.f32.mrf.mxu0
      %v1107 = vadd.f32 0.0, %v1106
      %v1108 = vpop.f32.mrf.mxu0
      %1109 = vmatprep.mubr.bf16.mxu0 0
      %1110 = vmatmul.mubr.bf16.gmra.mxu0 %v344
      %v1111 = vpop.f32.mrf.mxu0
      %v1112 = vadd.f32 0.0, %v1111
      %v1113 = vpop.f32.mrf.mxu0
      %v1114 = vpop.f32.mrf.mxu0
      %v1115 = vadd.f32 0.0, %v1114
      %v1116 = vpop.f32.mrf.mxu0
      %1117 = vmatprep.mubr.bf16.mxu0 0
      %1118 = vmatmul.mubr.bf16.gmra.mxu0 %v345
      %v1119 = vpop.f32.mrf.mxu0
      %v1120 = vadd.f32 0.0, %v1119
      %v1121 = vpop.f32.mrf.mxu0
      %v1122 = vpop.f32.mrf.mxu0
      %v1123 = vadd.f32 0.0, %v1122
      %v1124 = vpop.f32.mrf.mxu0
      %1125 = vmatprep.mubr.bf16.mxu0 0
      %1126 = vmatmul.mubr.bf16.gmra.mxu0 %v346
      %v1127 = vpop.f32.mrf.mxu0
      %v1128 = vadd.f32 0.0, %v1127
      %v1129 = vpop.f32.mrf.mxu0
      %v1130 = vpop.f32.mrf.mxu0
      %v1131 = vadd.f32 0.0, %v1130
      %v1132 = vpop.f32.mrf.mxu0
      %1133 = vmatprep.mubr.bf16.mxu0 0
      %1134 = vmatmul.mubr.bf16.gmra.mxu0 %v347
      %v1135 = vpop.f32.mrf.mxu0
      %v1136 = vadd.f32 0.0, %v1135
      %v1137 = vpop.f32.mrf.mxu0
      %v1138 = vpop.f32.mrf.mxu0
      %v1139 = vadd.f32 0.0, %v1138
      %v1140 = vpop.f32.mrf.mxu0
      %1141 = vmatprep.mubr.bf16.mxu0 0
      %1142 = vmatmul.mubr.bf16.gmra.mxu0 %v348
      %v1143 = vpop.f32.mrf.mxu0
      %v1144 = vadd.f32 0.0, %v1143
      %v1145 = vpop.f32.mrf.mxu0
      %v1146 = vpop.f32.mrf.mxu0
      %v1147 = vadd.f32 0.0, %v1146
      %v1148 = vpop.f32.mrf.mxu0
      %1149 = vmatprep.mubr.bf16.mxu0 0
      %1150 = vmatmul.mubr.bf16.gmra.mxu0 %v627
      %v1151 = vpop.f32.mrf.mxu0
      %v1152 = vadd.f32 0.0, %v1151
      %v1153 = vpop.f32.mrf.mxu0
      %v1154 = vpop.f32.mrf.mxu0
      %v1155 = vadd.f32 0.0, %v1154
      %v1156 = vpop.f32.mrf.mxu0
      %1157 = vmatprep.mubr.bf16.mxu0 0
      %1158 = vmatmul.mubr.bf16.gmra.mxu0 %v955
      %v1159 = vpop.f32.mrf.mxu0
      %v1160 = vadd.f32 0.0, %v1159
      %v1161 = vpop.f32.mrf.mxu0
      %v1162 = vpop.f32.mrf.mxu0
      %v1163 = vadd.f32 0.0, %v1162
      %v1164 = vpop.f32.mrf.mxu0
      %1165 = vdwg.mxu0
      %v1166 = vld [vmem:[#allocation2] sm:$0xff]
      %v1167 = vld [vmem:[#allocation2 + $0x8] sm:$0xff]
      %v1168 = vld [vmem:[#allocation2 + $0x10] sm:$0xff]
      %v1169 = vld [vmem:[#allocation2 + $0x18] sm:$0xff]
      %v1170 = vld [vmem:[#allocation2 + $0x20] sm:$0xff]
      %v1171 = vld [vmem:[#allocation2 + $0x28] sm:$0xff]
      %v1172 = vld [vmem:[#allocation2 + $0x30] sm:$0xff]
      %v1173 = vld [vmem:[#allocation2 + $0x38] sm:$0xff]
      %v1174 = vld [vmem:[#allocation2 + $0x40] sm:$0xff]
      %v1175 = vld [vmem:[#allocation2 + $0x48] sm:$0xff]
      %v1176 = vld [vmem:[#allocation2 + $0x50] sm:$0xff]
      %v1177 = vld [vmem:[#allocation2 + $0x58] sm:$0xff]
      %v1178 = vld [vmem:[#allocation2 + $0x60] sm:$0xff]
      %v1179 = vld [vmem:[#allocation2 + $0x68] sm:$0xff]
      %v1180 = vld [vmem:[#allocation2 + $0x70] sm:$0xff]
      %v1181 = vld [vmem:[#allocation2 + $0x78] sm:$0xff]
      %v1182 = vld [vmem:[#allocation2 + $0x80] sm:$0xff]
      %v1183 = vld [vmem:[#allocation2 + $0x88] sm:$0xff]
      %v1184 = vld [vmem:[#allocation2 + $0x90] sm:$0xff]
      %v1185 = vld [vmem:[#allocation2 + $0x98] sm:$0xff]
      %v1186 = vld [vmem:[#allocation2 + $0xa0] sm:$0xff]
      %v1187 = vld [vmem:[#allocation2 + $0xa8] sm:$0xff]
      %v1188 = vld [vmem:[#allocation2 + $0xb0] sm:$0xff]
      %v1189 = vld [vmem:[#allocation2 + $0xb8] sm:$0xff]
      %v1190 = vld [vmem:[#allocation2 + $0xc0] sm:$0xff]
      %v1191 = vld [vmem:[#allocation2 + $0xc8] sm:$0xff]
      %v1192 = vld [vmem:[#allocation2 + $0xd0] sm:$0xff]
      %v1193 = vld [vmem:[#allocation2 + $0xd8] sm:$0xff]
      %v1194 = vld [vmem:[#allocation2 + $0xe0] sm:$0xff]
      %v1195 = vld [vmem:[#allocation2 + $0xe8] sm:$0xff]
      %v1196 = vld [vmem:[#allocation2 + $0xf0] sm:$0xff]
      %v1197 = vld [vmem:[#allocation2 + $0xf8] sm:$0xff]
      %v1198 = vadd.f32 %v1166, %v1040
      %v1199 = vadd.f32 %v1167, %v1043
      %v1200 = vadd.f32 %v1168, %v1048
      %v1201 = vadd.f32 %v1169, %v1051
      %v1202 = vadd.f32 %v1170, %v1056
      %v1203 = vadd.f32 %v1171, %v1059
      %v1204 = vadd.f32 %v1172, %v1064
      %v1205 = vadd.f32 %v1173, %v1067
      %v1206 = vadd.f32 %v1174, %v1072
      %v1207 = vadd.f32 %v1175, %v1075
      %v1208 = vadd.f32 %v1176, %v1080
      %v1209 = vadd.f32 %v1177, %v1083
      %v1210 = vadd.f32 %v1178, %v1088
      %v1211 = vadd.f32 %v1179, %v1091
      %v1212 = vadd.f32 %v1180, %v1096
      %v1213 = vadd.f32 %v1181, %v1099
      %v1214 = vadd.f32 %v1182, %v1104
      %v1215 = vadd.f32 %v1183, %v1107
      %v1216 = vadd.f32 %v1184, %v1112
      %v1217 = vadd.f32 %v1185, %v1115
      %v1218 = vadd.f32 %v1186, %v1120
      %v1219 = vadd.f32 %v1187, %v1123
      %v1220 = vadd.f32 %v1188, %v1128
      %v1221 = vadd.f32 %v1189, %v1131
      %v1222 = vadd.f32 %v1190, %v1136
      %v1223 = vadd.f32 %v1191, %v1139
      %v1224 = vadd.f32 %v1192, %v1144
      %v1225 = vadd.f32 %v1193, %v1147
      %v1226 = vadd.f32 %v1194, %v1152
      %v1227 = vadd.f32 %v1195, %v1155
      %v1228 = vadd.f32 %v1196, %v1160
      %v1229 = vadd.f32 %v1197, %v1163
      %1230 = vst [vmem:[#allocation2] sm:$0xff] %v1198
      %1231 = vst [vmem:[#allocation2 + $0x8] sm:$0xff] %v1199
      %1232 = vst [vmem:[#allocation2 + $0x10] sm:$0xff] %v1200
      %1233 = vst [vmem:[#allocation2 + $0x18] sm:$0xff] %v1201
      %1234 = vst [vmem:[#allocation2 + $0x20] sm:$0xff] %v1202
      %1235 = vst [vmem:[#allocation2 + $0x28] sm:$0xff] %v1203
      %1236 = vst [vmem:[#allocation2 + $0x30] sm:$0xff] %v1204
      %1237 = vst [vmem:[#allocation2 + $0x38] sm:$0xff] %v1205
      %1238 = vst [vmem:[#allocation2 + $0x40] sm:$0xff] %v1206
      %1239 = vst [vmem:[#allocation2 + $0x48] sm:$0xff] %v1207
      %1240 = vst [vmem:[#allocation2 + $0x50] sm:$0xff] %v1208
      %1241 = vst [vmem:[#allocation2 + $0x58] sm:$0xff] %v1209
      %1242 = vst [vmem:[#allocation2 + $0x60] sm:$0xff] %v1210
      %1243 = vst [vmem:[#allocation2 + $0x68] sm:$0xff] %v1211
      %1244 = vst [vmem:[#allocation2 + $0x70] sm:$0xff] %v1212
      %1245 = vst [vmem:[#allocation2 + $0x78] sm:$0xff] %v1213
      %1246 = vst [vmem:[#allocation2 + $0x80] sm:$0xff] %v1214
      %1247 = vst [vmem:[#allocation2 + $0x88] sm:$0xff] %v1215
      %1248 = vst [vmem:[#allocation2 + $0x90] sm:$0xff] %v1216
      %1249 = vst [vmem:[#allocation2 + $0x98] sm:$0xff] %v1217
      %1250 = vst [vmem:[#allocation2 + $0xa0] sm:$0xff] %v1218
      %1251 = vst [vmem:[#allocation2 + $0xa8] sm:$0xff] %v1219
      %1252 = vst [vmem:[#allocation2 + $0xb0] sm:$0xff] %v1220
      %1253 = vst [vmem:[#allocation2 + $0xb8] sm:$0xff] %v1221
      %1254 = vst [vmem:[#allocation2 + $0xc0] sm:$0xff] %v1222
      %1255 = vst [vmem:[#allocation2 + $0xc8] sm:$0xff] %v1223
      %1256 = vst [vmem:[#allocation2 + $0xd0] sm:$0xff] %v1224
      %1257 = vst [vmem:[#allocation2 + $0xd8] sm:$0xff] %v1225
      %1258 = vst [vmem:[#allocation2 + $0xe0] sm:$0xff] %v1226
      %1259 = vst [vmem:[#allocation2 + $0xe8] sm:$0xff] %v1227
      %1260 = vst [vmem:[#allocation2 + $0xf0] sm:$0xff] %v1228
      %1261 = vst [vmem:[#allocation2 + $0xf8] sm:$0xff] %v1229
      %vm1262 = vsmask.f32 3328
      %vm1263 = vsmask.f32 7440
      %vm1264 = vmor %vm1262, %vm1263
      %v1266 = vshrl.u32 %v199, 16
      %v1268 = vrot.slane %v1266, 4
      %v1269 = vshll.u32 %v199, 16
      %v1271 = vrot.slane %v1269, 5
      %v1272 = vor.u32 %v1268, %v1271
      %v1273 = vrot.slane %v1272, 4
      %v1275 = vshll.u32 %v200, 16
      %v1277 = vrot.slane %v1275, 5
      %v1278 = vsel %vm1264, %v1273, %v1277
      %v1279 = vshrl.u32 %v200, 16
      %v1281 = vrot.slane %v1279, 4
      %v1282 = vor.u32 %v1281, %v1277
      %v1283 = vrot.slane %v1282, 4
      %v1285 = vshll.u32 %v201, 16
      %v1287 = vrot.slane %v1285, 5
      %v1288 = vsel %vm1264, %v1283, %v1287
      %v1290 = vshrl.u32 %v202, 16
      %v1292 = vrot.slane %v1290, 4
      %v1293 = vshll.u32 %v202, 16
      %v1295 = vrot.slane %v1293, 5
      %v1296 = vor.u32 %v1292, %v1295
      %v1297 = vrot.slane %v1296, 4
      %v1299 = vshll.u32 %v203, 16
      %v1301 = vrot.slane %v1299, 5
      %v1302 = vsel %vm1264, %v1297, %v1301
      %v1303 = vshrl.u32 %v203, 16
      %v1305 = vrot.slane %v1303, 4
      %v1306 = vor.u32 %v1305, %v1301
      %v1307 = vrot.slane %v1306, 4
      %v1309 = vshll.u32 %v204, 16
      %v1311 = vrot.slane %v1309, 5
      %v1312 = vsel %vm1264, %v1307, %v1311
      %v1314 = vshrl.u32 %v205, 16
      %v1316 = vrot.slane %v1314, 4
      %v1317 = vshll.u32 %v205, 16
      %v1319 = vrot.slane %v1317, 5
      %v1320 = vor.u32 %v1316, %v1319
      %v1321 = vrot.slane %v1320, 4
      %v1323 = vshll.u32 %v206, 16
      %v1325 = vrot.slane %v1323, 5
      %v1326 = vsel %vm1264, %v1321, %v1325
      %v1327 = vshrl.u32 %v206, 16
      %v1329 = vrot.slane %v1327, 4
      %v1330 = vor.u32 %v1329, %v1325
      %v1331 = vrot.slane %v1330, 4
      %v1333 = vshll.u32 %v207, 16
      %v1335 = vrot.slane %v1333, 5
      %v1336 = vsel %vm1264, %v1331, %v1335
      %v1338 = vshrl.u32 %v208, 16
      %v1340 = vrot.slane %v1338, 4
      %v1341 = vshll.u32 %v208, 16
      %v1343 = vrot.slane %v1341, 5
      %v1344 = vor.u32 %v1340, %v1343
      %v1345 = vrot.slane %v1344, 4
      %v1347 = vshll.u32 %v209, 16
      %v1349 = vrot.slane %v1347, 5
      %v1350 = vsel %vm1264, %v1345, %v1349
      %v1351 = vshrl.u32 %v209, 16
      %v1353 = vrot.slane %v1351, 4
      %v1354 = vor.u32 %v1353, %v1349
      %v1355 = vrot.slane %v1354, 4
      %v1357 = vshll.u32 %v210, 16
      %v1359 = vrot.slane %v1357, 5
      %v1360 = vsel %vm1264, %v1355, %v1359
      %v1362 = vshrl.u32 %v211, 16
      %v1364 = vrot.slane %v1362, 4
      %v1365 = vshll.u32 %v211, 16
      %v1367 = vrot.slane %v1365, 5
      %v1368 = vor.u32 %v1364, %v1367
      %v1369 = vrot.slane %v1368, 4
      %v1371 = vshll.u32 %v212, 16
      %v1373 = vrot.slane %v1371, 5
      %v1374 = vsel %vm1264, %v1369, %v1373
      %v1375 = vshrl.u32 %v212, 16
      %v1377 = vrot.slane %v1375, 4
      %v1378 = vor.u32 %v1377, %v1373
      %v1379 = vrot.slane %v1378, 4
      %v1381 = vshll.u32 %v213, 16
      %v1383 = vrot.slane %v1381, 5
      %v1384 = vsel %vm1264, %v1379, %v1383
      %v1386 = vshrl.u32 %v214, 16
      %v1388 = vrot.slane %v1386, 4
      %v1389 = vshll.u32 %v214, 16
      %v1391 = vrot.slane %v1389, 5
      %v1392 = vor.u32 %v1388, %v1391
      %v1393 = vrot.slane %v1392, 4
      %v1395 = vshll.u32 %v215, 16
      %v1397 = vrot.slane %v1395, 5
      %v1398 = vsel %vm1264, %v1393, %v1397
      %v1399 = vshrl.u32 %v215, 16
      %v1401 = vrot.slane %v1399, 4
      %v1402 = vor.u32 %v1401, %v1397
      %v1403 = vrot.slane %v1402, 4
      %v1405 = vshll.u32 %v216, 16
      %v1407 = vrot.slane %v1405, 5
      %v1408 = vsel %vm1264, %v1403, %v1407
      %v1410 = vshrl.u32 %v217, 16
      %v1412 = vrot.slane %v1410, 4
      %v1413 = vshll.u32 %v217, 16
      %v1415 = vrot.slane %v1413, 5
      %v1416 = vor.u32 %v1412, %v1415
      %v1417 = vrot.slane %v1416, 4
      %v1419 = vshll.u32 %v218, 16
      %v1421 = vrot.slane %v1419, 5
      %v1422 = vsel %vm1264, %v1417, %v1421
      %v1423 = vshrl.u32 %v218, 16
      %v1425 = vrot.slane %v1423, 4
      %v1426 = vor.u32 %v1425, %v1421
      %v1427 = vrot.slane %v1426, 4
      %v1429 = vshll.u32 %v219, 16
      %v1431 = vrot.slane %v1429, 5
      %v1432 = vsel %vm1264, %v1427, %v1431
      %v1434 = vshrl.u32 %v220, 16
      %v1436 = vrot.slane %v1434, 4
      %v1437 = vshll.u32 %v220, 16
      %v1439 = vrot.slane %v1437, 5
      %v1440 = vor.u32 %v1436, %v1439
      %v1441 = vrot.slane %v1440, 4
      %v1443 = vshll.u32 %v221, 16
      %v1445 = vrot.slane %v1443, 5
      %v1446 = vsel %vm1264, %v1441, %v1445
      %v1447 = vshrl.u32 %v221, 16
      %v1449 = vrot.slane %v1447, 4
      %v1450 = vor.u32 %v1449, %v1445
      %v1451 = vrot.slane %v1450, 4
      %v1453 = vshll.u32 %v222, 16
      %v1455 = vrot.slane %v1453, 5
      %v1456 = vsel %vm1264, %v1451, %v1455
      %v1458 = vshrl.u32 %v223, 16
      %v1460 = vrot.slane %v1458, 4
      %v1461 = vshll.u32 %v223, 16
      %v1463 = vrot.slane %v1461, 5
      %v1464 = vor.u32 %v1460, %v1463
      %v1465 = vrot.slane %v1464, 4
      %v1467 = vshll.u32 %v224, 16
      %v1469 = vrot.slane %v1467, 5
      %v1470 = vsel %vm1264, %v1465, %v1469
      %v1471 = vshrl.u32 %v224, 16
      %v1473 = vrot.slane %v1471, 4
      %v1474 = vor.u32 %v1473, %v1469
      %v1475 = vrot.slane %v1474, 4
      %v1477 = vshll.u32 %v225, 16
      %v1479 = vrot.slane %v1477, 5
      %v1480 = vsel %vm1264, %v1475, %v1479
      %v1482 = vshrl.u32 %v226, 16
      %v1484 = vrot.slane %v1482, 4
      %v1485 = vshll.u32 %v226, 16
      %v1487 = vrot.slane %v1485, 5
      %v1488 = vor.u32 %v1484, %v1487
      %v1489 = vrot.slane %v1488, 4
      %v1491 = vshll.u32 %v227, 16
      %v1493 = vrot.slane %v1491, 5
      %v1494 = vsel %vm1264, %v1489, %v1493
      %v1495 = vshrl.u32 %v227, 16
      %v1497 = vrot.slane %v1495, 4
      %v1498 = vor.u32 %v1497, %v1493
      %v1499 = vrot.slane %v1498, 4
      %v1501 = vshll.u32 %v228, 16
      %v1503 = vrot.slane %v1501, 5
      %v1504 = vsel %vm1264, %v1499, %v1503
      %v1506 = vshrl.u32 %v229, 16
      %v1508 = vrot.slane %v1506, 4
      %v1509 = vshll.u32 %v229, 16
      %v1511 = vrot.slane %v1509, 5
      %v1512 = vor.u32 %v1508, %v1511
      %v1513 = vrot.slane %v1512, 4
      %v1515 = vshll.u32 %v230, 16
      %v1517 = vrot.slane %v1515, 5
      %v1518 = vsel %vm1264, %v1513, %v1517
      %v1519 = vshrl.u32 %v230, 16
      %v1521 = vrot.slane %v1519, 4
      %v1522 = vor.u32 %v1521, %v1517
      %v1523 = vrot.slane %v1522, 4
      %v1525 = vshll.u32 %v231, 16
      %v1527 = vrot.slane %v1525, 5
      %v1528 = vsel %vm1264, %v1523, %v1527
      %v1530 = vshrl.u32 %v232, 16
      %v1532 = vrot.slane %v1530, 4
      %v1533 = vshll.u32 %v232, 16
      %v1535 = vrot.slane %v1533, 5
      %v1536 = vor.u32 %v1532, %v1535
      %v1537 = vrot.slane %v1536, 4
      %v1539 = vshll.u32 %v233, 16
      %v1541 = vrot.slane %v1539, 5
      %v1542 = vsel %vm1264, %v1537, %v1541
      %v1543 = vshrl.u32 %v233, 16
      %v1545 = vrot.slane %v1543, 4
      %v1546 = vor.u32 %v1545, %v1541
      %v1547 = vrot.slane %v1546, 4
      %v1549 = vshll.u32 %v234, 16
      %v1551 = vrot.slane %v1549, 5
      %v1552 = vsel %vm1264, %v1547, %v1551
      %v1554 = vshrl.u32 %v235, 16
      %v1556 = vrot.slane %v1554, 4
      %v1557 = vshll.u32 %v235, 16
      %v1559 = vrot.slane %v1557, 5
      %v1560 = vor.u32 %v1556, %v1559
      %v1561 = vrot.slane %v1560, 4
      %v1563 = vshll.u32 %v236, 16
      %v1565 = vrot.slane %v1563, 5
      %v1566 = vsel %vm1264, %v1561, %v1565
      %v1567 = vshrl.u32 %v236, 16
      %v1569 = vrot.slane %v1567, 4
      %v1570 = vor.u32 %v1569, %v1565
      %v1571 = vrot.slane %v1570, 4
      %v1573 = vshll.u32 %v237, 16
      %v1575 = vrot.slane %v1573, 5
      %v1576 = vsel %vm1264, %v1571, %v1575
      %v1578 = vshrl.u32 %v238, 16
      %v1580 = vrot.slane %v1578, 4
      %v1581 = vshll.u32 %v238, 16
      %v1583 = vrot.slane %v1581, 5
      %v1584 = vor.u32 %v1580, %v1583
      %v1585 = vrot.slane %v1584, 4
      %v1587 = vshll.u32 %v239, 16
      %v1589 = vrot.slane %v1587, 5
      %v1590 = vsel %vm1264, %v1585, %v1589
      %v1591 = vshrl.u32 %v239, 16
      %v1593 = vrot.slane %v1591, 4
      %v1594 = vor.u32 %v1593, %v1589
      %v1595 = vrot.slane %v1594, 4
      %v1597 = vshll.u32 %v240, 16
      %v1599 = vrot.slane %v1597, 5
      %v1600 = vsel %vm1264, %v1595, %v1599
      %v1602 = vshrl.u32 %v241, 16
      %v1604 = vrot.slane %v1602, 4
      %v1605 = vshll.u32 %v241, 16
      %v1607 = vrot.slane %v1605, 5
      %v1608 = vor.u32 %v1604, %v1607
      %v1609 = vrot.slane %v1608, 4
      %v1611 = vshll.u32 %v242, 16
      %v1613 = vrot.slane %v1611, 5
      %v1614 = vsel %vm1264, %v1609, %v1613
      %v1615 = vshrl.u32 %v242, 16
      %v1617 = vrot.slane %v1615, 4
      %v1618 = vor.u32 %v1617, %v1613
      %v1619 = vrot.slane %v1618, 4
      %v1621 = vshll.u32 %v243, 16
      %v1623 = vrot.slane %v1621, 5
      %v1624 = vsel %vm1264, %v1619, %v1623
      %v1626 = vshrl.u32 %v244, 16
      %v1628 = vrot.slane %v1626, 4
      %v1629 = vshll.u32 %v244, 16
      %v1631 = vrot.slane %v1629, 5
      %v1632 = vor.u32 %v1628, %v1631
      %v1633 = vrot.slane %v1632, 4
      %v1635 = vshll.u32 %v245, 16
      %v1637 = vrot.slane %v1635, 5
      %v1638 = vsel %vm1264, %v1633, %v1637
      %v1639 = vshrl.u32 %v245, 16
      %v1641 = vrot.slane %v1639, 4
      %v1642 = vor.u32 %v1641, %v1637
      %v1643 = vrot.slane %v1642, 4
      %v1645 = vshll.u32 %v246, 16
      %v1647 = vrot.slane %v1645, 5
      %v1648 = vsel %vm1264, %v1643, %v1647
      %v1650 = vshrl.u32 %v247, 16
      %v1652 = vrot.slane %v1650, 4
      %v1653 = vshll.u32 %v247, 16
      %v1655 = vrot.slane %v1653, 5
      %v1656 = vor.u32 %v1652, %v1655
      %v1657 = vrot.slane %v1656, 4
      %v1659 = vshll.u32 %v248, 16
      %v1661 = vrot.slane %v1659, 5
      %v1662 = vsel %vm1264, %v1657, %v1661
      %v1663 = vshrl.u32 %v248, 16
      %v1665 = vrot.slane %v1663, 4
      %v1666 = vor.u32 %v1665, %v1661
      %v1667 = vrot.slane %v1666, 4
      %v1669 = vshll.u32 %v249, 16
      %v1671 = vrot.slane %v1669, 5
      %v1672 = vsel %vm1264, %v1667, %v1671
      %v1674 = vshrl.u32 %v250, 16
      %v1676 = vrot.slane %v1674, 4
      %v1677 = vshll.u32 %v250, 16
      %v1679 = vrot.slane %v1677, 5
      %v1680 = vor.u32 %v1676, %v1679
      %v1681 = vrot.slane %v1680, 4
      %v1683 = vshll.u32 %v251, 16
      %v1685 = vrot.slane %v1683, 5
      %v1686 = vsel %vm1264, %v1681, %v1685
      %v1687 = vshrl.u32 %v251, 16
      %v1689 = vrot.slane %v1687, 4
      %v1690 = vor.u32 %v1689, %v1685
      %v1691 = vrot.slane %v1690, 4
      %v1693 = vshll.u32 %v252, 16
      %v1695 = vrot.slane %v1693, 5
      %v1696 = vsel %vm1264, %v1691, %v1695
      %s1697 = scalar_lea.vmem %s1, 64
      %v1698 = vld [vmem:[%s1697] sm:$0xf]
      %v1699 = vld [vmem:[%s1697 + $0x4] sm:$0xf]
      %v1700 = vld [vmem:[%s1697 + $0x8] sm:$0xf]
      %v1701 = vld [vmem:[%s1697 + $0xc] sm:$0xf]
      %v1702 = vld [vmem:[%s1697 + $0x10] sm:$0xf]
      %v1703 = vld [vmem:[%s1697 + $0x14] sm:$0xf]
      %v1704 = vld [vmem:[%s1697 + $0x18] sm:$0xf]
      %v1705 = vld [vmem:[%s1697 + $0x1c] sm:$0xf]
      %v1706 = vld [vmem:[%s1697 + $0x20] sm:$0xf]
      %v1707 = vld [vmem:[%s1697 + $0x24] sm:$0xf]
      %v1708 = vld [vmem:[%s1697 + $0x28] sm:$0xf]
      %v1709 = vld [vmem:[%s1697 + $0x2c] sm:$0xf]
      %v1710 = vld [vmem:[%s1697 + $0x30] sm:$0xf]
      %v1711 = vld [vmem:[%s1697 + $0x34] sm:$0xf]
      %v1712 = vld [vmem:[%s1697 + $0x38] sm:$0xf]
      %v1713 = vld [vmem:[%s1697 + $0x3c] sm:$0xf]
      %v1714 = vunpack.c.l.b16 %v1278
      %v1715 = vunpack.c.l.b16 %v1288
      %v1716 = vunpack.c.l.b16 %v1302
      %v1717 = vunpack.c.l.b16 %v1312
      %v1718 = vunpack.c.l.b16 %v1326
      %v1719 = vunpack.c.l.b16 %v1336
      %v1720 = vunpack.c.l.b16 %v1350
      %v1721 = vunpack.c.l.b16 %v1360
      %v1722 = vunpack.c.l.b16 %v1374
      %v1723 = vunpack.c.l.b16 %v1384
      %v1724 = vunpack.c.l.b16 %v1398
      %v1725 = vunpack.c.l.b16 %v1408
      %v1726 = vunpack.c.l.b16 %v1422
      %v1727 = vunpack.c.l.b16 %v1432
      %v1728 = vunpack.c.l.b16 %v1446
      %v1729 = vunpack.c.l.b16 %v1456
      %v1730 = vunpack.c.l.b16 %v1470
      %v1731 = vunpack.c.l.b16 %v1480
      %v1732 = vunpack.c.l.b16 %v1494
      %v1733 = vunpack.c.l.b16 %v1504
      %v1734 = vunpack.c.l.b16 %v1518
      %v1735 = vunpack.c.l.b16 %v1528
      %v1736 = vunpack.c.l.b16 %v1542
      %v1737 = vunpack.c.l.b16 %v1552
      %v1738 = vunpack.c.l.b16 %v1566
      %v1739 = vunpack.c.l.b16 %v1576
      %v1740 = vunpack.c.l.b16 %v1590
      %v1741 = vunpack.c.l.b16 %v1600
      %v1742 = vunpack.c.l.b16 %v1614
      %v1743 = vunpack.c.l.b16 %v1624
      %v1744 = vunpack.c.l.b16 %v1638
      %v1745 = vunpack.c.l.b16 %v1648
      %v1746 = vpack.c.b16 %v1715, %v1714
      %v1747 = vpack.c.b16 %v1717, %v1716
      %v1748 = vpack.c.b16 %v1719, %v1718
      %v1749 = vpack.c.b16 %v1721, %v1720
      %v1750 = vpack.c.b16 %v1723, %v1722
      %v1751 = vpack.c.b16 %v1725, %v1724
      %v1752 = vpack.c.b16 %v1727, %v1726
      %v1753 = vpack.c.b16 %v1729, %v1728
      %v1754 = vpack.c.b16 %v1731, %v1730
      %v1755 = vpack.c.b16 %v1733, %v1732
      %v1756 = vpack.c.b16 %v1735, %v1734
      %v1757 = vpack.c.b16 %v1737, %v1736
      %v1758 = vpack.c.b16 %v1739, %v1738
      %v1759 = vpack.c.b16 %v1741, %v1740
      %v1760 = vpack.c.b16 %v1743, %v1742
      %v1761 = vpack.c.b16 %v1745, %v1744
      %v1794 = vunpack.c.l.b16 %v1698
      %v1795 = vunpack.c.l.b16 %v1699
      %v1796 = vunpack.c.l.b16 %v1700
      %v1797 = vunpack.c.l.b16 %v1701
      %v1798 = vunpack.c.l.b16 %v1702
      %v1799 = vunpack.c.l.b16 %v1703
      %v1800 = vunpack.c.l.b16 %v1704
      %v1801 = vunpack.c.l.b16 %v1705
      %v1802 = vunpack.c.l.b16 %v1706
      %v1803 = vunpack.c.l.b16 %v1707
      %v1804 = vunpack.c.l.b16 %v1708
      %v1805 = vunpack.c.l.b16 %v1709
      %v1806 = vunpack.c.l.b16 %v1710
      %v1807 = vunpack.c.l.b16 %v1711
      %v1808 = vunpack.c.l.b16 %v1712
      %v1809 = vunpack.c.l.b16 %v1713
      %v1810 = vpack.c.b16 %v1795, %v1794
      %v1811 = vpack.c.b16 %v1797, %v1796
      %v1812 = vpack.c.b16 %v1799, %v1798
      %v1813 = vpack.c.b16 %v1801, %v1800
      %v1814 = vpack.c.b16 %v1803, %v1802
      %v1815 = vpack.c.b16 %v1805, %v1804
      %v1816 = vpack.c.b16 %v1807, %v1806
      %v1817 = vpack.c.b16 %v1809, %v1808
      %1826 = vmatprep.subr.bf16.mxu0 0
      %1827 = vmatpush1.bf16.msra.mxu0 %v1817
      %1828 = vmatprep.subr.bf16.mxu0 0
      %1829 = vmatpush1.bf16.msra.mxu0 %v1816
      %1830 = vmatprep.subr.bf16.mxu0 0
      %1831 = vmatpush1.bf16.msra.mxu0 %v1815
      %1832 = vmatprep.subr.bf16.mxu0 0
      %1833 = vmatpush1.bf16.msra.mxu0 %v1814
      %1834 = vmatprep.subr.bf16.mxu0 0
      %1835 = vmatpush1.bf16.msra.mxu0 %v1813
      %1836 = vmatprep.subr.bf16.mxu0 0
      %1837 = vmatpush1.bf16.msra.mxu0 %v1812
      %1838 = vmatprep.subr.bf16.mxu0 0
      %1839 = vmatpush1.bf16.msra.mxu0 %v1811
      %1840 = vmatprep.subr.bf16.mxu0 0
      %1841 = vmatpush1.bf16.msra.mxu0 %v1810
      %1842 = vmatprep.subr.bf16.mxu0 0
      %1843 = vmatpush2.bf16.msra.mxu0 0
      %1844 = vmatprep.subr.bf16.mxu0 0
      %1845 = vmatpush2.bf16.msra.mxu0 0
      %1846 = vmatprep.subr.bf16.mxu0 0
      %1847 = vmatpush2.bf16.msra.mxu0 0
      %1848 = vmatprep.subr.bf16.mxu0 0
      %1849 = vmatpush2.bf16.msra.mxu0 0
      %1850 = vmatprep.subr.bf16.mxu0 0
      %1851 = vmatpush2.bf16.msra.mxu0 0
      %1852 = vmatprep.subr.bf16.mxu0 0
      %1853 = vmatpush2.bf16.msra.mxu0 0
      %1854 = vmatprep.subr.bf16.mxu0 0
      %1855 = vmatpush2.bf16.msra.mxu0 0
      %1856 = vmatprep.subr.bf16.mxu0 0
      %1857 = vmatpush2.bf16.msra.mxu0 0
      %1858 = vmatprep.mubr.bf16.mxu0 0
      %1859 = vmatmul.mubr.bf16.gmra.mxu0 %v1746
      %v1860 = vpop.f32.mrf.mxu0
      %v1861 = vadd.f32 0.0, %v1860
      %v1862 = vpop.f32.mrf.mxu0
      %v1863 = vpop.f32.mrf.mxu0
      %v1864 = vadd.f32 0.0, %v1863
      %v1865 = vpop.f32.mrf.mxu0
      %1866 = vmatprep.mubr.bf16.mxu0 0
      %1867 = vmatmul.mubr.bf16.gmra.mxu0 %v1747
      %v1868 = vpop.f32.mrf.mxu0
      %v1869 = vadd.f32 0.0, %v1868
      %v1870 = vpop.f32.mrf.mxu0
      %v1871 = vpop.f32.mrf.mxu0
      %v1872 = vadd.f32 0.0, %v1871
      %v1873 = vpop.f32.mrf.mxu0
      %1874 = vmatprep.mubr.bf16.mxu0 0
      %1875 = vmatmul.mubr.bf16.gmra.mxu0 %v1748
      %v1876 = vpop.f32.mrf.mxu0
      %v1877 = vadd.f32 0.0, %v1876
      %v1878 = vpop.f32.mrf.mxu0
      %v1879 = vpop.f32.mrf.mxu0
      %v1880 = vadd.f32 0.0, %v1879
      %v1881 = vpop.f32.mrf.mxu0
      %1882 = vmatprep.mubr.bf16.mxu0 0
      %1883 = vmatmul.mubr.bf16.gmra.mxu0 %v1749
      %v1884 = vpop.f32.mrf.mxu0
      %v1885 = vadd.f32 0.0, %v1884
      %v1886 = vpop.f32.mrf.mxu0
      %v1887 = vpop.f32.mrf.mxu0
      %v1888 = vadd.f32 0.0, %v1887
      %v1889 = vpop.f32.mrf.mxu0
      %1890 = vmatprep.mubr.bf16.mxu0 0
      %1891 = vmatmul.mubr.bf16.gmra.mxu0 %v1750
      %v1892 = vpop.f32.mrf.mxu0
      %v1893 = vadd.f32 0.0, %v1892
      %v1894 = vpop.f32.mrf.mxu0
      %v1895 = vpop.f32.mrf.mxu0
      %v1896 = vadd.f32 0.0, %v1895
      %v1897 = vpop.f32.mrf.mxu0
      %1898 = vmatprep.mubr.bf16.mxu0 0
      %1899 = vmatmul.mubr.bf16.gmra.mxu0 %v1751
      %v1900 = vpop.f32.mrf.mxu0
      %v1901 = vadd.f32 0.0, %v1900
      %v1902 = vpop.f32.mrf.mxu0
      %v1903 = vpop.f32.mrf.mxu0
      %v1904 = vadd.f32 0.0, %v1903
      %v1905 = vpop.f32.mrf.mxu0
      %1906 = vmatprep.mubr.bf16.mxu0 0
      %1907 = vmatmul.mubr.bf16.gmra.mxu0 %v1752
      %v1908 = vpop.f32.mrf.mxu0
      %v1909 = vadd.f32 0.0, %v1908
      %v1910 = vpop.f32.mrf.mxu0
      %v1911 = vpop.f32.mrf.mxu0
      %v1912 = vadd.f32 0.0, %v1911
      %v1913 = vpop.f32.mrf.mxu0
      %1914 = vmatprep.mubr.bf16.mxu0 0
      %1915 = vmatmul.mubr.bf16.gmra.mxu0 %v1753
      %v1916 = vpop.f32.mrf.mxu0
      %v1917 = vadd.f32 0.0, %v1916
      %v1918 = vpop.f32.mrf.mxu0
      %v1919 = vpop.f32.mrf.mxu0
      %v1920 = vadd.f32 0.0, %v1919
      %v1921 = vpop.f32.mrf.mxu0
      %1922 = vmatprep.mubr.bf16.mxu0 0
      %1923 = vmatmul.mubr.bf16.gmra.mxu0 %v1754
      %v1924 = vpop.f32.mrf.mxu0
      %v1925 = vadd.f32 0.0, %v1924
      %v1926 = vpop.f32.mrf.mxu0
      %v1927 = vpop.f32.mrf.mxu0
      %v1928 = vadd.f32 0.0, %v1927
      %v1929 = vpop.f32.mrf.mxu0
      %1930 = vmatprep.mubr.bf16.mxu0 0
      %1931 = vmatmul.mubr.bf16.gmra.mxu0 %v1755
      %v1932 = vpop.f32.mrf.mxu0
      %v1933 = vadd.f32 0.0, %v1932
      %v1934 = vpop.f32.mrf.mxu0
      %v1935 = vpop.f32.mrf.mxu0
      %v1936 = vadd.f32 0.0, %v1935
      %v1937 = vpop.f32.mrf.mxu0
      %1938 = vmatprep.mubr.bf16.mxu0 0
      %1939 = vmatmul.mubr.bf16.gmra.mxu0 %v1756
      %v1940 = vpop.f32.mrf.mxu0
      %v1941 = vadd.f32 0.0, %v1940
      %v1942 = vpop.f32.mrf.mxu0
      %v1943 = vpop.f32.mrf.mxu0
      %v1944 = vadd.f32 0.0, %v1943
      %v1945 = vpop.f32.mrf.mxu0
      %1946 = vmatprep.mubr.bf16.mxu0 0
      %1947 = vmatmul.mubr.bf16.gmra.mxu0 %v1757
      %v1948 = vpop.f32.mrf.mxu0
      %v1949 = vadd.f32 0.0, %v1948
      %v1950 = vpop.f32.mrf.mxu0
      %v1951 = vpop.f32.mrf.mxu0
      %v1952 = vadd.f32 0.0, %v1951
      %v1953 = vpop.f32.mrf.mxu0
      %1954 = vmatprep.mubr.bf16.mxu0 0
      %1955 = vmatmul.mubr.bf16.gmra.mxu0 %v1758
      %v1956 = vpop.f32.mrf.mxu0
      %v1957 = vadd.f32 0.0, %v1956
      %v1958 = vpop.f32.mrf.mxu0
      %v1959 = vpop.f32.mrf.mxu0
      %v1960 = vadd.f32 0.0, %v1959
      %v1961 = vpop.f32.mrf.mxu0
      %1962 = vmatprep.mubr.bf16.mxu0 0
      %1963 = vmatmul.mubr.bf16.gmra.mxu0 %v1759
      %v1964 = vpop.f32.mrf.mxu0
      %v1965 = vadd.f32 0.0, %v1964
      %v1966 = vpop.f32.mrf.mxu0
      %v1967 = vpop.f32.mrf.mxu0
      %v1968 = vadd.f32 0.0, %v1967
      %v1969 = vpop.f32.mrf.mxu0
      %1970 = vmatprep.mubr.bf16.mxu0 0
      %1971 = vmatmul.mubr.bf16.gmra.mxu0 %v1760
      %v1972 = vpop.f32.mrf.mxu0
      %v1973 = vadd.f32 0.0, %v1972
      %v1974 = vpop.f32.mrf.mxu0
      %v1975 = vpop.f32.mrf.mxu0
      %v1976 = vadd.f32 0.0, %v1975
      %v1977 = vpop.f32.mrf.mxu0
      %1978 = vmatprep.mubr.bf16.mxu0 0
      %1979 = vmatmul.mubr.bf16.gmra.mxu0 %v1761
      %v1980 = vpop.f32.mrf.mxu0
      %v1981 = vadd.f32 0.0, %v1980
      %v1982 = vpop.f32.mrf.mxu0
      %v1983 = vpop.f32.mrf.mxu0
      %v1984 = vadd.f32 0.0, %v1983
      %v1985 = vpop.f32.mrf.mxu0
      %1986 = vdwg.mxu0
      %v1987 = vld [vmem:[#allocation2] sm:$0xff]
      %v1988 = vld [vmem:[#allocation2 + $0x8] sm:$0xff]
      %v1989 = vld [vmem:[#allocation2 + $0x10] sm:$0xff]
      %v1990 = vld [vmem:[#allocation2 + $0x18] sm:$0xff]
      %v1991 = vld [vmem:[#allocation2 + $0x20] sm:$0xff]
      %v1992 = vld [vmem:[#allocation2 + $0x28] sm:$0xff]
      %v1993 = vld [vmem:[#allocation2 + $0x30] sm:$0xff]
      %v1994 = vld [vmem:[#allocation2 + $0x38] sm:$0xff]
      %v1995 = vld [vmem:[#allocation2 + $0x40] sm:$0xff]
      %v1996 = vld [vmem:[#allocation2 + $0x48] sm:$0xff]
      %v1997 = vld [vmem:[#allocation2 + $0x50] sm:$0xff]
      %v1998 = vld [vmem:[#allocation2 + $0x58] sm:$0xff]
      %v1999 = vld [vmem:[#allocation2 + $0x60] sm:$0xff]
      %v2000 = vld [vmem:[#allocation2 + $0x68] sm:$0xff]
      %v2001 = vld [vmem:[#allocation2 + $0x70] sm:$0xff]
      %v2002 = vld [vmem:[#allocation2 + $0x78] sm:$0xff]
      %v2003 = vld [vmem:[#allocation2 + $0x80] sm:$0xff]
      %v2004 = vld [vmem:[#allocation2 + $0x88] sm:$0xff]
      %v2005 = vld [vmem:[#allocation2 + $0x90] sm:$0xff]
      %v2006 = vld [vmem:[#allocation2 + $0x98] sm:$0xff]
      %v2007 = vld [vmem:[#allocation2 + $0xa0] sm:$0xff]
      %v2008 = vld [vmem:[#allocation2 + $0xa8] sm:$0xff]
      %v2009 = vld [vmem:[#allocation2 + $0xb0] sm:$0xff]
      %v2010 = vld [vmem:[#allocation2 + $0xb8] sm:$0xff]
      %v2011 = vld [vmem:[#allocation2 + $0xc0] sm:$0xff]
      %v2012 = vld [vmem:[#allocation2 + $0xc8] sm:$0xff]
      %v2013 = vld [vmem:[#allocation2 + $0xd0] sm:$0xff]
      %v2014 = vld [vmem:[#allocation2 + $0xd8] sm:$0xff]
      %v2015 = vld [vmem:[#allocation2 + $0xe0] sm:$0xff]
      %v2016 = vld [vmem:[#allocation2 + $0xe8] sm:$0xff]
      %v2017 = vld [vmem:[#allocation2 + $0xf0] sm:$0xff]
      %v2018 = vld [vmem:[#allocation2 + $0xf8] sm:$0xff]
      %v2019 = vadd.f32 %v1987, %v1861
      %v2020 = vadd.f32 %v1988, %v1864
      %v2021 = vadd.f32 %v1989, %v1869
      %v2022 = vadd.f32 %v1990, %v1872
      %v2023 = vadd.f32 %v1991, %v1877
      %v2024 = vadd.f32 %v1992, %v1880
      %v2025 = vadd.f32 %v1993, %v1885
      %v2026 = vadd.f32 %v1994, %v1888
      %v2027 = vadd.f32 %v1995, %v1893
      %v2028 = vadd.f32 %v1996, %v1896
      %v2029 = vadd.f32 %v1997, %v1901
      %v2030 = vadd.f32 %v1998, %v1904
      %v2031 = vadd.f32 %v1999, %v1909
      %v2032 = vadd.f32 %v2000, %v1912
      %v2033 = vadd.f32 %v2001, %v1917
      %v2034 = vadd.f32 %v2002, %v1920
      %v2035 = vadd.f32 %v2003, %v1925
      %v2036 = vadd.f32 %v2004, %v1928
      %v2037 = vadd.f32 %v2005, %v1933
      %v2038 = vadd.f32 %v2006, %v1936
      %v2039 = vadd.f32 %v2007, %v1941
      %v2040 = vadd.f32 %v2008, %v1944
      %v2041 = vadd.f32 %v2009, %v1949
      %v2042 = vadd.f32 %v2010, %v1952
      %v2043 = vadd.f32 %v2011, %v1957
      %v2044 = vadd.f32 %v2012, %v1960
      %v2045 = vadd.f32 %v2013, %v1965
      %v2046 = vadd.f32 %v2014, %v1968
      %v2047 = vadd.f32 %v2015, %v1973
      %v2048 = vadd.f32 %v2016, %v1976
      %v2049 = vadd.f32 %v2017, %v1981
      %v2050 = vadd.f32 %v2018, %v1984
      %2051 = vst [vmem:[#allocation2] sm:$0xff] %v2019
      %2052 = vst [vmem:[#allocation2 + $0x8] sm:$0xff] %v2020
      %2053 = vst [vmem:[#allocation2 + $0x10] sm:$0xff] %v2021
      %2054 = vst [vmem:[#allocation2 + $0x18] sm:$0xff] %v2022
      %2055 = vst [vmem:[#allocation2 + $0x20] sm:$0xff] %v2023
      %2056 = vst [vmem:[#allocation2 + $0x28] sm:$0xff] %v2024
      %2057 = vst [vmem:[#allocation2 + $0x30] sm:$0xff] %v2025
      %2058 = vst [vmem:[#allocation2 + $0x38] sm:$0xff] %v2026
      %2059 = vst [vmem:[#allocation2 + $0x40] sm:$0xff] %v2027
      %2060 = vst [vmem:[#allocation2 + $0x48] sm:$0xff] %v2028
      %2061 = vst [vmem:[#allocation2 + $0x50] sm:$0xff] %v2029
      %2062 = vst [vmem:[#allocation2 + $0x58] sm:$0xff] %v2030
      %2063 = vst [vmem:[#allocation2 + $0x60] sm:$0xff] %v2031
      %2064 = vst [vmem:[#allocation2 + $0x68] sm:$0xff] %v2032
      %2065 = vst [vmem:[#allocation2 + $0x70] sm:$0xff] %v2033
      %2066 = vst [vmem:[#allocation2 + $0x78] sm:$0xff] %v2034
      %2067 = vst [vmem:[#allocation2 + $0x80] sm:$0xff] %v2035
      %2068 = vst [vmem:[#allocation2 + $0x88] sm:$0xff] %v2036
      %2069 = vst [vmem:[#allocation2 + $0x90] sm:$0xff] %v2037
      %2070 = vst [vmem:[#allocation2 + $0x98] sm:$0xff] %v2038
      %2071 = vst [vmem:[#allocation2 + $0xa0] sm:$0xff] %v2039
      %2072 = vst [vmem:[#allocation2 + $0xa8] sm:$0xff] %v2040
      %2073 = vst [vmem:[#allocation2 + $0xb0] sm:$0xff] %v2041
      %2074 = vst [vmem:[#allocation2 + $0xb8] sm:$0xff] %v2042
      %2075 = vst [vmem:[#allocation2 + $0xc0] sm:$0xff] %v2043
      %2076 = vst [vmem:[#allocation2 + $0xc8] sm:$0xff] %v2044
      %2077 = vst [vmem:[#allocation2 + $0xd0] sm:$0xff] %v2045
      %2078 = vst [vmem:[#allocation2 + $0xd8] sm:$0xff] %v2046
      %2079 = vst [vmem:[#allocation2 + $0xe0] sm:$0xff] %v2047
      %2080 = vst [vmem:[#allocation2 + $0xe8] sm:$0xff] %v2048
      %2081 = vst [vmem:[#allocation2 + $0xf0] sm:$0xff] %v2049
      %2082 = vst [vmem:[#allocation2 + $0xf8] sm:$0xff] %v2050
      %s2083 = scalar_lea.vmem %s1, 256
      %v2084 = vld [vmem:[%s2083] sm:$0xf]
      %v2085 = vld [vmem:[%s2083 + $0x4] sm:$0xf]
      %v2086 = vld [vmem:[%s2083 + $0x8] sm:$0xf]
      %v2087 = vld [vmem:[%s2083 + $0xc] sm:$0xf]
      %v2088 = vld [vmem:[%s2083 + $0x10] sm:$0xf]
      %v2089 = vld [vmem:[%s2083 + $0x14] sm:$0xf]
      %v2090 = vld [vmem:[%s2083 + $0x18] sm:$0xf]
      %v2091 = vld [vmem:[%s2083 + $0x1c] sm:$0xf]
      %v2092 = vld [vmem:[%s2083 + $0x20] sm:$0xf]
      %v2093 = vld [vmem:[%s2083 + $0x24] sm:$0xf]
      %v2094 = vld [vmem:[%s2083 + $0x28] sm:$0xf]
      %v2095 = vld [vmem:[%s2083 + $0x2c] sm:$0xf]
      %v2096 = vld [vmem:[%s2083 + $0x30] sm:$0xf]
      %v2097 = vld [vmem:[%s2083 + $0x34] sm:$0xf]
      %v2098 = vld [vmem:[%s2083 + $0x38] sm:$0xf]
      %v2099 = vld [vmem:[%s2083 + $0x3c] sm:$0xf]
      %v2100 = vunpack.c.l.b16 %v1662
      %v2101 = vunpack.c.l.b16 %v1672
      %v2102 = vpack.c.b16 %v2101, %v2100
      %v2120 = vunpack.c.l.b16 %v2084
      %v2121 = vunpack.c.l.b16 %v2085
      %v2122 = vunpack.c.l.b16 %v2086
      %v2123 = vunpack.c.l.b16 %v2087
      %v2124 = vunpack.c.l.b16 %v2088
      %v2125 = vunpack.c.l.b16 %v2089
      %v2126 = vunpack.c.l.b16 %v2090
      %v2127 = vunpack.c.l.b16 %v2091
      %v2128 = vunpack.c.l.b16 %v2092
      %v2129 = vunpack.c.l.b16 %v2093
      %v2130 = vunpack.c.l.b16 %v2094
      %v2131 = vunpack.c.l.b16 %v2095
      %v2132 = vunpack.c.l.b16 %v2096
      %v2133 = vunpack.c.l.b16 %v2097
      %v2134 = vunpack.c.l.b16 %v2098
      %v2135 = vunpack.c.l.b16 %v2099
      %v2136 = vpack.c.b16 %v2121, %v2120
      %v2137 = vpack.c.b16 %v2123, %v2122
      %v2138 = vpack.c.b16 %v2125, %v2124
      %v2139 = vpack.c.b16 %v2127, %v2126
      %v2140 = vpack.c.b16 %v2129, %v2128
      %v2141 = vpack.c.b16 %v2131, %v2130
      %v2142 = vpack.c.b16 %v2133, %v2132
      %v2143 = vpack.c.b16 %v2135, %v2134
      %2152 = vmatprep.subr.bf16.mxu0 0
      %2153 = vmatpush1.bf16.msra.mxu0 %v2143
      %2154 = vmatprep.subr.bf16.mxu0 0
      %2155 = vmatpush1.bf16.msra.mxu0 %v2142
      %2156 = vmatprep.subr.bf16.mxu0 0
      %2157 = vmatpush1.bf16.msra.mxu0 %v2141
      %2158 = vmatprep.subr.bf16.mxu0 0
      %2159 = vmatpush1.bf16.msra.mxu0 %v2140
      %2160 = vmatprep.subr.bf16.mxu0 0
      %2161 = vmatpush1.bf16.msra.mxu0 %v2139
      %2162 = vmatprep.subr.bf16.mxu0 0
      %2163 = vmatpush1.bf16.msra.mxu0 %v2138
      %2164 = vmatprep.subr.bf16.mxu0 0
      %2165 = vmatpush1.bf16.msra.mxu0 %v2137
      %2166 = vmatprep.subr.bf16.mxu0 0
      %2167 = vmatpush1.bf16.msra.mxu0 %v2136
      %2168 = vmatprep.subr.bf16.mxu0 0
      %2169 = vmatpush2.bf16.msra.mxu0 0
      %2170 = vmatprep.subr.bf16.mxu0 0
      %2171 = vmatpush2.bf16.msra.mxu0 0
      %2172 = vmatprep.subr.bf16.mxu0 0
      %2173 = vmatpush2.bf16.msra.mxu0 0
      %2174 = vmatprep.subr.bf16.mxu0 0
      %2175 = vmatpush2.bf16.msra.mxu0 0
      %2176 = vmatprep.subr.bf16.mxu0 0
      %2177 = vmatpush2.bf16.msra.mxu0 0
      %2178 = vmatprep.subr.bf16.mxu0 0
      %2179 = vmatpush2.bf16.msra.mxu0 0
      %2180 = vmatprep.subr.bf16.mxu0 0
      %2181 = vmatpush2.bf16.msra.mxu0 0
      %2182 = vmatprep.subr.bf16.mxu0 0
      %2183 = vmatpush2.bf16.msra.mxu0 0
      %2184 = vmatprep.mubr.bf16.mxu0 0
      %2185 = vmatmul.mubr.bf16.gmra.mxu0 %v1747
      %v2186 = vpop.f32.mrf.mxu0
      %v2187 = vadd.f32 0.0, %v2186
      %v2188 = vpop.f32.mrf.mxu0
      %v2189 = vpop.f32.mrf.mxu0
      %v2190 = vadd.f32 0.0, %v2189
      %v2191 = vpop.f32.mrf.mxu0
      %2192 = vmatprep.mubr.bf16.mxu0 0
      %2193 = vmatmul.mubr.bf16.gmra.mxu0 %v1748
      %v2194 = vpop.f32.mrf.mxu0
      %v2195 = vadd.f32 0.0, %v2194
      %v2196 = vpop.f32.mrf.mxu0
      %v2197 = vpop.f32.mrf.mxu0
      %v2198 = vadd.f32 0.0, %v2197
      %v2199 = vpop.f32.mrf.mxu0
      %2200 = vmatprep.mubr.bf16.mxu0 0
      %2201 = vmatmul.mubr.bf16.gmra.mxu0 %v1749
      %v2202 = vpop.f32.mrf.mxu0
      %v2203 = vadd.f32 0.0, %v2202
      %v2204 = vpop.f32.mrf.mxu0
      %v2205 = vpop.f32.mrf.mxu0
      %v2206 = vadd.f32 0.0, %v2205
      %v2207 = vpop.f32.mrf.mxu0
      %2208 = vmatprep.mubr.bf16.mxu0 0
      %2209 = vmatmul.mubr.bf16.gmra.mxu0 %v1750
      %v2210 = vpop.f32.mrf.mxu0
      %v2211 = vadd.f32 0.0, %v2210
      %v2212 = vpop.f32.mrf.mxu0
      %v2213 = vpop.f32.mrf.mxu0
      %v2214 = vadd.f32 0.0, %v2213
      %v2215 = vpop.f32.mrf.mxu0
      %2216 = vmatprep.mubr.bf16.mxu0 0
      %2217 = vmatmul.mubr.bf16.gmra.mxu0 %v1751
      %v2218 = vpop.f32.mrf.mxu0
      %v2219 = vadd.f32 0.0, %v2218
      %v2220 = vpop.f32.mrf.mxu0
      %v2221 = vpop.f32.mrf.mxu0
      %v2222 = vadd.f32 0.0, %v2221
      %v2223 = vpop.f32.mrf.mxu0
      %2224 = vmatprep.mubr.bf16.mxu0 0
      %2225 = vmatmul.mubr.bf16.gmra.mxu0 %v1752
      %v2226 = vpop.f32.mrf.mxu0
      %v2227 = vadd.f32 0.0, %v2226
      %v2228 = vpop.f32.mrf.mxu0
      %v2229 = vpop.f32.mrf.mxu0
      %v2230 = vadd.f32 0.0, %v2229
      %v2231 = vpop.f32.mrf.mxu0
      %2232 = vmatprep.mubr.bf16.mxu0 0
      %2233 = vmatmul.mubr.bf16.gmra.mxu0 %v1753
      %v2234 = vpop.f32.mrf.mxu0
      %v2235 = vadd.f32 0.0, %v2234
      %v2236 = vpop.f32.mrf.mxu0
      %v2237 = vpop.f32.mrf.mxu0
      %v2238 = vadd.f32 0.0, %v2237
      %v2239 = vpop.f32.mrf.mxu0
      %2240 = vmatprep.mubr.bf16.mxu0 0
      %2241 = vmatmul.mubr.bf16.gmra.mxu0 %v1754
      %v2242 = vpop.f32.mrf.mxu0
      %v2243 = vadd.f32 0.0, %v2242
      %v2244 = vpop.f32.mrf.mxu0
      %v2245 = vpop.f32.mrf.mxu0
      %v2246 = vadd.f32 0.0, %v2245
      %v2247 = vpop.f32.mrf.mxu0
      %2248 = vmatprep.mubr.bf16.mxu0 0
      %2249 = vmatmul.mubr.bf16.gmra.mxu0 %v1755
      %v2250 = vpop.f32.mrf.mxu0
      %v2251 = vadd.f32 0.0, %v2250
      %v2252 = vpop.f32.mrf.mxu0
      %v2253 = vpop.f32.mrf.mxu0
      %v2254 = vadd.f32 0.0, %v2253
      %v2255 = vpop.f32.mrf.mxu0
      %2256 = vmatprep.mubr.bf16.mxu0 0
      %2257 = vmatmul.mubr.bf16.gmra.mxu0 %v1756
      %v2258 = vpop.f32.mrf.mxu0
      %v2259 = vadd.f32 0.0, %v2258
      %v2260 = vpop.f32.mrf.mxu0
      %v2261 = vpop.f32.mrf.mxu0
      %v2262 = vadd.f32 0.0, %v2261
      %v2263 = vpop.f32.mrf.mxu0
      %2264 = vmatprep.mubr.bf16.mxu0 0
      %2265 = vmatmul.mubr.bf16.gmra.mxu0 %v1757
      %v2266 = vpop.f32.mrf.mxu0
      %v2267 = vadd.f32 0.0, %v2266
      %v2268 = vpop.f32.mrf.mxu0
      %v2269 = vpop.f32.mrf.mxu0
      %v2270 = vadd.f32 0.0, %v2269
      %v2271 = vpop.f32.mrf.mxu0
      %2272 = vmatprep.mubr.bf16.mxu0 0
      %2273 = vmatmul.mubr.bf16.gmra.mxu0 %v1758
      %v2274 = vpop.f32.mrf.mxu0
      %v2275 = vadd.f32 0.0, %v2274
      %v2276 = vpop.f32.mrf.mxu0
      %v2277 = vpop.f32.mrf.mxu0
      %v2278 = vadd.f32 0.0, %v2277
      %v2279 = vpop.f32.mrf.mxu0
      %2280 = vmatprep.mubr.bf16.mxu0 0
      %2281 = vmatmul.mubr.bf16.gmra.mxu0 %v1759
      %v2282 = vpop.f32.mrf.mxu0
      %v2283 = vadd.f32 0.0, %v2282
      %v2284 = vpop.f32.mrf.mxu0
      %v2285 = vpop.f32.mrf.mxu0
      %v2286 = vadd.f32 0.0, %v2285
      %v2287 = vpop.f32.mrf.mxu0
      %2288 = vmatprep.mubr.bf16.mxu0 0
      %2289 = vmatmul.mubr.bf16.gmra.mxu0 %v1760
      %v2290 = vpop.f32.mrf.mxu0
      %v2291 = vadd.f32 0.0, %v2290
      %v2292 = vpop.f32.mrf.mxu0
      %v2293 = vpop.f32.mrf.mxu0
      %v2294 = vadd.f32 0.0, %v2293
      %v2295 = vpop.f32.mrf.mxu0
      %2296 = vmatprep.mubr.bf16.mxu0 0
      %2297 = vmatmul.mubr.bf16.gmra.mxu0 %v1761
      %v2298 = vpop.f32.mrf.mxu0
      %v2299 = vadd.f32 0.0, %v2298
      %v2300 = vpop.f32.mrf.mxu0
      %v2301 = vpop.f32.mrf.mxu0
      %v2302 = vadd.f32 0.0, %v2301
      %v2303 = vpop.f32.mrf.mxu0
      %2304 = vmatprep.mubr.bf16.mxu0 0
      %2305 = vmatmul.mubr.bf16.gmra.mxu0 %v2102
      %v2306 = vpop.f32.mrf.mxu0
      %v2307 = vadd.f32 0.0, %v2306
      %v2308 = vpop.f32.mrf.mxu0
      %v2309 = vpop.f32.mrf.mxu0
      %v2310 = vadd.f32 0.0, %v2309
      %v2311 = vpop.f32.mrf.mxu0
      %2312 = vdwg.mxu0
      %v2313 = vld [vmem:[#allocation2] sm:$0xff]
      %v2314 = vld [vmem:[#allocation2 + $0x8] sm:$0xff]
      %v2315 = vld [vmem:[#allocation2 + $0x10] sm:$0xff]
      %v2316 = vld [vmem:[#allocation2 + $0x18] sm:$0xff]
      %v2317 = vld [vmem:[#allocation2 + $0x20] sm:$0xff]
      %v2318 = vld [vmem:[#allocation2 + $0x28] sm:$0xff]
      %v2319 = vld [vmem:[#allocation2 + $0x30] sm:$0xff]
      %v2320 = vld [vmem:[#allocation2 + $0x38] sm:$0xff]
      %v2321 = vld [vmem:[#allocation2 + $0x40] sm:$0xff]
      %v2322 = vld [vmem:[#allocation2 + $0x48] sm:$0xff]
      %v2323 = vld [vmem:[#allocation2 + $0x50] sm:$0xff]
      %v2324 = vld [vmem:[#allocation2 + $0x58] sm:$0xff]
      %v2325 = vld [vmem:[#allocation2 + $0x60] sm:$0xff]
      %v2326 = vld [vmem:[#allocation2 + $0x68] sm:$0xff]
      %v2327 = vld [vmem:[#allocation2 + $0x70] sm:$0xff]
      %v2328 = vld [vmem:[#allocation2 + $0x78] sm:$0xff]
      %v2329 = vld [vmem:[#allocation2 + $0x80] sm:$0xff]
      %v2330 = vld [vmem:[#allocation2 + $0x88] sm:$0xff]
      %v2331 = vld [vmem:[#allocation2 + $0x90] sm:$0xff]
      %v2332 = vld [vmem:[#allocation2 + $0x98] sm:$0xff]
      %v2333 = vld [vmem:[#allocation2 + $0xa0] sm:$0xff]
      %v2334 = vld [vmem:[#allocation2 + $0xa8] sm:$0xff]
      %v2335 = vld [vmem:[#allocation2 + $0xb0] sm:$0xff]
      %v2336 = vld [vmem:[#allocation2 + $0xb8] sm:$0xff]
      %v2337 = vld [vmem:[#allocation2 + $0xc0] sm:$0xff]
      %v2338 = vld [vmem:[#allocation2 + $0xc8] sm:$0xff]
      %v2339 = vld [vmem:[#allocation2 + $0xd0] sm:$0xff]
      %v2340 = vld [vmem:[#allocation2 + $0xd8] sm:$0xff]
      %v2341 = vld [vmem:[#allocation2 + $0xe0] sm:$0xff]
      %v2342 = vld [vmem:[#allocation2 + $0xe8] sm:$0xff]
      %v2343 = vld [vmem:[#allocation2 + $0xf0] sm:$0xff]
      %v2344 = vld [vmem:[#allocation2 + $0xf8] sm:$0xff]
      %v2345 = vadd.f32 %v2313, %v2187
      %v2346 = vadd.f32 %v2314, %v2190
      %v2347 = vadd.f32 %v2315, %v2195
      %v2348 = vadd.f32 %v2316, %v2198
      %v2349 = vadd.f32 %v2317, %v2203
      %v2350 = vadd.f32 %v2318, %v2206
      %v2351 = vadd.f32 %v2319, %v2211
      %v2352 = vadd.f32 %v2320, %v2214
      %v2353 = vadd.f32 %v2321, %v2219
      %v2354 = vadd.f32 %v2322, %v2222
      %v2355 = vadd.f32 %v2323, %v2227
      %v2356 = vadd.f32 %v2324, %v2230
      %v2357 = vadd.f32 %v2325, %v2235
      %v2358 = vadd.f32 %v2326, %v2238
      %v2359 = vadd.f32 %v2327, %v2243
      %v2360 = vadd.f32 %v2328, %v2246
      %v2361 = vadd.f32 %v2329, %v2251
      %v2362 = vadd.f32 %v2330, %v2254
      %v2363 = vadd.f32 %v2331, %v2259
      %v2364 = vadd.f32 %v2332, %v2262
      %v2365 = vadd.f32 %v2333, %v2267
      %v2366 = vadd.f32 %v2334, %v2270
      %v2367 = vadd.f32 %v2335, %v2275
      %v2368 = vadd.f32 %v2336, %v2278
      %v2369 = vadd.f32 %v2337, %v2283
      %v2370 = vadd.f32 %v2338, %v2286
      %v2371 = vadd.f32 %v2339, %v2291
      %v2372 = vadd.f32 %v2340, %v2294
      %v2373 = vadd.f32 %v2341, %v2299
      %v2374 = vadd.f32 %v2342, %v2302
      %v2375 = vadd.f32 %v2343, %v2307
      %v2376 = vadd.f32 %v2344, %v2310
      %2377 = vst [vmem:[#allocation2] sm:$0xff] %v2345
      %2378 = vst [vmem:[#allocation2 + $0x8] sm:$0xff] %v2346
      %2379 = vst [vmem:[#allocation2 + $0x10] sm:$0xff] %v2347
      %2380 = vst [vmem:[#allocation2 + $0x18] sm:$0xff] %v2348
      %2381 = vst [vmem:[#allocation2 + $0x20] sm:$0xff] %v2349
      %2382 = vst [vmem:[#allocation2 + $0x28] sm:$0xff] %v2350
      %2383 = vst [vmem:[#allocation2 + $0x30] sm:$0xff] %v2351
      %2384 = vst [vmem:[#allocation2 + $0x38] sm:$0xff] %v2352
      %2385 = vst [vmem:[#allocation2 + $0x40] sm:$0xff] %v2353
      %2386 = vst [vmem:[#allocation2 + $0x48] sm:$0xff] %v2354
      %2387 = vst [vmem:[#allocation2 + $0x50] sm:$0xff] %v2355
      %2388 = vst [vmem:[#allocation2 + $0x58] sm:$0xff] %v2356
      %2389 = vst [vmem:[#allocation2 + $0x60] sm:$0xff] %v2357
      %2390 = vst [vmem:[#allocation2 + $0x68] sm:$0xff] %v2358
      %2391 = vst [vmem:[#allocation2 + $0x70] sm:$0xff] %v2359
      %2392 = vst [vmem:[#allocation2 + $0x78] sm:$0xff] %v2360
      %2393 = vst [vmem:[#allocation2 + $0x80] sm:$0xff] %v2361
      %2394 = vst [vmem:[#allocation2 + $0x88] sm:$0xff] %v2362
      %2395 = vst [vmem:[#allocation2 + $0x90] sm:$0xff] %v2363
      %2396 = vst [vmem:[#allocation2 + $0x98] sm:$0xff] %v2364
      %2397 = vst [vmem:[#allocation2 + $0xa0] sm:$0xff] %v2365
      %2398 = vst [vmem:[#allocation2 + $0xa8] sm:$0xff] %v2366
      %2399 = vst [vmem:[#allocation2 + $0xb0] sm:$0xff] %v2367
      %2400 = vst [vmem:[#allocation2 + $0xb8] sm:$0xff] %v2368
      %2401 = vst [vmem:[#allocation2 + $0xc0] sm:$0xff] %v2369
      %2402 = vst [vmem:[#allocation2 + $0xc8] sm:$0xff] %v2370
      %2403 = vst [vmem:[#allocation2 + $0xd0] sm:$0xff] %v2371
      %2404 = vst [vmem:[#allocation2 + $0xd8] sm:$0xff] %v2372
      %2405 = vst [vmem:[#allocation2 + $0xe0] sm:$0xff] %v2373
      %2406 = vst [vmem:[#allocation2 + $0xe8] sm:$0xff] %v2374
      %2407 = vst [vmem:[#allocation2 + $0xf0] sm:$0xff] %v2375
      %2408 = vst [vmem:[#allocation2 + $0xf8] sm:$0xff] %v2376
      %s2409 = scalar_lea.vmem %s1, 448
      %v2410 = vld [vmem:[%s2409] sm:$0xf]
      %v2411 = vld [vmem:[%s2409 + $0x4] sm:$0xf]
      %v2412 = vld [vmem:[%s2409 + $0x8] sm:$0xf]
      %v2413 = vld [vmem:[%s2409 + $0xc] sm:$0xf]
      %v2414 = vld [vmem:[%s2409 + $0x10] sm:$0xf]
      %v2415 = vld [vmem:[%s2409 + $0x14] sm:$0xf]
      %v2416 = vld [vmem:[%s2409 + $0x18] sm:$0xf]
      %v2417 = vld [vmem:[%s2409 + $0x1c] sm:$0xf]
      %v2418 = vld [vmem:[%s2409 + $0x20] sm:$0xf]
      %v2419 = vld [vmem:[%s2409 + $0x24] sm:$0xf]
      %v2420 = vld [vmem:[%s2409 + $0x28] sm:$0xf]
      %v2421 = vld [vmem:[%s2409 + $0x2c] sm:$0xf]
      %v2422 = vld [vmem:[%s2409 + $0x30] sm:$0xf]
      %v2423 = vld [vmem:[%s2409 + $0x34] sm:$0xf]
      %v2424 = vld [vmem:[%s2409 + $0x38] sm:$0xf]
      %v2425 = vld [vmem:[%s2409 + $0x3c] sm:$0xf]
      %v2426 = vunpack.c.l.b16 %v1686
      %v2427 = vunpack.c.l.b16 %v1696
      %v2428 = vpack.c.b16 %v2427, %v2426
      %v2446 = vunpack.c.l.b16 %v2410
      %v2447 = vunpack.c.l.b16 %v2411
      %v2448 = vunpack.c.l.b16 %v2412
      %v2449 = vunpack.c.l.b16 %v2413
      %v2450 = vunpack.c.l.b16 %v2414
      %v2451 = vunpack.c.l.b16 %v2415
      %v2452 = vunpack.c.l.b16 %v2416
      %v2453 = vunpack.c.l.b16 %v2417
      %v2454 = vunpack.c.l.b16 %v2418
      %v2455 = vunpack.c.l.b16 %v2419
      %v2456 = vunpack.c.l.b16 %v2420
      %v2457 = vunpack.c.l.b16 %v2421
      %v2458 = vunpack.c.l.b16 %v2422
      %v2459 = vunpack.c.l.b16 %v2423
      %v2460 = vunpack.c.l.b16 %v2424
      %v2461 = vunpack.c.l.b16 %v2425
      %v2462 = vpack.c.b16 %v2447, %v2446
      %v2463 = vpack.c.b16 %v2449, %v2448
      %v2464 = vpack.c.b16 %v2451, %v2450
      %v2465 = vpack.c.b16 %v2453, %v2452
      %v2466 = vpack.c.b16 %v2455, %v2454
      %v2467 = vpack.c.b16 %v2457, %v2456
      %v2468 = vpack.c.b16 %v2459, %v2458
      %v2469 = vpack.c.b16 %v2461, %v2460
      %2478 = vmatprep.subr.bf16.mxu0 0
      %2479 = vmatpush1.bf16.msra.mxu0 %v2469
      %2480 = vmatprep.subr.bf16.mxu0 0
      %2481 = vmatpush1.bf16.msra.mxu0 %v2468
      %2482 = vmatprep.subr.bf16.mxu0 0
      %2483 = vmatpush1.bf16.msra.mxu0 %v2467
      %2484 = vmatprep.subr.bf16.mxu0 0
      %2485 = vmatpush1.bf16.msra.mxu0 %v2466
      %2486 = vmatprep.subr.bf16.mxu0 0
      %2487 = vmatpush1.bf16.msra.mxu0 %v2465
      %2488 = vmatprep.subr.bf16.mxu0 0
      %2489 = vmatpush1.bf16.msra.mxu0 %v2464
      %2490 = vmatprep.subr.bf16.mxu0 0
      %2491 = vmatpush1.bf16.msra.mxu0 %v2463
      %2492 = vmatprep.subr.bf16.mxu0 0
      %2493 = vmatpush1.bf16.msra.mxu0 %v2462
      %2494 = vmatprep.subr.bf16.mxu0 0
      %2495 = vmatpush2.bf16.msra.mxu0 0
      %2496 = vmatprep.subr.bf16.mxu0 0
      %2497 = vmatpush2.bf16.msra.mxu0 0
      %2498 = vmatprep.subr.bf16.mxu0 0
      %2499 = vmatpush2.bf16.msra.mxu0 0
      %2500 = vmatprep.subr.bf16.mxu0 0
      %2501 = vmatpush2.bf16.msra.mxu0 0
      %2502 = vmatprep.subr.bf16.mxu0 0
      %2503 = vmatpush2.bf16.msra.mxu0 0
      %2504 = vmatprep.subr.bf16.mxu0 0
      %2505 = vmatpush2.bf16.msra.mxu0 0
      %2506 = vmatprep.subr.bf16.mxu0 0
      %2507 = vmatpush2.bf16.msra.mxu0 0
      %2508 = vmatprep.subr.bf16.mxu0 0
      %2509 = vmatpush2.bf16.msra.mxu0 0
      %2510 = vmatprep.mubr.bf16.mxu0 0
      %2511 = vmatmul.mubr.bf16.gmra.mxu0 %v1748
      %v2512 = vpop.f32.mrf.mxu0
      %v2513 = vadd.f32 0.0, %v2512
      %v2514 = vpop.f32.mrf.mxu0
      %v2515 = vpop.f32.mrf.mxu0
      %v2516 = vadd.f32 0.0, %v2515
      %v2517 = vpop.f32.mrf.mxu0
      %2518 = vmatprep.mubr.bf16.mxu0 0
      %2519 = vmatmul.mubr.bf16.gmra.mxu0 %v1749
      %v2520 = vpop.f32.mrf.mxu0
      %v2521 = vadd.f32 0.0, %v2520
      %v2522 = vpop.f32.mrf.mxu0
      %v2523 = vpop.f32.mrf.mxu0
      %v2524 = vadd.f32 0.0, %v2523
      %v2525 = vpop.f32.mrf.mxu0
      %2526 = vmatprep.mubr.bf16.mxu0 0
      %2527 = vmatmul.mubr.bf16.gmra.mxu0 %v1750
      %v2528 = vpop.f32.mrf.mxu0
      %v2529 = vadd.f32 0.0, %v2528
      %v2530 = vpop.f32.mrf.mxu0
      %v2531 = vpop.f32.mrf.mxu0
      %v2532 = vadd.f32 0.0, %v2531
      %v2533 = vpop.f32.mrf.mxu0
      %2534 = vmatprep.mubr.bf16.mxu0 0
      %2535 = vmatmul.mubr.bf16.gmra.mxu0 %v1751
      %v2536 = vpop.f32.mrf.mxu0
      %v2537 = vadd.f32 0.0, %v2536
      %v2538 = vpop.f32.mrf.mxu0
      %v2539 = vpop.f32.mrf.mxu0
      %v2540 = vadd.f32 0.0, %v2539
      %v2541 = vpop.f32.mrf.mxu0
      %2542 = vmatprep.mubr.bf16.mxu0 0
      %2543 = vmatmul.mubr.bf16.gmra.mxu0 %v1752
      %v2544 = vpop.f32.mrf.mxu0
      %v2545 = vadd.f32 0.0, %v2544
      %v2546 = vpop.f32.mrf.mxu0
      %v2547 = vpop.f32.mrf.mxu0
      %v2548 = vadd.f32 0.0, %v2547
      %v2549 = vpop.f32.mrf.mxu0
      %2550 = vmatprep.mubr.bf16.mxu0 0
      %2551 = vmatmul.mubr.bf16.gmra.mxu0 %v1753
      %v2552 = vpop.f32.mrf.mxu0
      %v2553 = vadd.f32 0.0, %v2552
      %v2554 = vpop.f32.mrf.mxu0
      %v2555 = vpop.f32.mrf.mxu0
      %v2556 = vadd.f32 0.0, %v2555
      %v2557 = vpop.f32.mrf.mxu0
      %2558 = vmatprep.mubr.bf16.mxu0 0
      %2559 = vmatmul.mubr.bf16.gmra.mxu0 %v1754
      %v2560 = vpop.f32.mrf.mxu0
      %v2561 = vadd.f32 0.0, %v2560
      %v2562 = vpop.f32.mrf.mxu0
      %v2563 = vpop.f32.mrf.mxu0
      %v2564 = vadd.f32 0.0, %v2563
      %v2565 = vpop.f32.mrf.mxu0
      %2566 = vmatprep.mubr.bf16.mxu0 0
      %2567 = vmatmul.mubr.bf16.gmra.mxu0 %v1755
      %v2568 = vpop.f32.mrf.mxu0
      %v2569 = vadd.f32 0.0, %v2568
      %v2570 = vpop.f32.mrf.mxu0
      %v2571 = vpop.f32.mrf.mxu0
      %v2572 = vadd.f32 0.0, %v2571
      %v2573 = vpop.f32.mrf.mxu0
      %2574 = vmatprep.mubr.bf16.mxu0 0
      %2575 = vmatmul.mubr.bf16.gmra.mxu0 %v1756
      %v2576 = vpop.f32.mrf.mxu0
      %v2577 = vadd.f32 0.0, %v2576
      %v2578 = vpop.f32.mrf.mxu0
      %v2579 = vpop.f32.mrf.mxu0
      %v2580 = vadd.f32 0.0, %v2579
      %v2581 = vpop.f32.mrf.mxu0
      %2582 = vmatprep.mubr.bf16.mxu0 0
      %2583 = vmatmul.mubr.bf16.gmra.mxu0 %v1757
      %v2584 = vpop.f32.mrf.mxu0
      %v2585 = vadd.f32 0.0, %v2584
      %v2586 = vpop.f32.mrf.mxu0
      %v2587 = vpop.f32.mrf.mxu0
      %v2588 = vadd.f32 0.0, %v2587
      %v2589 = vpop.f32.mrf.mxu0
      %2590 = vmatprep.mubr.bf16.mxu0 0
      %2591 = vmatmul.mubr.bf16.gmra.mxu0 %v1758
      %v2592 = vpop.f32.mrf.mxu0
      %v2593 = vadd.f32 0.0, %v2592
      %v2594 = vpop.f32.mrf.mxu0
      %v2595 = vpop.f32.mrf.mxu0
      %v2596 = vadd.f32 0.0, %v2595
      %v2597 = vpop.f32.mrf.mxu0
      %2598 = vmatprep.mubr.bf16.mxu0 0
      %2599 = vmatmul.mubr.bf16.gmra.mxu0 %v1759
      %v2600 = vpop.f32.mrf.mxu0
      %v2601 = vadd.f32 0.0, %v2600
      %v2602 = vpop.f32.mrf.mxu0
      %v2603 = vpop.f32.mrf.mxu0
      %v2604 = vadd.f32 0.0, %v2603
      %v2605 = vpop.f32.mrf.mxu0
      %2606 = vmatprep.mubr.bf16.mxu0 0
      %2607 = vmatmul.mubr.bf16.gmra.mxu0 %v1760
      %v2608 = vpop.f32.mrf.mxu0
      %v2609 = vadd.f32 0.0, %v2608
      %v2610 = vpop.f32.mrf.mxu0
      %v2611 = vpop.f32.mrf.mxu0
      %v2612 = vadd.f32 0.0, %v2611
      %v2613 = vpop.f32.mrf.mxu0
      %2614 = vmatprep.mubr.bf16.mxu0 0
      %2615 = vmatmul.mubr.bf16.gmra.mxu0 %v1761
      %v2616 = vpop.f32.mrf.mxu0
      %v2617 = vadd.f32 0.0, %v2616
      %v2618 = vpop.f32.mrf.mxu0
      %v2619 = vpop.f32.mrf.mxu0
      %v2620 = vadd.f32 0.0, %v2619
      %v2621 = vpop.f32.mrf.mxu0
      %2622 = vmatprep.mubr.bf16.mxu0 0
      %2623 = vmatmul.mubr.bf16.gmra.mxu0 %v2102
      %v2624 = vpop.f32.mrf.mxu0
      %v2625 = vadd.f32 0.0, %v2624
      %v2626 = vpop.f32.mrf.mxu0
      %v2627 = vpop.f32.mrf.mxu0
      %v2628 = vadd.f32 0.0, %v2627
      %v2629 = vpop.f32.mrf.mxu0
      %2630 = vmatprep.mubr.bf16.mxu0 0
      %2631 = vmatmul.mubr.bf16.gmra.mxu0 %v2428
      %v2632 = vpop.f32.mrf.mxu0
      %v2633 = vadd.f32 0.0, %v2632
      %v2634 = vpop.f32.mrf.mxu0
      %v2635 = vpop.f32.mrf.mxu0
      %v2636 = vadd.f32 0.0, %v2635
      %v2637 = vpop.f32.mrf.mxu0
      %2638 = vdwg.mxu0
      %v2639 = vld [vmem:[#allocation2] sm:$0xff]
      %v2640 = vld [vmem:[#allocation2 + $0x8] sm:$0xff]
      %v2641 = vld [vmem:[#allocation2 + $0x10] sm:$0xff]
      %v2642 = vld [vmem:[#allocation2 + $0x18] sm:$0xff]
      %v2643 = vld [vmem:[#allocation2 + $0x20] sm:$0xff]
      %v2644 = vld [vmem:[#allocation2 + $0x28] sm:$0xff]
      %v2645 = vld [vmem:[#allocation2 + $0x30] sm:$0xff]
      %v2646 = vld [vmem:[#allocation2 + $0x38] sm:$0xff]
      %v2647 = vld [vmem:[#allocation2 + $0x40] sm:$0xff]
      %v2648 = vld [vmem:[#allocation2 + $0x48] sm:$0xff]
      %v2649 = vld [vmem:[#allocation2 + $0x50] sm:$0xff]
      %v2650 = vld [vmem:[#allocation2 + $0x58] sm:$0xff]
      %v2651 = vld [vmem:[#allocation2 + $0x60] sm:$0xff]
      %v2652 = vld [vmem:[#allocation2 + $0x68] sm:$0xff]
      %v2653 = vld [vmem:[#allocation2 + $0x70] sm:$0xff]
      %v2654 = vld [vmem:[#allocation2 + $0x78] sm:$0xff]
      %v2655 = vld [vmem:[#allocation2 + $0x80] sm:$0xff]
      %v2656 = vld [vmem:[#allocation2 + $0x88] sm:$0xff]
      %v2657 = vld [vmem:[#allocation2 + $0x90] sm:$0xff]
      %v2658 = vld [vmem:[#allocation2 + $0x98] sm:$0xff]
      %v2659 = vld [vmem:[#allocation2 + $0xa0] sm:$0xff]
      %v2660 = vld [vmem:[#allocation2 + $0xa8] sm:$0xff]
      %v2661 = vld [vmem:[#allocation2 + $0xb0] sm:$0xff]
      %v2662 = vld [vmem:[#allocation2 + $0xb8] sm:$0xff]
      %v2663 = vld [vmem:[#allocation2 + $0xc0] sm:$0xff]
      %v2664 = vld [vmem:[#allocation2 + $0xc8] sm:$0xff]
      %v2665 = vld [vmem:[#allocation2 + $0xd0] sm:$0xff]
      %v2666 = vld [vmem:[#allocation2 + $0xd8] sm:$0xff]
      %v2667 = vld [vmem:[#allocation2 + $0xe0] sm:$0xff]
      %v2668 = vld [vmem:[#allocation2 + $0xe8] sm:$0xff]
      %v2669 = vld [vmem:[#allocation2 + $0xf0] sm:$0xff]
      %v2670 = vld [vmem:[#allocation2 + $0xf8] sm:$0xff]
      %v2671 = vadd.f32 %v2639, %v2513
      %v2672 = vadd.f32 %v2640, %v2516
      %v2673 = vadd.f32 %v2641, %v2521
      %v2674 = vadd.f32 %v2642, %v2524
      %v2675 = vadd.f32 %v2643, %v2529
      %v2676 = vadd.f32 %v2644, %v2532
      %v2677 = vadd.f32 %v2645, %v2537
      %v2678 = vadd.f32 %v2646, %v2540
      %v2679 = vadd.f32 %v2647, %v2545
      %v2680 = vadd.f32 %v2648, %v2548
      %v2681 = vadd.f32 %v2649, %v2553
      %v2682 = vadd.f32 %v2650, %v2556
      %v2683 = vadd.f32 %v2651, %v2561
      %v2684 = vadd.f32 %v2652, %v2564
      %v2685 = vadd.f32 %v2653, %v2569
      %v2686 = vadd.f32 %v2654, %v2572
      %v2687 = vadd.f32 %v2655, %v2577
      %v2688 = vadd.f32 %v2656, %v2580
      %v2689 = vadd.f32 %v2657, %v2585
      %v2690 = vadd.f32 %v2658, %v2588
      %v2691 = vadd.f32 %v2659, %v2593
      %v2692 = vadd.f32 %v2660, %v2596
      %v2693 = vadd.f32 %v2661, %v2601
      %v2694 = vadd.f32 %v2662, %v2604
      %v2695 = vadd.f32 %v2663, %v2609
      %v2696 = vadd.f32 %v2664, %v2612
      %v2697 = vadd.f32 %v2665, %v2617
      %v2698 = vadd.f32 %v2666, %v2620
      %v2699 = vadd.f32 %v2667, %v2625
      %v2700 = vadd.f32 %v2668, %v2628
      %v2701 = vadd.f32 %v2669, %v2633
      %v2702 = vadd.f32 %v2670, %v2636
      %2703 = vst [vmem:[#allocation2] sm:$0xff] %v2671
      %2704 = vst [vmem:[#allocation2 + $0x8] sm:$0xff] %v2672
      %2705 = vst [vmem:[#allocation2 + $0x10] sm:$0xff] %v2673
      %2706 = vst [vmem:[#allocation2 + $0x18] sm:$0xff] %v2674
      %2707 = vst [vmem:[#allocation2 + $0x20] sm:$0xff] %v2675
      %2708 = vst [vmem:[#allocation2 + $0x28] sm:$0xff] %v2676
      %2709 = vst [vmem:[#allocation2 + $0x30] sm:$0xff] %v2677
      %2710 = vst [vmem:[#allocation2 + $0x38] sm:$0xff] %v2678
      %2711 = vst [vmem:[#allocation2 + $0x40] sm:$0xff] %v2679
      %2712 = vst [vmem:[#allocation2 + $0x48] sm:$0xff] %v2680
      %2713 = vst [vmem:[#allocation2 + $0x50] sm:$0xff] %v2681
      %2714 = vst [vmem:[#allocation2 + $0x58] sm:$0xff] %v2682
      %2715 = vst [vmem:[#allocation2 + $0x60] sm:$0xff] %v2683
      %2716 = vst [vmem:[#allocation2 + $0x68] sm:$0xff] %v2684
      %2717 = vst [vmem:[#allocation2 + $0x70] sm:$0xff] %v2685
      %2718 = vst [vmem:[#allocation2 + $0x78] sm:$0xff] %v2686
      %2719 = vst [vmem:[#allocation2 + $0x80] sm:$0xff] %v2687
      %2720 = vst [vmem:[#allocation2 + $0x88] sm:$0xff] %v2688
      %2721 = vst [vmem:[#allocation2 + $0x90] sm:$0xff] %v2689
      %2722 = vst [vmem:[#allocation2 + $0x98] sm:$0xff] %v2690
      %2723 = vst [vmem:[#allocation2 + $0xa0] sm:$0xff] %v2691
      %2724 = vst [vmem:[#allocation2 + $0xa8] sm:$0xff] %v2692
      %2725 = vst [vmem:[#allocation2 + $0xb0] sm:$0xff] %v2693
      %2726 = vst [vmem:[#allocation2 + $0xb8] sm:$0xff] %v2694
      %2727 = vst [vmem:[#allocation2 + $0xc0] sm:$0xff] %v2695
      %2728 = vst [vmem:[#allocation2 + $0xc8] sm:$0xff] %v2696
      %2729 = vst [vmem:[#allocation2 + $0xd0] sm:$0xff] %v2697
      %2730 = vst [vmem:[#allocation2 + $0xd8] sm:$0xff] %v2698
      %2731 = vst [vmem:[#allocation2 + $0xe0] sm:$0xff] %v2699
      %2732 = vst [vmem:[#allocation2 + $0xe8] sm:$0xff] %v2700
      %2733 = vst [vmem:[#allocation2 + $0xf0] sm:$0xff] %v2701
      %2734 = vst [vmem:[#allocation2 + $0xf8] sm:$0xff] %v2702
      %vm2753 = vcmask 1042432
      %vm2754 = vcmask 1046532
      %vm2755 = vmor %vm2753, %vm2754
      %v2756 = vrot.slane %v199, 5
      %v2757 = vrot.slane %v2756, 4
      %v2758 = vrot.slane %v200, 5
      %v2759 = vsel %vm2755, %v2757, %v2758
      %v2760 = vrot.slane %v2758, 4
      %v2761 = vrot.slane %v201, 5
      %v2762 = vsel %vm2755, %v2760, %v2761
      %v2763 = vrot.slane %v202, 5
      %v2764 = vrot.slane %v2763, 4
      %v2765 = vrot.slane %v203, 5
      %v2766 = vsel %vm2755, %v2764, %v2765
      %v2767 = vrot.slane %v2765, 4
      %v2768 = vrot.slane %v204, 5
      %v2769 = vsel %vm2755, %v2767, %v2768
      %v2770 = vrot.slane %v205, 5
      %v2771 = vrot.slane %v2770, 4
      %v2772 = vrot.slane %v206, 5
      %v2773 = vsel %vm2755, %v2771, %v2772
      %v2774 = vrot.slane %v2772, 4
      %v2775 = vrot.slane %v207, 5
      %v2776 = vsel %vm2755, %v2774, %v2775
      %v2777 = vrot.slane %v208, 5
      %v2778 = vrot.slane %v2777, 4
      %v2779 = vrot.slane %v209, 5
      %v2780 = vsel %vm2755, %v2778, %v2779
      %v2781 = vrot.slane %v2779, 4
      %v2782 = vrot.slane %v210, 5
      %v2783 = vsel %vm2755, %v2781, %v2782
      %v2784 = vrot.slane %v211, 5
      %v2785 = vrot.slane %v2784, 4
      %v2786 = vrot.slane %v212, 5
      %v2787 = vsel %vm2755, %v2785, %v2786
      %v2788 = vrot.slane %v2786, 4
      %v2789 = vrot.slane %v213, 5
      %v2790 = vsel %vm2755, %v2788, %v2789
      %v2791 = vrot.slane %v214, 5
      %v2792 = vrot.slane %v2791, 4
      %v2793 = vrot.slane %v215, 5
      %v2794 = vsel %vm2755, %v2792, %v2793
      %v2795 = vrot.slane %v2793, 4
      %v2796 = vrot.slane %v216, 5
      %v2797 = vsel %vm2755, %v2795, %v2796
      %v2798 = vrot.slane %v217, 5
      %v2799 = vrot.slane %v2798, 4
      %v2800 = vrot.slane %v218, 5
      %v2801 = vsel %vm2755, %v2799, %v2800
      %v2802 = vrot.slane %v2800, 4
      %v2803 = vrot.slane %v219, 5
      %v2804 = vsel %vm2755, %v2802, %v2803
      %v2805 = vrot.slane %v220, 5
      %v2806 = vrot.slane %v2805, 4
      %v2807 = vrot.slane %v221, 5
      %v2808 = vsel %vm2755, %v2806, %v2807
      %v2809 = vrot.slane %v2807, 4
      %v2810 = vrot.slane %v222, 5
      %v2811 = vsel %vm2755, %v2809, %v2810
      %v2812 = vrot.slane %v223, 5
      %v2813 = vrot.slane %v2812, 4
      %v2814 = vrot.slane %v224, 5
      %v2815 = vsel %vm2755, %v2813, %v2814
      %v2816 = vrot.slane %v2814, 4
      %v2817 = vrot.slane %v225, 5
      %v2818 = vsel %vm2755, %v2816, %v2817
      %v2819 = vrot.slane %v226, 5
      %v2820 = vrot.slane %v2819, 4
      %v2821 = vrot.slane %v227, 5
      %v2822 = vsel %vm2755, %v2820, %v2821
      %v2823 = vrot.slane %v2821, 4
      %v2824 = vrot.slane %v228, 5
      %v2825 = vsel %vm2755, %v2823, %v2824
      %v2826 = vrot.slane %v229, 5
      %v2827 = vrot.slane %v2826, 4
      %v2828 = vrot.slane %v230, 5
      %v2829 = vsel %vm2755, %v2827, %v2828
      %v2830 = vrot.slane %v2828, 4
      %v2831 = vrot.slane %v231, 5
      %v2832 = vsel %vm2755, %v2830, %v2831
      %v2833 = vrot.slane %v232, 5
      %v2834 = vrot.slane %v2833, 4
      %v2835 = vrot.slane %v233, 5
      %v2836 = vsel %vm2755, %v2834, %v2835
      %v2837 = vrot.slane %v2835, 4
      %v2838 = vrot.slane %v234, 5
      %v2839 = vsel %vm2755, %v2837, %v2838
      %v2840 = vrot.slane %v235, 5
      %v2841 = vrot.slane %v2840, 4
      %v2842 = vrot.slane %v236, 5
      %v2843 = vsel %vm2755, %v2841, %v2842
      %v2844 = vrot.slane %v2842, 4
      %v2845 = vrot.slane %v237, 5
      %v2846 = vsel %vm2755, %v2844, %v2845
      %v2847 = vrot.slane %v238, 5
      %v2848 = vrot.slane %v2847, 4
      %v2849 = vrot.slane %v239, 5
      %v2850 = vsel %vm2755, %v2848, %v2849
      %v2851 = vrot.slane %v2849, 4
      %v2852 = vrot.slane %v240, 5
      %v2853 = vsel %vm2755, %v2851, %v2852
      %v2854 = vrot.slane %v241, 5
      %v2855 = vrot.slane %v2854, 4
      %v2856 = vrot.slane %v242, 5
      %v2857 = vsel %vm2755, %v2855, %v2856
      %v2858 = vrot.slane %v2856, 4
      %v2859 = vrot.slane %v243, 5
      %v2860 = vsel %vm2755, %v2858, %v2859
      %v2861 = vrot.slane %v244, 5
      %v2862 = vrot.slane %v2861, 4
      %v2863 = vrot.slane %v245, 5
      %v2864 = vsel %vm2755, %v2862, %v2863
      %v2865 = vrot.slane %v2863, 4
      %v2866 = vrot.slane %v246, 5
      %v2867 = vsel %vm2755, %v2865, %v2866
      %v2868 = vrot.slane %v247, 5
      %v2869 = vrot.slane %v2868, 4
      %v2870 = vrot.slane %v248, 5
      %v2871 = vsel %vm2755, %v2869, %v2870
      %v2872 = vrot.slane %v2870, 4
      %v2873 = vrot.slane %v249, 5
      %v2874 = vsel %vm2755, %v2872, %v2873
      %v2875 = vrot.slane %v250, 5
      %v2876 = vrot.slane %v2875, 4
      %v2877 = vrot.slane %v251, 5
      %v2878 = vsel %vm2755, %v2876, %v2877
      %v2879 = vrot.slane %v2877, 4
      %v2880 = vrot.slane %v252, 5
      %v2881 = vsel %vm2755, %v2879, %v2880
      %s2882 = scalar_lea.vmem %s1, 128
      %v2883 = vld [vmem:[%s2882] sm:$0xf]
      %v2884 = vld [vmem:[%s2882 + $0x4] sm:$0xf]
      %v2885 = vld [vmem:[%s2882 + $0x8] sm:$0xf]
      %v2886 = vld [vmem:[%s2882 + $0xc] sm:$0xf]
      %v2887 = vld [vmem:[%s2882 + $0x10] sm:$0xf]
      %v2888 = vld [vmem:[%s2882 + $0x14] sm:$0xf]
      %v2889 = vld [vmem:[%s2882 + $0x18] sm:$0xf]
      %v2890 = vld [vmem:[%s2882 + $0x1c] sm:$0xf]
      %v2891 = vld [vmem:[%s2882 + $0x20] sm:$0xf]
      %v2892 = vld [vmem:[%s2882 + $0x24] sm:$0xf]
      %v2893 = vld [vmem:[%s2882 + $0x28] sm:$0xf]
      %v2894 = vld [vmem:[%s2882 + $0x2c] sm:$0xf]
      %v2895 = vld [vmem:[%s2882 + $0x30] sm:$0xf]
      %v2896 = vld [vmem:[%s2882 + $0x34] sm:$0xf]
      %v2897 = vld [vmem:[%s2882 + $0x38] sm:$0xf]
      %v2898 = vld [vmem:[%s2882 + $0x3c] sm:$0xf]
      %v2899 = vunpack.c.l.b16 %v2759
      %v2900 = vunpack.c.l.b16 %v2762
      %v2901 = vunpack.c.l.b16 %v2766
      %v2902 = vunpack.c.l.b16 %v2769
      %v2903 = vunpack.c.l.b16 %v2773
      %v2904 = vunpack.c.l.b16 %v2776
      %v2905 = vunpack.c.l.b16 %v2780
      %v2906 = vunpack.c.l.b16 %v2783
      %v2907 = vunpack.c.l.b16 %v2787
      %v2908 = vunpack.c.l.b16 %v2790
      %v2909 = vunpack.c.l.b16 %v2794
      %v2910 = vunpack.c.l.b16 %v2797
      %v2911 = vunpack.c.l.b16 %v2801
      %v2912 = vunpack.c.l.b16 %v2804
      %v2913 = vunpack.c.l.b16 %v2808
      %v2914 = vunpack.c.l.b16 %v2811
      %v2915 = vunpack.c.l.b16 %v2815
      %v2916 = vunpack.c.l.b16 %v2818
      %v2917 = vunpack.c.l.b16 %v2822
      %v2918 = vunpack.c.l.b16 %v2825
      %v2919 = vunpack.c.l.b16 %v2829
      %v2920 = vunpack.c.l.b16 %v2832
      %v2921 = vunpack.c.l.b16 %v2836
      %v2922 = vunpack.c.l.b16 %v2839
      %v2923 = vunpack.c.l.b16 %v2843
      %v2924 = vunpack.c.l.b16 %v2846
      %v2925 = vunpack.c.l.b16 %v2850
      %v2926 = vunpack.c.l.b16 %v2853
      %v2927 = vunpack.c.l.b16 %v2857
      %v2928 = vunpack.c.l.b16 %v2860
      %v2929 = vunpack.c.l.b16 %v2864
      %v2930 = vunpack.c.l.b16 %v2867
      %v2931 = vpack.c.b16 %v2900, %v2899
      %v2932 = vpack.c.b16 %v2902, %v2901
      %v2933 = vpack.c.b16 %v2904, %v2903
      %v2934 = vpack.c.b16 %v2906, %v2905
      %v2935 = vpack.c.b16 %v2908, %v2907
      %v2936 = vpack.c.b16 %v2910, %v2909
      %v2937 = vpack.c.b16 %v2912, %v2911
      %v2938 = vpack.c.b16 %v2914, %v2913
      %v2939 = vpack.c.b16 %v2916, %v2915
      %v2940 = vpack.c.b16 %v2918, %v2917
      %v2941 = vpack.c.b16 %v2920, %v2919
      %v2942 = vpack.c.b16 %v2922, %v2921
      %v2943 = vpack.c.b16 %v2924, %v2923
      %v2944 = vpack.c.b16 %v2926, %v2925
      %v2945 = vpack.c.b16 %v2928, %v2927
      %v2946 = vpack.c.b16 %v2930, %v2929
      %v2979 = vunpack.c.l.b16 %v2883
      %v2980 = vunpack.c.l.b16 %v2884
      %v2981 = vunpack.c.l.b16 %v2885
      %v2982 = vunpack.c.l.b16 %v2886
      %v2983 = vunpack.c.l.b16 %v2887
      %v2984 = vunpack.c.l.b16 %v2888
      %v2985 = vunpack.c.l.b16 %v2889
      %v2986 = vunpack.c.l.b16 %v2890
      %v2987 = vunpack.c.l.b16 %v2891
      %v2988 = vunpack.c.l.b16 %v2892
      %v2989 = vunpack.c.l.b16 %v2893
      %v2990 = vunpack.c.l.b16 %v2894
      %v2991 = vunpack.c.l.b16 %v2895
      %v2992 = vunpack.c.l.b16 %v2896
      %v2993 = vunpack.c.l.b16 %v2897
      %v2994 = vunpack.c.l.b16 %v2898
      %v2995 = vpack.c.b16 %v2980, %v2979
      %v2996 = vpack.c.b16 %v2982, %v2981
      %v2997 = vpack.c.b16 %v2984, %v2983
      %v2998 = vpack.c.b16 %v2986, %v2985
      %v2999 = vpack.c.b16 %v2988, %v2987
      %v3000 = vpack.c.b16 %v2990, %v2989
      %v3001 = vpack.c.b16 %v2992, %v2991
      %v3002 = vpack.c.b16 %v2994, %v2993
      %3011 = vmatprep.subr.bf16.mxu0 0
      %3012 = vmatpush1.bf16.msra.mxu0 %v3002
      %3013 = vmatprep.subr.bf16.mxu0 0
      %3014 = vmatpush1.bf16.msra.mxu0 %v3001
      %3015 = vmatprep.subr.bf16.mxu0 0
      %3016 = vmatpush1.bf16.msra.mxu0 %v3000
      %3017 = vmatprep.subr.bf16.mxu0 0
      %3018 = vmatpush1.bf16.msra.mxu0 %v2999
      %3019 = vmatprep.subr.bf16.mxu0 0
      %3020 = vmatpush1.bf16.msra.mxu0 %v2998
      %3021 = vmatprep.subr.bf16.mxu0 0
      %3022 = vmatpush1.bf16.msra.mxu0 %v2997
      %3023 = vmatprep.subr.bf16.mxu0 0
      %3024 = vmatpush1.bf16.msra.mxu0 %v2996
      %3025 = vmatprep.subr.bf16.mxu0 0
      %3026 = vmatpush1.bf16.msra.mxu0 %v2995
      %3027 = vmatprep.subr.bf16.mxu0 0
      %3028 = vmatpush2.bf16.msra.mxu0 0
      %3029 = vmatprep.subr.bf16.mxu0 0
      %3030 = vmatpush2.bf16.msra.mxu0 0
      %3031 = vmatprep.subr.bf16.mxu0 0
      %3032 = vmatpush2.bf16.msra.mxu0 0
      %3033 = vmatprep.subr.bf16.mxu0 0
      %3034 = vmatpush2.bf16.msra.mxu0 0
      %3035 = vmatprep.subr.bf16.mxu0 0
      %3036 = vmatpush2.bf16.msra.mxu0 0
      %3037 = vmatprep.subr.bf16.mxu0 0
      %3038 = vmatpush2.bf16.msra.mxu0 0
      %3039 = vmatprep.subr.bf16.mxu0 0
      %3040 = vmatpush2.bf16.msra.mxu0 0
      %3041 = vmatprep.subr.bf16.mxu0 0
      %3042 = vmatpush2.bf16.msra.mxu0 0
      %3043 = vmatprep.mubr.bf16.mxu0 0
      %3044 = vmatmul.mubr.bf16.gmra.mxu0 %v2931
      %v3045 = vpop.f32.mrf.mxu0
      %v3046 = vadd.f32 0.0, %v3045
      %v3047 = vpop.f32.mrf.mxu0
      %v3048 = vpop.f32.mrf.mxu0
      %v3049 = vadd.f32 0.0, %v3048
      %v3050 = vpop.f32.mrf.mxu0
      %3051 = vmatprep.mubr.bf16.mxu0 0
      %3052 = vmatmul.mubr.bf16.gmra.mxu0 %v2932
      %v3053 = vpop.f32.mrf.mxu0
      %v3054 = vadd.f32 0.0, %v3053
      %v3055 = vpop.f32.mrf.mxu0
      %v3056 = vpop.f32.mrf.mxu0
      %v3057 = vadd.f32 0.0, %v3056
      %v3058 = vpop.f32.mrf.mxu0
      %3059 = vmatprep.mubr.bf16.mxu0 0
      %3060 = vmatmul.mubr.bf16.gmra.mxu0 %v2933
      %v3061 = vpop.f32.mrf.mxu0
      %v3062 = vadd.f32 0.0, %v3061
      %v3063 = vpop.f32.mrf.mxu0
      %v3064 = vpop.f32.mrf.mxu0
      %v3065 = vadd.f32 0.0, %v3064
      %v3066 = vpop.f32.mrf.mxu0
      %3067 = vmatprep.mubr.bf16.mxu0 0
      %3068 = vmatmul.mubr.bf16.gmra.mxu0 %v2934
      %v3069 = vpop.f32.mrf.mxu0
      %v3070 = vadd.f32 0.0, %v3069
      %v3071 = vpop.f32.mrf.mxu0
      %v3072 = vpop.f32.mrf.mxu0
      %v3073 = vadd.f32 0.0, %v3072
      %v3074 = vpop.f32.mrf.mxu0
      %3075 = vmatprep.mubr.bf16.mxu0 0
      %3076 = vmatmul.mubr.bf16.gmra.mxu0 %v2935
      %v3077 = vpop.f32.mrf.mxu0
      %v3078 = vadd.f32 0.0, %v3077
      %v3079 = vpop.f32.mrf.mxu0
      %v3080 = vpop.f32.mrf.mxu0
      %v3081 = vadd.f32 0.0, %v3080
      %v3082 = vpop.f32.mrf.mxu0
      %3083 = vmatprep.mubr.bf16.mxu0 0
      %3084 = vmatmul.mubr.bf16.gmra.mxu0 %v2936
      %v3085 = vpop.f32.mrf.mxu0
      %v3086 = vadd.f32 0.0, %v3085
      %v3087 = vpop.f32.mrf.mxu0
      %v3088 = vpop.f32.mrf.mxu0
      %v3089 = vadd.f32 0.0, %v3088
      %v3090 = vpop.f32.mrf.mxu0
      %3091 = vmatprep.mubr.bf16.mxu0 0
      %3092 = vmatmul.mubr.bf16.gmra.mxu0 %v2937
      %v3093 = vpop.f32.mrf.mxu0
      %v3094 = vadd.f32 0.0, %v3093
      %v3095 = vpop.f32.mrf.mxu0
      %v3096 = vpop.f32.mrf.mxu0
      %v3097 = vadd.f32 0.0, %v3096
      %v3098 = vpop.f32.mrf.mxu0
      %3099 = vmatprep.mubr.bf16.mxu0 0
      %3100 = vmatmul.mubr.bf16.gmra.mxu0 %v2938
      %v3101 = vpop.f32.mrf.mxu0
      %v3102 = vadd.f32 0.0, %v3101
      %v3103 = vpop.f32.mrf.mxu0
      %v3104 = vpop.f32.mrf.mxu0
      %v3105 = vadd.f32 0.0, %v3104
      %v3106 = vpop.f32.mrf.mxu0
      %3107 = vmatprep.mubr.bf16.mxu0 0
      %3108 = vmatmul.mubr.bf16.gmra.mxu0 %v2939
      %v3109 = vpop.f32.mrf.mxu0
      %v3110 = vadd.f32 0.0, %v3109
      %v3111 = vpop.f32.mrf.mxu0
      %v3112 = vpop.f32.mrf.mxu0
      %v3113 = vadd.f32 0.0, %v3112
      %v3114 = vpop.f32.mrf.mxu0
      %3115 = vmatprep.mubr.bf16.mxu0 0
      %3116 = vmatmul.mubr.bf16.gmra.mxu0 %v2940
      %v3117 = vpop.f32.mrf.mxu0
      %v3118 = vadd.f32 0.0, %v3117
      %v3119 = vpop.f32.mrf.mxu0
      %v3120 = vpop.f32.mrf.mxu0
      %v3121 = vadd.f32 0.0, %v3120
      %v3122 = vpop.f32.mrf.mxu0
      %3123 = vmatprep.mubr.bf16.mxu0 0
      %3124 = vmatmul.mubr.bf16.gmra.mxu0 %v2941
      %v3125 = vpop.f32.mrf.mxu0
      %v3126 = vadd.f32 0.0, %v3125
      %v3127 = vpop.f32.mrf.mxu0
      %v3128 = vpop.f32.mrf.mxu0
      %v3129 = vadd.f32 0.0, %v3128
      %v3130 = vpop.f32.mrf.mxu0
      %3131 = vmatprep.mubr.bf16.mxu0 0
      %3132 = vmatmul.mubr.bf16.gmra.mxu0 %v2942
      %v3133 = vpop.f32.mrf.mxu0
      %v3134 = vadd.f32 0.0, %v3133
      %v3135 = vpop.f32.mrf.mxu0
      %v3136 = vpop.f32.mrf.mxu0
      %v3137 = vadd.f32 0.0, %v3136
      %v3138 = vpop.f32.mrf.mxu0
      %3139 = vmatprep.mubr.bf16.mxu0 0
      %3140 = vmatmul.mubr.bf16.gmra.mxu0 %v2943
      %v3141 = vpop.f32.mrf.mxu0
      %v3142 = vadd.f32 0.0, %v3141
      %v3143 = vpop.f32.mrf.mxu0
      %v3144 = vpop.f32.mrf.mxu0
      %v3145 = vadd.f32 0.0, %v3144
      %v3146 = vpop.f32.mrf.mxu0
      %3147 = vmatprep.mubr.bf16.mxu0 0
      %3148 = vmatmul.mubr.bf16.gmra.mxu0 %v2944
      %v3149 = vpop.f32.mrf.mxu0
      %v3150 = vadd.f32 0.0, %v3149
      %v3151 = vpop.f32.mrf.mxu0
      %v3152 = vpop.f32.mrf.mxu0
      %v3153 = vadd.f32 0.0, %v3152
      %v3154 = vpop.f32.mrf.mxu0
      %3155 = vmatprep.mubr.bf16.mxu0 0
      %3156 = vmatmul.mubr.bf16.gmra.mxu0 %v2945
      %v3157 = vpop.f32.mrf.mxu0
      %v3158 = vadd.f32 0.0, %v3157
      %v3159 = vpop.f32.mrf.mxu0
      %v3160 = vpop.f32.mrf.mxu0
      %v3161 = vadd.f32 0.0, %v3160
      %v3162 = vpop.f32.mrf.mxu0
      %3163 = vmatprep.mubr.bf16.mxu0 0
      %3164 = vmatmul.mubr.bf16.gmra.mxu0 %v2946
      %v3165 = vpop.f32.mrf.mxu0
      %v3166 = vadd.f32 0.0, %v3165
      %v3167 = vpop.f32.mrf.mxu0
      %v3168 = vpop.f32.mrf.mxu0
      %v3169 = vadd.f32 0.0, %v3168
      %v3170 = vpop.f32.mrf.mxu0
      %3171 = vdwg.mxu0
      %v3172 = vld [vmem:[#allocation2] sm:$0xff]
      %v3173 = vld [vmem:[#allocation2 + $0x8] sm:$0xff]
      %v3174 = vld [vmem:[#allocation2 + $0x10] sm:$0xff]
      %v3175 = vld [vmem:[#allocation2 + $0x18] sm:$0xff]
      %v3176 = vld [vmem:[#allocation2 + $0x20] sm:$0xff]
      %v3177 = vld [vmem:[#allocation2 + $0x28] sm:$0xff]
      %v3178 = vld [vmem:[#allocation2 + $0x30] sm:$0xff]
      %v3179 = vld [vmem:[#allocation2 + $0x38] sm:$0xff]
      %v3180 = vld [vmem:[#allocation2 + $0x40] sm:$0xff]
      %v3181 = vld [vmem:[#allocation2 + $0x48] sm:$0xff]
      %v3182 = vld [vmem:[#allocation2 + $0x50] sm:$0xff]
      %v3183 = vld [vmem:[#allocation2 + $0x58] sm:$0xff]
      %v3184 = vld [vmem:[#allocation2 + $0x60] sm:$0xff]
      %v3185 = vld [vmem:[#allocation2 + $0x68] sm:$0xff]
      %v3186 = vld [vmem:[#allocation2 + $0x70] sm:$0xff]
      %v3187 = vld [vmem:[#allocation2 + $0x78] sm:$0xff]
      %v3188 = vld [vmem:[#allocation2 + $0x80] sm:$0xff]
      %v3189 = vld [vmem:[#allocation2 + $0x88] sm:$0xff]
      %v3190 = vld [vmem:[#allocation2 + $0x90] sm:$0xff]
      %v3191 = vld [vmem:[#allocation2 + $0x98] sm:$0xff]
      %v3192 = vld [vmem:[#allocation2 + $0xa0] sm:$0xff]
      %v3193 = vld [vmem:[#allocation2 + $0xa8] sm:$0xff]
      %v3194 = vld [vmem:[#allocation2 + $0xb0] sm:$0xff]
      %v3195 = vld [vmem:[#allocation2 + $0xb8] sm:$0xff]
      %v3196 = vld [vmem:[#allocation2 + $0xc0] sm:$0xff]
      %v3197 = vld [vmem:[#allocation2 + $0xc8] sm:$0xff]
      %v3198 = vld [vmem:[#allocation2 + $0xd0] sm:$0xff]
      %v3199 = vld [vmem:[#allocation2 + $0xd8] sm:$0xff]
      %v3200 = vld [vmem:[#allocation2 + $0xe0] sm:$0xff]
      %v3201 = vld [vmem:[#allocation2 + $0xe8] sm:$0xff]
      %v3202 = vld [vmem:[#allocation2 + $0xf0] sm:$0xff]
      %v3203 = vld [vmem:[#allocation2 + $0xf8] sm:$0xff]
      %v3204 = vadd.f32 %v3172, %v3046
      %v3205 = vadd.f32 %v3173, %v3049
      %v3206 = vadd.f32 %v3174, %v3054
      %v3207 = vadd.f32 %v3175, %v3057
      %v3208 = vadd.f32 %v3176, %v3062
      %v3209 = vadd.f32 %v3177, %v3065
      %v3210 = vadd.f32 %v3178, %v3070
      %v3211 = vadd.f32 %v3179, %v3073
      %v3212 = vadd.f32 %v3180, %v3078
      %v3213 = vadd.f32 %v3181, %v3081
      %v3214 = vadd.f32 %v3182, %v3086
      %v3215 = vadd.f32 %v3183, %v3089
      %v3216 = vadd.f32 %v3184, %v3094
      %v3217 = vadd.f32 %v3185, %v3097
      %v3218 = vadd.f32 %v3186, %v3102
      %v3219 = vadd.f32 %v3187, %v3105
      %v3220 = vadd.f32 %v3188, %v3110
      %v3221 = vadd.f32 %v3189, %v3113
      %v3222 = vadd.f32 %v3190, %v3118
      %v3223 = vadd.f32 %v3191, %v3121
      %v3224 = vadd.f32 %v3192, %v3126
      %v3225 = vadd.f32 %v3193, %v3129
      %v3226 = vadd.f32 %v3194, %v3134
      %v3227 = vadd.f32 %v3195, %v3137
      %v3228 = vadd.f32 %v3196, %v3142
      %v3229 = vadd.f32 %v3197, %v3145
      %v3230 = vadd.f32 %v3198, %v3150
      %v3231 = vadd.f32 %v3199, %v3153
      %v3232 = vadd.f32 %v3200, %v3158
      %v3233 = vadd.f32 %v3201, %v3161
      %v3234 = vadd.f32 %v3202, %v3166
      %v3235 = vadd.f32 %v3203, %v3169
      %3236 = vst [vmem:[#allocation2] sm:$0xff] %v3204
      %3237 = vst [vmem:[#allocation2 + $0x8] sm:$0xff] %v3205
      %3238 = vst [vmem:[#allocation2 + $0x10] sm:$0xff] %v3206
      %3239 = vst [vmem:[#allocation2 + $0x18] sm:$0xff] %v3207
      %3240 = vst [vmem:[#allocation2 + $0x20] sm:$0xff] %v3208
      %3241 = vst [vmem:[#allocation2 + $0x28] sm:$0xff] %v3209
      %3242 = vst [vmem:[#allocation2 + $0x30] sm:$0xff] %v3210
      %3243 = vst [vmem:[#allocation2 + $0x38] sm:$0xff] %v3211
      %3244 = vst [vmem:[#allocation2 + $0x40] sm:$0xff] %v3212
      %3245 = vst [vmem:[#allocation2 + $0x48] sm:$0xff] %v3213
      %3246 = vst [vmem:[#allocation2 + $0x50] sm:$0xff] %v3214
      %3247 = vst [vmem:[#allocation2 + $0x58] sm:$0xff] %v3215
      %3248 = vst [vmem:[#allocation2 + $0x60] sm:$0xff] %v3216
      %3249 = vst [vmem:[#allocation2 + $0x68] sm:$0xff] %v3217
      %3250 = vst [vmem:[#allocation2 + $0x70] sm:$0xff] %v3218
      %3251 = vst [vmem:[#allocation2 + $0x78] sm:$0xff] %v3219
      %3252 = vst [vmem:[#allocation2 + $0x80] sm:$0xff] %v3220
      %3253 = vst [vmem:[#allocation2 + $0x88] sm:$0xff] %v3221
      %3254 = vst [vmem:[#allocation2 + $0x90] sm:$0xff] %v3222
      %3255 = vst [vmem:[#allocation2 + $0x98] sm:$0xff] %v3223
      %3256 = vst [vmem:[#allocation2 + $0xa0] sm:$0xff] %v3224
      %3257 = vst [vmem:[#allocation2 + $0xa8] sm:$0xff] %v3225
      %3258 = vst [vmem:[#allocation2 + $0xb0] sm:$0xff] %v3226
      %3259 = vst [vmem:[#allocation2 + $0xb8] sm:$0xff] %v3227
      %3260 = vst [vmem:[#allocation2 + $0xc0] sm:$0xff] %v3228
      %3261 = vst [vmem:[#allocation2 + $0xc8] sm:$0xff] %v3229
      %3262 = vst [vmem:[#allocation2 + $0xd0] sm:$0xff] %v3230
      %3263 = vst [vmem:[#allocation2 + $0xd8] sm:$0xff] %v3231
      %3264 = vst [vmem:[#allocation2 + $0xe0] sm:$0xff] %v3232
      %3265 = vst [vmem:[#allocation2 + $0xe8] sm:$0xff] %v3233
      %3266 = vst [vmem:[#allocation2 + $0xf0] sm:$0xff] %v3234
      %3267 = vst [vmem:[#allocation2 + $0xf8] sm:$0xff] %v3235
      %s3268 = scalar_lea.vmem %s1, 320
      %v3269 = vld [vmem:[%s3268] sm:$0xf]
      %v3270 = vld [vmem:[%s3268 + $0x4] sm:$0xf]
      %v3271 = vld [vmem:[%s3268 + $0x8] sm:$0xf]
      %v3272 = vld [vmem:[%s3268 + $0xc] sm:$0xf]
      %v3273 = vld [vmem:[%s3268 + $0x10] sm:$0xf]
      %v3274 = vld [vmem:[%s3268 + $0x14] sm:$0xf]
      %v3275 = vld [vmem:[%s3268 + $0x18] sm:$0xf]
      %v3276 = vld [vmem:[%s3268 + $0x1c] sm:$0xf]
      %v3277 = vld [vmem:[%s3268 + $0x20] sm:$0xf]
      %v3278 = vld [vmem:[%s3268 + $0x24] sm:$0xf]
      %v3279 = vld [vmem:[%s3268 + $0x28] sm:$0xf]
      %v3280 = vld [vmem:[%s3268 + $0x2c] sm:$0xf]
      %v3281 = vld [vmem:[%s3268 + $0x30] sm:$0xf]
      %v3282 = vld [vmem:[%s3268 + $0x34] sm:$0xf]
      %v3283 = vld [vmem:[%s3268 + $0x38] sm:$0xf]
      %v3284 = vld [vmem:[%s3268 + $0x3c] sm:$0xf]
      %v3285 = vunpack.c.l.b16 %v2871
      %v3286 = vunpack.c.l.b16 %v2874
      %v3287 = vpack.c.b16 %v3286, %v3285
      %v3305 = vunpack.c.l.b16 %v3269
      %v3306 = vunpack.c.l.b16 %v3270
      %v3307 = vunpack.c.l.b16 %v3271
      %v3308 = vunpack.c.l.b16 %v3272
      %v3309 = vunpack.c.l.b16 %v3273
      %v3310 = vunpack.c.l.b16 %v3274
      %v3311 = vunpack.c.l.b16 %v3275
      %v3312 = vunpack.c.l.b16 %v3276
      %v3313 = vunpack.c.l.b16 %v3277
      %v3314 = vunpack.c.l.b16 %v3278
      %v3315 = vunpack.c.l.b16 %v3279
      %v3316 = vunpack.c.l.b16 %v3280
      %v3317 = vunpack.c.l.b16 %v3281
      %v3318 = vunpack.c.l.b16 %v3282
      %v3319 = vunpack.c.l.b16 %v3283
      %v3320 = vunpack.c.l.b16 %v3284
      %v3321 = vpack.c.b16 %v3306, %v3305
      %v3322 = vpack.c.b16 %v3308, %v3307
      %v3323 = vpack.c.b16 %v3310, %v3309
      %v3324 = vpack.c.b16 %v3312, %v3311
      %v3325 = vpack.c.b16 %v3314, %v3313
      %v3326 = vpack.c.b16 %v3316, %v3315
      %v3327 = vpack.c.b16 %v3318, %v3317
      %v3328 = vpack.c.b16 %v3320, %v3319
      %3337 = vmatprep.subr.bf16.mxu0 0
      %3338 = vmatpush1.bf16.msra.mxu0 %v3328
      %3339 = vmatprep.subr.bf16.mxu0 0
      %3340 = vmatpush1.bf16.msra.mxu0 %v3327
      %3341 = vmatprep.subr.bf16.mxu0 0
      %3342 = vmatpush1.bf16.msra.mxu0 %v3326
      %3343 = vmatprep.subr.bf16.mxu0 0
      %3344 = vmatpush1.bf16.msra.mxu0 %v3325
      %3345 = vmatprep.subr.bf16.mxu0 0
      %3346 = vmatpush1.bf16.msra.mxu0 %v3324
      %3347 = vmatprep.subr.bf16.mxu0 0
      %3348 = vmatpush1.bf16.msra.mxu0 %v3323
      %3349 = vmatprep.subr.bf16.mxu0 0
      %3350 = vmatpush1.bf16.msra.mxu0 %v3322
      %3351 = vmatprep.subr.bf16.mxu0 0
      %3352 = vmatpush1.bf16.msra.mxu0 %v3321
      %3353 = vmatprep.subr.bf16.mxu0 0
      %3354 = vmatpush2.bf16.msra.mxu0 0
      %3355 = vmatprep.subr.bf16.mxu0 0
      %3356 = vmatpush2.bf16.msra.mxu0 0
      %3357 = vmatprep.subr.bf16.mxu0 0
      %3358 = vmatpush2.bf16.msra.mxu0 0
      %3359 = vmatprep.subr.bf16.mxu0 0
      %3360 = vmatpush2.bf16.msra.mxu0 0
      %3361 = vmatprep.subr.bf16.mxu0 0
      %3362 = vmatpush2.bf16.msra.mxu0 0
      %3363 = vmatprep.subr.bf16.mxu0 0
      %3364 = vmatpush2.bf16.msra.mxu0 0
      %3365 = vmatprep.subr.bf16.mxu0 0
      %3366 = vmatpush2.bf16.msra.mxu0 0
      %3367 = vmatprep.subr.bf16.mxu0 0
      %3368 = vmatpush2.bf16.msra.mxu0 0
      %3369 = vmatprep.mubr.bf16.mxu0 0
      %3370 = vmatmul.mubr.bf16.gmra.mxu0 %v2932
      %v3371 = vpop.f32.mrf.mxu0
      %v3372 = vadd.f32 0.0, %v3371
      %v3373 = vpop.f32.mrf.mxu0
      %v3374 = vpop.f32.mrf.mxu0
      %v3375 = vadd.f32 0.0, %v3374
      %v3376 = vpop.f32.mrf.mxu0
      %3377 = vmatprep.mubr.bf16.mxu0 0
      %3378 = vmatmul.mubr.bf16.gmra.mxu0 %v2933
      %v3379 = vpop.f32.mrf.mxu0
      %v3380 = vadd.f32 0.0, %v3379
      %v3381 = vpop.f32.mrf.mxu0
      %v3382 = vpop.f32.mrf.mxu0
      %v3383 = vadd.f32 0.0, %v3382
      %v3384 = vpop.f32.mrf.mxu0
      %3385 = vmatprep.mubr.bf16.mxu0 0
      %3386 = vmatmul.mubr.bf16.gmra.mxu0 %v2934
      %v3387 = vpop.f32.mrf.mxu0
      %v3388 = vadd.f32 0.0, %v3387
      %v3389 = vpop.f32.mrf.mxu0
      %v3390 = vpop.f32.mrf.mxu0
      %v3391 = vadd.f32 0.0, %v3390
      %v3392 = vpop.f32.mrf.mxu0
      %3393 = vmatprep.mubr.bf16.mxu0 0
      %3394 = vmatmul.mubr.bf16.gmra.mxu0 %v2935
      %v3395 = vpop.f32.mrf.mxu0
      %v3396 = vadd.f32 0.0, %v3395
      %v3397 = vpop.f32.mrf.mxu0
      %v3398 = vpop.f32.mrf.mxu0
      %v3399 = vadd.f32 0.0, %v3398
      %v3400 = vpop.f32.mrf.mxu0
      %3401 = vmatprep.mubr.bf16.mxu0 0
      %3402 = vmatmul.mubr.bf16.gmra.mxu0 %v2936
      %v3403 = vpop.f32.mrf.mxu0
      %v3404 = vadd.f32 0.0, %v3403
      %v3405 = vpop.f32.mrf.mxu0
      %v3406 = vpop.f32.mrf.mxu0
      %v3407 = vadd.f32 0.0, %v3406
      %v3408 = vpop.f32.mrf.mxu0
      %3409 = vmatprep.mubr.bf16.mxu0 0
      %3410 = vmatmul.mubr.bf16.gmra.mxu0 %v2937
      %v3411 = vpop.f32.mrf.mxu0
      %v3412 = vadd.f32 0.0, %v3411
      %v3413 = vpop.f32.mrf.mxu0
      %v3414 = vpop.f32.mrf.mxu0
      %v3415 = vadd.f32 0.0, %v3414
      %v3416 = vpop.f32.mrf.mxu0
      %3417 = vmatprep.mubr.bf16.mxu0 0
      %3418 = vmatmul.mubr.bf16.gmra.mxu0 %v2938
      %v3419 = vpop.f32.mrf.mxu0
      %v3420 = vadd.f32 0.0, %v3419
      %v3421 = vpop.f32.mrf.mxu0
      %v3422 = vpop.f32.mrf.mxu0
      %v3423 = vadd.f32 0.0, %v3422
      %v3424 = vpop.f32.mrf.mxu0
      %3425 = vmatprep.mubr.bf16.mxu0 0
      %3426 = vmatmul.mubr.bf16.gmra.mxu0 %v2939
      %v3427 = vpop.f32.mrf.mxu0
      %v3428 = vadd.f32 0.0, %v3427
      %v3429 = vpop.f32.mrf.mxu0
      %v3430 = vpop.f32.mrf.mxu0
      %v3431 = vadd.f32 0.0, %v3430
      %v3432 = vpop.f32.mrf.mxu0
      %3433 = vmatprep.mubr.bf16.mxu0 0
      %3434 = vmatmul.mubr.bf16.gmra.mxu0 %v2940
      %v3435 = vpop.f32.mrf.mxu0
      %v3436 = vadd.f32 0.0, %v3435
      %v3437 = vpop.f32.mrf.mxu0
      %v3438 = vpop.f32.mrf.mxu0
      %v3439 = vadd.f32 0.0, %v3438
      %v3440 = vpop.f32.mrf.mxu0
      %3441 = vmatprep.mubr.bf16.mxu0 0
      %3442 = vmatmul.mubr.bf16.gmra.mxu0 %v2941
      %v3443 = vpop.f32.mrf.mxu0
      %v3444 = vadd.f32 0.0, %v3443
      %v3445 = vpop.f32.mrf.mxu0
      %v3446 = vpop.f32.mrf.mxu0
      %v3447 = vadd.f32 0.0, %v3446
      %v3448 = vpop.f32.mrf.mxu0
      %3449 = vmatprep.mubr.bf16.mxu0 0
      %3450 = vmatmul.mubr.bf16.gmra.mxu0 %v2942
      %v3451 = vpop.f32.mrf.mxu0
      %v3452 = vadd.f32 0.0, %v3451
      %v3453 = vpop.f32.mrf.mxu0
      %v3454 = vpop.f32.mrf.mxu0
      %v3455 = vadd.f32 0.0, %v3454
      %v3456 = vpop.f32.mrf.mxu0
      %3457 = vmatprep.mubr.bf16.mxu0 0
      %3458 = vmatmul.mubr.bf16.gmra.mxu0 %v2943
      %v3459 = vpop.f32.mrf.mxu0
      %v3460 = vadd.f32 0.0, %v3459
      %v3461 = vpop.f32.mrf.mxu0
      %v3462 = vpop.f32.mrf.mxu0
      %v3463 = vadd.f32 0.0, %v3462
      %v3464 = vpop.f32.mrf.mxu0
      %3465 = vmatprep.mubr.bf16.mxu0 0
      %3466 = vmatmul.mubr.bf16.gmra.mxu0 %v2944
      %v3467 = vpop.f32.mrf.mxu0
      %v3468 = vadd.f32 0.0, %v3467
      %v3469 = vpop.f32.mrf.mxu0
      %v3470 = vpop.f32.mrf.mxu0
      %v3471 = vadd.f32 0.0, %v3470
      %v3472 = vpop.f32.mrf.mxu0
      %3473 = vmatprep.mubr.bf16.mxu0 0
      %3474 = vmatmul.mubr.bf16.gmra.mxu0 %v2945
      %v3475 = vpop.f32.mrf.mxu0
      %v3476 = vadd.f32 0.0, %v3475
      %v3477 = vpop.f32.mrf.mxu0
      %v3478 = vpop.f32.mrf.mxu0
      %v3479 = vadd.f32 0.0, %v3478
      %v3480 = vpop.f32.mrf.mxu0
      %3481 = vmatprep.mubr.bf16.mxu0 0
      %3482 = vmatmul.mubr.bf16.gmra.mxu0 %v2946
      %v3483 = vpop.f32.mrf.mxu0
      %v3484 = vadd.f32 0.0, %v3483
      %v3485 = vpop.f32.mrf.mxu0
      %v3486 = vpop.f32.mrf.mxu0
      %v3487 = vadd.f32 0.0, %v3486
      %v3488 = vpop.f32.mrf.mxu0
      %3489 = vmatprep.mubr.bf16.mxu0 0
      %3490 = vmatmul.mubr.bf16.gmra.mxu0 %v3287
      %v3491 = vpop.f32.mrf.mxu0
      %v3492 = vadd.f32 0.0, %v3491
      %v3493 = vpop.f32.mrf.mxu0
      %v3494 = vpop.f32.mrf.mxu0
      %v3495 = vadd.f32 0.0, %v3494
      %v3496 = vpop.f32.mrf.mxu0
      %3497 = vdwg.mxu0
      %v3498 = vld [vmem:[#allocation2] sm:$0xff]
      %v3499 = vld [vmem:[#allocation2 + $0x8] sm:$0xff]
      %v3500 = vld [vmem:[#allocation2 + $0x10] sm:$0xff]
      %v3501 = vld [vmem:[#allocation2 + $0x18] sm:$0xff]
      %v3502 = vld [vmem:[#allocation2 + $0x20] sm:$0xff]
      %v3503 = vld [vmem:[#allocation2 + $0x28] sm:$0xff]
      %v3504 = vld [vmem:[#allocation2 + $0x30] sm:$0xff]
      %v3505 = vld [vmem:[#allocation2 + $0x38] sm:$0xff]
      %v3506 = vld [vmem:[#allocation2 + $0x40] sm:$0xff]
      %v3507 = vld [vmem:[#allocation2 + $0x48] sm:$0xff]
      %v3508 = vld [vmem:[#allocation2 + $0x50] sm:$0xff]
      %v3509 = vld [vmem:[#allocation2 + $0x58] sm:$0xff]
      %v3510 = vld [vmem:[#allocation2 + $0x60] sm:$0xff]
      %v3511 = vld [vmem:[#allocation2 + $0x68] sm:$0xff]
      %v3512 = vld [vmem:[#allocation2 + $0x70] sm:$0xff]
      %v3513 = vld [vmem:[#allocation2 + $0x78] sm:$0xff]
      %v3514 = vld [vmem:[#allocation2 + $0x80] sm:$0xff]
      %v3515 = vld [vmem:[#allocation2 + $0x88] sm:$0xff]
      %v3516 = vld [vmem:[#allocation2 + $0x90] sm:$0xff]
      %v3517 = vld [vmem:[#allocation2 + $0x98] sm:$0xff]
      %v3518 = vld [vmem:[#allocation2 + $0xa0] sm:$0xff]
      %v3519 = vld [vmem:[#allocation2 + $0xa8] sm:$0xff]
      %v3520 = vld [vmem:[#allocation2 + $0xb0] sm:$0xff]
      %v3521 = vld [vmem:[#allocation2 + $0xb8] sm:$0xff]
      %v3522 = vld [vmem:[#allocation2 + $0xc0] sm:$0xff]
      %v3523 = vld [vmem:[#allocation2 + $0xc8] sm:$0xff]
      %v3524 = vld [vmem:[#allocation2 + $0xd0] sm:$0xff]
      %v3525 = vld [vmem:[#allocation2 + $0xd8] sm:$0xff]
      %v3526 = vld [vmem:[#allocation2 + $0xe0] sm:$0xff]
      %v3527 = vld [vmem:[#allocation2 + $0xe8] sm:$0xff]
      %v3528 = vld [vmem:[#allocation2 + $0xf0] sm:$0xff]
      %v3529 = vld [vmem:[#allocation2 + $0xf8] sm:$0xff]
      %v3530 = vadd.f32 %v3498, %v3372
      %v3531 = vadd.f32 %v3499, %v3375
      %v3532 = vadd.f32 %v3500, %v3380
      %v3533 = vadd.f32 %v3501, %v3383
      %v3534 = vadd.f32 %v3502, %v3388
      %v3535 = vadd.f32 %v3503, %v3391
      %v3536 = vadd.f32 %v3504, %v3396
      %v3537 = vadd.f32 %v3505, %v3399
      %v3538 = vadd.f32 %v3506, %v3404
      %v3539 = vadd.f32 %v3507, %v3407
      %v3540 = vadd.f32 %v3508, %v3412
      %v3541 = vadd.f32 %v3509, %v3415
      %v3542 = vadd.f32 %v3510, %v3420
      %v3543 = vadd.f32 %v3511, %v3423
      %v3544 = vadd.f32 %v3512, %v3428
      %v3545 = vadd.f32 %v3513, %v3431
      %v3546 = vadd.f32 %v3514, %v3436
      %v3547 = vadd.f32 %v3515, %v3439
      %v3548 = vadd.f32 %v3516, %v3444
      %v3549 = vadd.f32 %v3517, %v3447
      %v3550 = vadd.f32 %v3518, %v3452
      %v3551 = vadd.f32 %v3519, %v3455
      %v3552 = vadd.f32 %v3520, %v3460
      %v3553 = vadd.f32 %v3521, %v3463
      %v3554 = vadd.f32 %v3522, %v3468
      %v3555 = vadd.f32 %v3523, %v3471
      %v3556 = vadd.f32 %v3524, %v3476
      %v3557 = vadd.f32 %v3525, %v3479
      %v3558 = vadd.f32 %v3526, %v3484
      %v3559 = vadd.f32 %v3527, %v3487
      %v3560 = vadd.f32 %v3528, %v3492
      %v3561 = vadd.f32 %v3529, %v3495
      %3562 = vst [vmem:[#allocation2] sm:$0xff] %v3530
      %3563 = vst [vmem:[#allocation2 + $0x8] sm:$0xff] %v3531
      %3564 = vst [vmem:[#allocation2 + $0x10] sm:$0xff] %v3532
      %3565 = vst [vmem:[#allocation2 + $0x18] sm:$0xff] %v3533
      %3566 = vst [vmem:[#allocation2 + $0x20] sm:$0xff] %v3534
      %3567 = vst [vmem:[#allocation2 + $0x28] sm:$0xff] %v3535
      %3568 = vst [vmem:[#allocation2 + $0x30] sm:$0xff] %v3536
      %3569 = vst [vmem:[#allocation2 + $0x38] sm:$0xff] %v3537
      %3570 = vst [vmem:[#allocation2 + $0x40] sm:$0xff] %v3538
      %3571 = vst [vmem:[#allocation2 + $0x48] sm:$0xff] %v3539
      %3572 = vst [vmem:[#allocation2 + $0x50] sm:$0xff] %v3540
      %3573 = vst [vmem:[#allocation2 + $0x58] sm:$0xff] %v3541
      %3574 = vst [vmem:[#allocation2 + $0x60] sm:$0xff] %v3542
      %3575 = vst [vmem:[#allocation2 + $0x68] sm:$0xff] %v3543
      %3576 = vst [vmem:[#allocation2 + $0x70] sm:$0xff] %v3544
      %3577 = vst [vmem:[#allocation2 + $0x78] sm:$0xff] %v3545
      %3578 = vst [vmem:[#allocation2 + $0x80] sm:$0xff] %v3546
      %3579 = vst [vmem:[#allocation2 + $0x88] sm:$0xff] %v3547
      %3580 = vst [vmem:[#allocation2 + $0x90] sm:$0xff] %v3548
      %3581 = vst [vmem:[#allocation2 + $0x98] sm:$0xff] %v3549
      %3582 = vst [vmem:[#allocation2 + $0xa0] sm:$0xff] %v3550
      %3583 = vst [vmem:[#allocation2 + $0xa8] sm:$0xff] %v3551
      %3584 = vst [vmem:[#allocation2 + $0xb0] sm:$0xff] %v3552
      %3585 = vst [vmem:[#allocation2 + $0xb8] sm:$0xff] %v3553
      %3586 = vst [vmem:[#allocation2 + $0xc0] sm:$0xff] %v3554
      %3587 = vst [vmem:[#allocation2 + $0xc8] sm:$0xff] %v3555
      %3588 = vst [vmem:[#allocation2 + $0xd0] sm:$0xff] %v3556
      %3589 = vst [vmem:[#allocation2 + $0xd8] sm:$0xff] %v3557
      %3590 = vst [vmem:[#allocation2 + $0xe0] sm:$0xff] %v3558
      %3591 = vst [vmem:[#allocation2 + $0xe8] sm:$0xff] %v3559
      %3592 = vst [vmem:[#allocation2 + $0xf0] sm:$0xff] %v3560
      %3593 = vst [vmem:[#allocation2 + $0xf8] sm:$0xff] %v3561
      %s3594 = scalar_lea.vmem %s1, 512
      %v3595 = vld [vmem:[%s3594] sm:$0xf]
      %v3596 = vld [vmem:[%s3594 + $0x4] sm:$0xf]
      %v3597 = vld [vmem:[%s3594 + $0x8] sm:$0xf]
      %v3598 = vld [vmem:[%s3594 + $0xc] sm:$0xf]
      %v3599 = vld [vmem:[%s3594 + $0x10] sm:$0xf]
      %v3600 = vld [vmem:[%s3594 + $0x14] sm:$0xf]
      %v3601 = vld [vmem:[%s3594 + $0x18] sm:$0xf]
      %v3602 = vld [vmem:[%s3594 + $0x1c] sm:$0xf]
      %v3603 = vld [vmem:[%s3594 + $0x20] sm:$0xf]
      %v3604 = vld [vmem:[%s3594 + $0x24] sm:$0xf]
      %v3605 = vld [vmem:[%s3594 + $0x28] sm:$0xf]
      %v3606 = vld [vmem:[%s3594 + $0x2c] sm:$0xf]
      %v3607 = vld [vmem:[%s3594 + $0x30] sm:$0xf]
      %v3608 = vld [vmem:[%s3594 + $0x34] sm:$0xf]
      %v3609 = vld [vmem:[%s3594 + $0x38] sm:$0xf]
      %v3610 = vld [vmem:[%s3594 + $0x3c] sm:$0xf]
      %v3611 = vunpack.c.l.b16 %v2878
      %v3612 = vunpack.c.l.b16 %v2881
      %v3613 = vpack.c.b16 %v3612, %v3611
      %v3631 = vunpack.c.l.b16 %v3595
      %v3632 = vunpack.c.l.b16 %v3596
      %v3633 = vunpack.c.l.b16 %v3597
      %v3634 = vunpack.c.l.b16 %v3598
      %v3635 = vunpack.c.l.b16 %v3599
      %v3636 = vunpack.c.l.b16 %v3600
      %v3637 = vunpack.c.l.b16 %v3601
      %v3638 = vunpack.c.l.b16 %v3602
      %v3639 = vunpack.c.l.b16 %v3603
      %v3640 = vunpack.c.l.b16 %v3604
      %v3641 = vunpack.c.l.b16 %v3605
      %v3642 = vunpack.c.l.b16 %v3606
      %v3643 = vunpack.c.l.b16 %v3607
      %v3644 = vunpack.c.l.b16 %v3608
      %v3645 = vunpack.c.l.b16 %v3609
      %v3646 = vunpack.c.l.b16 %v3610
      %v3647 = vpack.c.b16 %v3632, %v3631
      %v3648 = vpack.c.b16 %v3634, %v3633
      %v3649 = vpack.c.b16 %v3636, %v3635
      %v3650 = vpack.c.b16 %v3638, %v3637
      %v3651 = vpack.c.b16 %v3640, %v3639
      %v3652 = vpack.c.b16 %v3642, %v3641
      %v3653 = vpack.c.b16 %v3644, %v3643
      %v3654 = vpack.c.b16 %v3646, %v3645
      %3663 = vmatprep.subr.bf16.mxu0 0
      %3664 = vmatpush1.bf16.msra.mxu0 %v3654
      %3665 = vmatprep.subr.bf16.mxu0 0
      %3666 = vmatpush1.bf16.msra.mxu0 %v3653
      %3667 = vmatprep.subr.bf16.mxu0 0
      %3668 = vmatpush1.bf16.msra.mxu0 %v3652
      %3669 = vmatprep.subr.bf16.mxu0 0
      %3670 = vmatpush1.bf16.msra.mxu0 %v3651
      %3671 = vmatprep.subr.bf16.mxu0 0
      %3672 = vmatpush1.bf16.msra.mxu0 %v3650
      %3673 = vmatprep.subr.bf16.mxu0 0
      %3674 = vmatpush1.bf16.msra.mxu0 %v3649
      %3675 = vmatprep.subr.bf16.mxu0 0
      %3676 = vmatpush1.bf16.msra.mxu0 %v3648
      %3677 = vmatprep.subr.bf16.mxu0 0
      %3678 = vmatpush1.bf16.msra.mxu0 %v3647
      %3679 = vmatprep.subr.bf16.mxu0 0
      %3680 = vmatpush2.bf16.msra.mxu0 0
      %3681 = vmatprep.subr.bf16.mxu0 0
      %3682 = vmatpush2.bf16.msra.mxu0 0
      %3683 = vmatprep.subr.bf16.mxu0 0
      %3684 = vmatpush2.bf16.msra.mxu0 0
      %3685 = vmatprep.subr.bf16.mxu0 0
      %3686 = vmatpush2.bf16.msra.mxu0 0
      %3687 = vmatprep.subr.bf16.mxu0 0
      %3688 = vmatpush2.bf16.msra.mxu0 0
      %3689 = vmatprep.subr.bf16.mxu0 0
      %3690 = vmatpush2.bf16.msra.mxu0 0
      %3691 = vmatprep.subr.bf16.mxu0 0
      %3692 = vmatpush2.bf16.msra.mxu0 0
      %3693 = vmatprep.subr.bf16.mxu0 0
      %3694 = vmatpush2.bf16.msra.mxu0 0
      %3695 = vmatprep.mubr.bf16.mxu0 0
      %3696 = vmatmul.mubr.bf16.gmra.mxu0 %v2933
      %v3697 = vpop.f32.mrf.mxu0
      %v3698 = vadd.f32 0.0, %v3697
      %v3699 = vpop.f32.mrf.mxu0
      %v3700 = vpop.f32.mrf.mxu0
      %v3701 = vadd.f32 0.0, %v3700
      %v3702 = vpop.f32.mrf.mxu0
      %3703 = vmatprep.mubr.bf16.mxu0 0
      %3704 = vmatmul.mubr.bf16.gmra.mxu0 %v2934
      %v3705 = vpop.f32.mrf.mxu0
      %v3706 = vadd.f32 0.0, %v3705
      %v3707 = vpop.f32.mrf.mxu0
      %v3708 = vpop.f32.mrf.mxu0
      %v3709 = vadd.f32 0.0, %v3708
      %v3710 = vpop.f32.mrf.mxu0
      %3711 = vmatprep.mubr.bf16.mxu0 0
      %3712 = vmatmul.mubr.bf16.gmra.mxu0 %v2935
      %v3713 = vpop.f32.mrf.mxu0
      %v3714 = vadd.f32 0.0, %v3713
      %v3715 = vpop.f32.mrf.mxu0
      %v3716 = vpop.f32.mrf.mxu0
      %v3717 = vadd.f32 0.0, %v3716
      %v3718 = vpop.f32.mrf.mxu0
      %3719 = vmatprep.mubr.bf16.mxu0 0
      %3720 = vmatmul.mubr.bf16.gmra.mxu0 %v2936
      %v3721 = vpop.f32.mrf.mxu0
      %v3722 = vadd.f32 0.0, %v3721
      %v3723 = vpop.f32.mrf.mxu0
      %v3724 = vpop.f32.mrf.mxu0
      %v3725 = vadd.f32 0.0, %v3724
      %v3726 = vpop.f32.mrf.mxu0
      %3727 = vmatprep.mubr.bf16.mxu0 0
      %3728 = vmatmul.mubr.bf16.gmra.mxu0 %v2937
      %v3729 = vpop.f32.mrf.mxu0
      %v3730 = vadd.f32 0.0, %v3729
      %v3731 = vpop.f32.mrf.mxu0
      %v3732 = vpop.f32.mrf.mxu0
      %v3733 = vadd.f32 0.0, %v3732
      %v3734 = vpop.f32.mrf.mxu0
      %3735 = vmatprep.mubr.bf16.mxu0 0
      %3736 = vmatmul.mubr.bf16.gmra.mxu0 %v2938
      %v3737 = vpop.f32.mrf.mxu0
      %v3738 = vadd.f32 0.0, %v3737
      %v3739 = vpop.f32.mrf.mxu0
      %v3740 = vpop.f32.mrf.mxu0
      %v3741 = vadd.f32 0.0, %v3740
      %v3742 = vpop.f32.mrf.mxu0
      %3743 = vmatprep.mubr.bf16.mxu0 0
      %3744 = vmatmul.mubr.bf16.gmra.mxu0 %v2939
      %v3745 = vpop.f32.mrf.mxu0
      %v3746 = vadd.f32 0.0, %v3745
      %v3747 = vpop.f32.mrf.mxu0
      %v3748 = vpop.f32.mrf.mxu0
      %v3749 = vadd.f32 0.0, %v3748
      %v3750 = vpop.f32.mrf.mxu0
      %3751 = vmatprep.mubr.bf16.mxu0 0
      %3752 = vmatmul.mubr.bf16.gmra.mxu0 %v2940
      %v3753 = vpop.f32.mrf.mxu0
      %v3754 = vadd.f32 0.0, %v3753
      %v3755 = vpop.f32.mrf.mxu0
      %v3756 = vpop.f32.mrf.mxu0
      %v3757 = vadd.f32 0.0, %v3756
      %v3758 = vpop.f32.mrf.mxu0
      %3759 = vmatprep.mubr.bf16.mxu0 0
      %3760 = vmatmul.mubr.bf16.gmra.mxu0 %v2941
      %v3761 = vpop.f32.mrf.mxu0
      %v3762 = vadd.f32 0.0, %v3761
      %v3763 = vpop.f32.mrf.mxu0
      %v3764 = vpop.f32.mrf.mxu0
      %v3765 = vadd.f32 0.0, %v3764
      %v3766 = vpop.f32.mrf.mxu0
      %3767 = vmatprep.mubr.bf16.mxu0 0
      %3768 = vmatmul.mubr.bf16.gmra.mxu0 %v2942
      %v3769 = vpop.f32.mrf.mxu0
      %v3770 = vadd.f32 0.0, %v3769
      %v3771 = vpop.f32.mrf.mxu0
      %v3772 = vpop.f32.mrf.mxu0
      %v3773 = vadd.f32 0.0, %v3772
      %v3774 = vpop.f32.mrf.mxu0
      %3775 = vmatprep.mubr.bf16.mxu0 0
      %3776 = vmatmul.mubr.bf16.gmra.mxu0 %v2943
      %v3777 = vpop.f32.mrf.mxu0
      %v3778 = vadd.f32 0.0, %v3777
      %v3779 = vpop.f32.mrf.mxu0
      %v3780 = vpop.f32.mrf.mxu0
      %v3781 = vadd.f32 0.0, %v3780
      %v3782 = vpop.f32.mrf.mxu0
      %3783 = vmatprep.mubr.bf16.mxu0 0
      %3784 = vmatmul.mubr.bf16.gmra.mxu0 %v2944
      %v3785 = vpop.f32.mrf.mxu0
      %v3786 = vadd.f32 0.0, %v3785
      %v3787 = vpop.f32.mrf.mxu0
      %v3788 = vpop.f32.mrf.mxu0
      %v3789 = vadd.f32 0.0, %v3788
      %v3790 = vpop.f32.mrf.mxu0
      %3791 = vmatprep.mubr.bf16.mxu0 0
      %3792 = vmatmul.mubr.bf16.gmra.mxu0 %v2945
      %v3793 = vpop.f32.mrf.mxu0
      %v3794 = vadd.f32 0.0, %v3793
      %v3795 = vpop.f32.mrf.mxu0
      %v3796 = vpop.f32.mrf.mxu0
      %v3797 = vadd.f32 0.0, %v3796
      %v3798 = vpop.f32.mrf.mxu0
      %3799 = vmatprep.mubr.bf16.mxu0 0
      %3800 = vmatmul.mubr.bf16.gmra.mxu0 %v2946
      %v3801 = vpop.f32.mrf.mxu0
      %v3802 = vadd.f32 0.0, %v3801
      %v3803 = vpop.f32.mrf.mxu0
      %v3804 = vpop.f32.mrf.mxu0
      %v3805 = vadd.f32 0.0, %v3804
      %v3806 = vpop.f32.mrf.mxu0
      %3807 = vmatprep.mubr.bf16.mxu0 0
      %3808 = vmatmul.mubr.bf16.gmra.mxu0 %v3287
      %v3809 = vpop.f32.mrf.mxu0
      %v3810 = vadd.f32 0.0, %v3809
      %v3811 = vpop.f32.mrf.mxu0
      %v3812 = vpop.f32.mrf.mxu0
      %v3813 = vadd.f32 0.0, %v3812
      %v3814 = vpop.f32.mrf.mxu0
      %3815 = vmatprep.mubr.bf16.mxu0 0
      %3816 = vmatmul.mubr.bf16.gmra.mxu0 %v3613
      %v3817 = vpop.f32.mrf.mxu0
      %v3818 = vadd.f32 0.0, %v3817
      %v3819 = vpop.f32.mrf.mxu0
      %v3820 = vpop.f32.mrf.mxu0
      %v3821 = vadd.f32 0.0, %v3820
      %v3822 = vpop.f32.mrf.mxu0
      %3823 = vdwg.mxu0
      %v3824 = vld [vmem:[#allocation2] sm:$0xff]
      %v3825 = vld [vmem:[#allocation2 + $0x8] sm:$0xff]
      %v3826 = vld [vmem:[#allocation2 + $0x10] sm:$0xff]
      %v3827 = vld [vmem:[#allocation2 + $0x18] sm:$0xff]
      %v3828 = vld [vmem:[#allocation2 + $0x20] sm:$0xff]
      %v3829 = vld [vmem:[#allocation2 + $0x28] sm:$0xff]
      %v3830 = vld [vmem:[#allocation2 + $0x30] sm:$0xff]
      %v3831 = vld [vmem:[#allocation2 + $0x38] sm:$0xff]
      %v3832 = vld [vmem:[#allocation2 + $0x40] sm:$0xff]
      %v3833 = vld [vmem:[#allocation2 + $0x48] sm:$0xff]
      %v3834 = vld [vmem:[#allocation2 + $0x50] sm:$0xff]
      %v3835 = vld [vmem:[#allocation2 + $0x58] sm:$0xff]
      %v3836 = vld [vmem:[#allocation2 + $0x60] sm:$0xff]
      %v3837 = vld [vmem:[#allocation2 + $0x68] sm:$0xff]
      %v3838 = vld [vmem:[#allocation2 + $0x70] sm:$0xff]
      %v3839 = vld [vmem:[#allocation2 + $0x78] sm:$0xff]
      %v3840 = vld [vmem:[#allocation2 + $0x80] sm:$0xff]
      %v3841 = vld [vmem:[#allocation2 + $0x88] sm:$0xff]
      %v3842 = vld [vmem:[#allocation2 + $0x90] sm:$0xff]
      %v3843 = vld [vmem:[#allocation2 + $0x98] sm:$0xff]
      %v3844 = vld [vmem:[#allocation2 + $0xa0] sm:$0xff]
      %v3845 = vld [vmem:[#allocation2 + $0xa8] sm:$0xff]
      %v3846 = vld [vmem:[#allocation2 + $0xb0] sm:$0xff]
      %v3847 = vld [vmem:[#allocation2 + $0xb8] sm:$0xff]
      %v3848 = vld [vmem:[#allocation2 + $0xc0] sm:$0xff]
      %v3849 = vld [vmem:[#allocation2 + $0xc8] sm:$0xff]
      %v3850 = vld [vmem:[#allocation2 + $0xd0] sm:$0xff]
      %v3851 = vld [vmem:[#allocation2 + $0xd8] sm:$0xff]
      %v3852 = vld [vmem:[#allocation2 + $0xe0] sm:$0xff]
      %v3853 = vld [vmem:[#allocation2 + $0xe8] sm:$0xff]
      %v3854 = vld [vmem:[#allocation2 + $0xf0] sm:$0xff]
      %v3855 = vld [vmem:[#allocation2 + $0xf8] sm:$0xff]
      %v3856 = vadd.f32 %v3824, %v3698
      %v3857 = vadd.f32 %v3825, %v3701
      %v3858 = vadd.f32 %v3826, %v3706
      %v3859 = vadd.f32 %v3827, %v3709
      %v3860 = vadd.f32 %v3828, %v3714
      %v3861 = vadd.f32 %v3829, %v3717
      %v3862 = vadd.f32 %v3830, %v3722
      %v3863 = vadd.f32 %v3831, %v3725
      %v3864 = vadd.f32 %v3832, %v3730
      %v3865 = vadd.f32 %v3833, %v3733
      %v3866 = vadd.f32 %v3834, %v3738
      %v3867 = vadd.f32 %v3835, %v3741
      %v3868 = vadd.f32 %v3836, %v3746
      %v3869 = vadd.f32 %v3837, %v3749
      %v3870 = vadd.f32 %v3838, %v3754
      %v3871 = vadd.f32 %v3839, %v3757
      %v3872 = vadd.f32 %v3840, %v3762
      %v3873 = vadd.f32 %v3841, %v3765
      %v3874 = vadd.f32 %v3842, %v3770
      %v3875 = vadd.f32 %v3843, %v3773
      %v3876 = vadd.f32 %v3844, %v3778
      %v3877 = vadd.f32 %v3845, %v3781
      %v3878 = vadd.f32 %v3846, %v3786
      %v3879 = vadd.f32 %v3847, %v3789
      %v3880 = vadd.f32 %v3848, %v3794
      %v3881 = vadd.f32 %v3849, %v3797
      %v3882 = vadd.f32 %v3850, %v3802
      %v3883 = vadd.f32 %v3851, %v3805
      %v3884 = vadd.f32 %v3852, %v3810
      %v3885 = vadd.f32 %v3853, %v3813
      %v3886 = vadd.f32 %v3854, %v3818
      %v3887 = vadd.f32 %v3855, %v3821
      %3888 = vst [vmem:[#allocation2] sm:$0xff] %v3856
      %3889 = vst [vmem:[#allocation2 + $0x8] sm:$0xff] %v3857
      %3890 = vst [vmem:[#allocation2 + $0x10] sm:$0xff] %v3858
      %3891 = vst [vmem:[#allocation2 + $0x18] sm:$0xff] %v3859
      %3892 = vst [vmem:[#allocation2 + $0x20] sm:$0xff] %v3860
      %3893 = vst [vmem:[#allocation2 + $0x28] sm:$0xff] %v3861
      %3894 = vst [vmem:[#allocation2 + $0x30] sm:$0xff] %v3862
      %3895 = vst [vmem:[#allocation2 + $0x38] sm:$0xff] %v3863
      %3896 = vst [vmem:[#allocation2 + $0x40] sm:$0xff] %v3864
      %3897 = vst [vmem:[#allocation2 + $0x48] sm:$0xff] %v3865
      %3898 = vst [vmem:[#allocation2 + $0x50] sm:$0xff] %v3866
      %3899 = vst [vmem:[#allocation2 + $0x58] sm:$0xff] %v3867
      %3900 = vst [vmem:[#allocation2 + $0x60] sm:$0xff] %v3868
      %3901 = vst [vmem:[#allocation2 + $0x68] sm:$0xff] %v3869
      %3902 = vst [vmem:[#allocation2 + $0x70] sm:$0xff] %v3870
      %3903 = vst [vmem:[#allocation2 + $0x78] sm:$0xff] %v3871
      %3904 = vst [vmem:[#allocation2 + $0x80] sm:$0xff] %v3872
      %3905 = vst [vmem:[#allocation2 + $0x88] sm:$0xff] %v3873
      %3906 = vst [vmem:[#allocation2 + $0x90] sm:$0xff] %v3874
      %3907 = vst [vmem:[#allocation2 + $0x98] sm:$0xff] %v3875
      %3908 = vst [vmem:[#allocation2 + $0xa0] sm:$0xff] %v3876
      %3909 = vst [vmem:[#allocation2 + $0xa8] sm:$0xff] %v3877
      %3910 = vst [vmem:[#allocation2 + $0xb0] sm:$0xff] %v3878
      %3911 = vst [vmem:[#allocation2 + $0xb8] sm:$0xff] %v3879
      %3912 = vst [vmem:[#allocation2 + $0xc0] sm:$0xff] %v3880
      %3913 = vst [vmem:[#allocation2 + $0xc8] sm:$0xff] %v3881
      %3914 = vst [vmem:[#allocation2 + $0xd0] sm:$0xff] %v3882
      %3915 = vst [vmem:[#allocation2 + $0xd8] sm:$0xff] %v3883
      %3916 = vst [vmem:[#allocation2 + $0xe0] sm:$0xff] %v3884
      %3917 = vst [vmem:[#allocation2 + $0xe8] sm:$0xff] %v3885
      %3918 = vst [vmem:[#allocation2 + $0xf0] sm:$0xff] %v3886
      %3919 = vst [vmem:[#allocation2 + $0xf8] sm:$0xff] %v3887
      %v3920 = vld [vmem:[#allocation2] sm:$0xff]
      %v3921 = vld [vmem:[#allocation2 + $0x8] sm:$0xff]
      %v3922 = vld [vmem:[#allocation2 + $0x10] sm:$0xff]
      %v3923 = vld [vmem:[#allocation2 + $0x18] sm:$0xff]
      %v3924 = vld [vmem:[#allocation2 + $0x20] sm:$0xff]
      %v3925 = vld [vmem:[#allocation2 + $0x28] sm:$0xff]
      %v3926 = vld [vmem:[#allocation2 + $0x30] sm:$0xff]
      %v3927 = vld [vmem:[#allocation2 + $0x38] sm:$0xff]
      %v3928 = vld [vmem:[#allocation2 + $0x40] sm:$0xff]
      %v3929 = vld [vmem:[#allocation2 + $0x48] sm:$0xff]
      %v3930 = vld [vmem:[#allocation2 + $0x50] sm:$0xff]
      %v3931 = vld [vmem:[#allocation2 + $0x58] sm:$0xff]
      %v3932 = vld [vmem:[#allocation2 + $0x60] sm:$0xff]
      %v3933 = vld [vmem:[#allocation2 + $0x68] sm:$0xff]
      %v3934 = vld [vmem:[#allocation2 + $0x70] sm:$0xff]
      %v3935 = vld [vmem:[#allocation2 + $0x78] sm:$0xff]
      %v3936 = vld [vmem:[#allocation2 + $0x80] sm:$0xff]
      %v3937 = vld [vmem:[#allocation2 + $0x88] sm:$0xff]
      %v3938 = vld [vmem:[#allocation2 + $0x90] sm:$0xff]
      %v3939 = vld [vmem:[#allocation2 + $0x98] sm:$0xff]
      %v3940 = vld [vmem:[#allocation2 + $0xa0] sm:$0xff]
      %v3941 = vld [vmem:[#allocation2 + $0xa8] sm:$0xff]
      %v3942 = vld [vmem:[#allocation2 + $0xb0] sm:$0xff]
      %v3943 = vld [vmem:[#allocation2 + $0xb8] sm:$0xff]
      %v3944 = vld [vmem:[#allocation2 + $0xc0] sm:$0xff]
      %v3945 = vld [vmem:[#allocation2 + $0xc8] sm:$0xff]
      %v3946 = vld [vmem:[#allocation2 + $0xd0] sm:$0xff]
      %v3947 = vld [vmem:[#allocation2 + $0xd8] sm:$0xff]
      %v3948 = vld [vmem:[#allocation2 + $0xe0] sm:$0xff]
      %v3949 = vld [vmem:[#allocation2 + $0xe8] sm:$0xff]
      %v3950 = vld [vmem:[#allocation2 + $0xf0] sm:$0xff]
      %v3951 = vld [vmem:[#allocation2 + $0xf8] sm:$0xff]
      %v3952 = vld [vmem:[%s2] sm:$0x1]
      %v3954 = vlaneseq
      %v3955 = vshrl.u32 %v3954, 7
      %v3956 = vsub.s32 0, %v3955
      %v3957 = vrot.slane %v3952, %v3956
      %v3959 = vmul.f32 %v3920, %v3957
      %v3960 = vmul.f32 %v3921, %v3957
      %v3961 = vmul.f32 %v3922, %v3957
      %v3962 = vmul.f32 %v3923, %v3957
      %v3963 = vmul.f32 %v3924, %v3957
      %v3964 = vmul.f32 %v3925, %v3957
      %v3965 = vmul.f32 %v3926, %v3957
      %v3966 = vmul.f32 %v3927, %v3957
      %v3967 = vmul.f32 %v3928, %v3957
      %v3968 = vmul.f32 %v3929, %v3957
      %v3969 = vmul.f32 %v3930, %v3957
      %v3970 = vmul.f32 %v3931, %v3957
      %v3971 = vmul.f32 %v3932, %v3957
      %v3972 = vmul.f32 %v3933, %v3957
      %v3973 = vmul.f32 %v3934, %v3957
      %v3974 = vmul.f32 %v3935, %v3957
      %v3975 = vmul.f32 %v3936, %v3957
      %v3976 = vmul.f32 %v3937, %v3957
      %v3977 = vmul.f32 %v3938, %v3957
      %v3978 = vmul.f32 %v3939, %v3957
      %v3979 = vmul.f32 %v3940, %v3957
      %v3980 = vmul.f32 %v3941, %v3957
      %v3981 = vmul.f32 %v3942, %v3957
      %v3982 = vmul.f32 %v3943, %v3957
      %v3983 = vmul.f32 %v3944, %v3957
      %v3984 = vmul.f32 %v3945, %v3957
      %v3985 = vmul.f32 %v3946, %v3957
      %v3986 = vmul.f32 %v3947, %v3957
      %v3987 = vmul.f32 %v3948, %v3957
      %v3988 = vmul.f32 %v3949, %v3957
      %v3989 = vmul.f32 %v3950, %v3957
      %v3990 = vmul.f32 %v3951, %v3957
      %v3991 = vld [vmem:[%s3] sm:$0x1]
      %v3993 = vlaneseq
      %v3994 = vshrl.u32 %v3993, 7
      %v3995 = vsub.s32 0, %v3994
      %v3996 = vrot.slane %v3991, %v3995
      %v3998 = vadd.f32 %v3959, %v3996
      %v3999 = vadd.f32 %v3960, %v3996
      %v4000 = vadd.f32 %v3961, %v3996
      %v4001 = vadd.f32 %v3962, %v3996
      %v4002 = vadd.f32 %v3963, %v3996
      %v4003 = vadd.f32 %v3964, %v3996
      %v4004 = vadd.f32 %v3965, %v3996
      %v4005 = vadd.f32 %v3966, %v3996
      %v4006 = vadd.f32 %v3967, %v3996
      %v4007 = vadd.f32 %v3968, %v3996
      %v4008 = vadd.f32 %v3969, %v3996
      %v4009 = vadd.f32 %v3970, %v3996
      %v4010 = vadd.f32 %v3971, %v3996
      %v4011 = vadd.f32 %v3972, %v3996
      %v4012 = vadd.f32 %v3973, %v3996
      %v4013 = vadd.f32 %v3974, %v3996
      %v4014 = vadd.f32 %v3975, %v3996
      %v4015 = vadd.f32 %v3976, %v3996
      %v4016 = vadd.f32 %v3977, %v3996
      %v4017 = vadd.f32 %v3978, %v3996
      %v4018 = vadd.f32 %v3979, %v3996
      %v4019 = vadd.f32 %v3980, %v3996
      %v4020 = vadd.f32 %v3981, %v3996
      %v4021 = vadd.f32 %v3982, %v3996
      %v4022 = vadd.f32 %v3983, %v3996
      %v4023 = vadd.f32 %v3984, %v3996
      %v4024 = vadd.f32 %v3985, %v3996
      %v4025 = vadd.f32 %v3986, %v3996
      %v4026 = vadd.f32 %v3987, %v3996
      %v4027 = vadd.f32 %v3988, %v3996
      %v4028 = vadd.f32 %v3989, %v3996
      %v4029 = vadd.f32 %v3990, %v3996
      %v4030 = vmax.f32 %v3998, 0.0
      %v4031 = vmax.f32 %v3999, 0.0
      %v4032 = vmax.f32 %v4000, 0.0
      %v4033 = vmax.f32 %v4001, 0.0
      %v4034 = vmax.f32 %v4002, 0.0
      %v4035 = vmax.f32 %v4003, 0.0
      %v4036 = vmax.f32 %v4004, 0.0
      %v4037 = vmax.f32 %v4005, 0.0
      %v4038 = vmax.f32 %v4006, 0.0
      %v4039 = vmax.f32 %v4007, 0.0
      %v4040 = vmax.f32 %v4008, 0.0
      %v4041 = vmax.f32 %v4009, 0.0
      %v4042 = vmax.f32 %v4010, 0.0
      %v4043 = vmax.f32 %v4011, 0.0
      %v4044 = vmax.f32 %v4012, 0.0
      %v4045 = vmax.f32 %v4013, 0.0
      %v4046 = vmax.f32 %v4014, 0.0
      %v4047 = vmax.f32 %v4015, 0.0
      %v4048 = vmax.f32 %v4016, 0.0
      %v4049 = vmax.f32 %v4017, 0.0
      %v4050 = vmax.f32 %v4018, 0.0
      %v4051 = vmax.f32 %v4019, 0.0
      %v4052 = vmax.f32 %v4020, 0.0
      %v4053 = vmax.f32 %v4021, 0.0
      %v4054 = vmax.f32 %v4022, 0.0
      %v4055 = vmax.f32 %v4023, 0.0
      %v4056 = vmax.f32 %v4024, 0.0
      %v4057 = vmax.f32 %v4025, 0.0
      %v4058 = vmax.f32 %v4026, 0.0
      %v4059 = vmax.f32 %v4027, 0.0
      %v4060 = vmax.f32 %v4028, 0.0
      %v4061 = vmax.f32 %v4029, 0.0
      %v4062 = vpack.c.bf16 %v4031, %v4030
      %v4063 = vpack.c.bf16 %v4033, %v4032
      %v4064 = vpack.c.bf16 %v4035, %v4034
      %v4065 = vpack.c.bf16 %v4037, %v4036
      %v4066 = vpack.c.bf16 %v4039, %v4038
      %v4067 = vpack.c.bf16 %v4041, %v4040
      %v4068 = vpack.c.bf16 %v4043, %v4042
      %v4069 = vpack.c.bf16 %v4045, %v4044
      %v4070 = vpack.c.bf16 %v4047, %v4046
      %v4071 = vpack.c.bf16 %v4049, %v4048
      %v4072 = vpack.c.bf16 %v4051, %v4050
      %v4073 = vpack.c.bf16 %v4053, %v4052
      %v4074 = vpack.c.bf16 %v4055, %v4054
      %v4075 = vpack.c.bf16 %v4057, %v4056
      %v4076 = vpack.c.bf16 %v4059, %v4058
      %v4077 = vpack.c.bf16 %v4061, %v4060
      %v4094 = vunpack.c.l.b16 %v4062
      %v4095 = vunpack.c.h.b16 %v4062
      %v4096 = vunpack.c.l.b16 %v4063
      %v4097 = vunpack.c.h.b16 %v4063
      %v4098 = vunpack.c.l.b16 %v4064
      %v4099 = vunpack.c.h.b16 %v4064
      %v4100 = vunpack.c.l.b16 %v4065
      %v4101 = vunpack.c.h.b16 %v4065
      %v4102 = vunpack.c.l.b16 %v4066
      %v4103 = vunpack.c.h.b16 %v4066
      %v4104 = vunpack.c.l.b16 %v4067
      %v4105 = vunpack.c.h.b16 %v4067
      %v4106 = vunpack.c.l.b16 %v4068
      %v4107 = vunpack.c.h.b16 %v4068
      %v4108 = vunpack.c.l.b16 %v4069
      %v4109 = vunpack.c.h.b16 %v4069
      %v4110 = vunpack.c.l.b16 %v4070
      %v4111 = vunpack.c.h.b16 %v4070
      %v4112 = vunpack.c.l.b16 %v4071
      %v4113 = vunpack.c.h.b16 %v4071
      %v4114 = vunpack.c.l.b16 %v4072
      %v4115 = vunpack.c.h.b16 %v4072
      %v4116 = vunpack.c.l.b16 %v4073
      %v4117 = vunpack.c.h.b16 %v4073
      %v4118 = vunpack.c.l.b16 %v4074
      %v4119 = vunpack.c.h.b16 %v4074
      %v4120 = vunpack.c.l.b16 %v4075
      %v4121 = vunpack.c.h.b16 %v4075
      %v4122 = vunpack.c.l.b16 %v4076
      %v4123 = vunpack.c.h.b16 %v4076
      %v4124 = vunpack.c.l.b16 %v4077
      %v4125 = vunpack.c.h.b16 %v4077
      %v4126 = vpack.c.b16 %v4094, %v4094
      %v4127 = vpack.c.b16 %v4095, %v4095
      %v4128 = vpack.c.b16 %v4096, %v4096
      %v4129 = vpack.c.b16 %v4097, %v4097
      %v4130 = vpack.c.b16 %v4098, %v4098
      %v4131 = vpack.c.b16 %v4099, %v4099
      %v4132 = vpack.c.b16 %v4100, %v4100
      %v4133 = vpack.c.b16 %v4101, %v4101
      %v4134 = vpack.c.b16 %v4102, %v4102
      %v4135 = vpack.c.b16 %v4103, %v4103
      %v4136 = vpack.c.b16 %v4104, %v4104
      %v4137 = vpack.c.b16 %v4105, %v4105
      %v4138 = vpack.c.b16 %v4106, %v4106
      %v4139 = vpack.c.b16 %v4107, %v4107
      %v4140 = vpack.c.b16 %v4108, %v4108
      %v4141 = vpack.c.b16 %v4109, %v4109
      %v4142 = vpack.c.b16 %v4110, %v4110
      %v4143 = vpack.c.b16 %v4111, %v4111
      %v4144 = vpack.c.b16 %v4112, %v4112
      %v4145 = vpack.c.b16 %v4113, %v4113
      %v4146 = vpack.c.b16 %v4114, %v4114
      %v4147 = vpack.c.b16 %v4115, %v4115
      %v4148 = vpack.c.b16 %v4116, %v4116
      %v4149 = vpack.c.b16 %v4117, %v4117
      %v4150 = vpack.c.b16 %v4118, %v4118
      %v4151 = vpack.c.b16 %v4119, %v4119
      %v4152 = vpack.c.b16 %v4120, %v4120
      %v4153 = vpack.c.b16 %v4121, %v4121
      %v4154 = vpack.c.b16 %v4122, %v4122
      %v4155 = vpack.c.b16 %v4123, %v4123
      %v4156 = vpack.c.b16 %v4124, %v4124
      %v4157 = vpack.c.b16 %v4125, %v4125
      %4190 = vst [vmem:[%s197] sm:$0xf] %v4126
      %4191 = vst [vmem:[%s197 + $0x4] sm:$0xf] %v4127
      %4192 = vst [vmem:[%s197 + $0x8] sm:$0xf] %v4128
      %4193 = vst [vmem:[%s197 + $0xc] sm:$0xf] %v4129
      %4194 = vst [vmem:[%s197 + $0x10] sm:$0xf] %v4130
      %4195 = vst [vmem:[%s197 + $0x14] sm:$0xf] %v4131
      %4196 = vst [vmem:[%s197 + $0x18] sm:$0xf] %v4132
      %4197 = vst [vmem:[%s197 + $0x1c] sm:$0xf] %v4133
      %4198 = vst [vmem:[%s197 + $0x20] sm:$0xf] %v4134
      %4199 = vst [vmem:[%s197 + $0x24] sm:$0xf] %v4135
      %4200 = vst [vmem:[%s197 + $0x28] sm:$0xf] %v4136
      %4201 = vst [vmem:[%s197 + $0x2c] sm:$0xf] %v4137
      %4202 = vst [vmem:[%s197 + $0x30] sm:$0xf] %v4138
      %4203 = vst [vmem:[%s197 + $0x34] sm:$0xf] %v4139
      %4204 = vst [vmem:[%s197 + $0x38] sm:$0xf] %v4140
      %4205 = vst [vmem:[%s197 + $0x3c] sm:$0xf] %v4141
      %4206 = vst [vmem:[%s197 + $0x40] sm:$0xf] %v4142
      %4207 = vst [vmem:[%s197 + $0x44] sm:$0xf] %v4143
      %4208 = vst [vmem:[%s197 + $0x48] sm:$0xf] %v4144
      %4209 = vst [vmem:[%s197 + $0x4c] sm:$0xf] %v4145
      %4210 = vst [vmem:[%s197 + $0x50] sm:$0xf] %v4146
      %4211 = vst [vmem:[%s197 + $0x54] sm:$0xf] %v4147
      %4212 = vst [vmem:[%s197 + $0x58] sm:$0xf] %v4148
      %4213 = vst [vmem:[%s197 + $0x5c] sm:$0xf] %v4149
      %4214 = vst [vmem:[%s197 + $0x60] sm:$0xf] %v4150
      %4215 = vst [vmem:[%s197 + $0x64] sm:$0xf] %v4151
      %4216 = vst [vmem:[%s197 + $0x68] sm:$0xf] %v4152
      %4217 = vst [vmem:[%s197 + $0x6c] sm:$0xf] %v4153
      %4218 = vst [vmem:[%s197 + $0x70] sm:$0xf] %v4154
      %4219 = vst [vmem:[%s197 + $0x74] sm:$0xf] %v4155
      %4220 = vst [vmem:[%s197 + $0x78] sm:$0xf] %v4156
      %4221 = vst [vmem:[%s197 + $0x7c] sm:$0xf] %v4157
      %p4222 = scmp.lt.s32.totalorder %s15, 1
      %s4223 = scalar_select %p4222, %s15, 1
      %s4224 = smul.addr %s4223, 32
      %s4225 = smul.addr %s4224, 4
      %s4226 = scalar_lea.vmem %s4, %s4225
      // Predicated region
      $region37: #{bottleneck_forward.4} parent=35 // pred_check
        %p4227 = pneg %p122
      $region38: #{bottleneck_forward.4} parent=35 // pred_check_branch
        %4229 = sbr.rel (%p4227) target = $region40
      $region39: #{bottleneck_forward.4} parent=35 // pred_region
        _
      $region40: #{bottleneck_forward.4} parent=35 // pred_fallthru
        _
    $region36: #{bottleneck_forward.4} parent=5 // pred_fallthru
      _
    %p4230 = scmp.le.s32.totalorder 2, %s10
    // Predicated region
    $region41: #{bottleneck_forward.4} parent=5 // pred_check
      %p4231 = pneg %p4230
    $region42: #{bottleneck_forward.4} parent=5 // pred_check_branch
      %4233 = sbr.rel (%p4231) target = $region44
    $region43: #{bottleneck_forward.4} parent=5 // pred_region
      %s4234 = ssub.s32 %s10, 2
      // Predicated region
      $region45: #{bottleneck_forward.4} parent=43 // pred_check
        %p4235 = pneg %p128
      $region46: #{bottleneck_forward.4} parent=43 // pred_check_branch
        %4237 = sbr.rel (%p4235) target = $region48
      $region47: #{bottleneck_forward.4} parent=43 // pred_region
        %p4238 = scmp.lt.s32.totalorder %s16, 1
        %s4239 = scalar_select %p4238, %s16, 1
        %s4240 = smul.addr %s4239, 32
        %s4241 = smul.addr %s4240, 4
        %s4242 = scalar_lea.vmem %s4, %s4241
      $region48: #{bottleneck_forward.4} parent=43 // pred_fallthru
        _
    $region44: #{bottleneck_forward.4} parent=5 // pred_fallthru
      _
  $region6: #{bottleneck_forward.4} parent=0 // loop_footer
    %s14 = sadd.s32 1, %s10
  $region7: #{bottleneck_forward.4} parent=0 // loop_footer_branch
    %9 = sbr.rel target = $region3
  $region8: #{bottleneck_forward.4} parent=0 // loop_exit
    _

</llo_original>
